<compile_context>
chip_gen: v6e
topology: v6e:2x2x1
jax: 0.10.0
libtpu: 0.0.40
codegen_flags: <defaults>
</compile_context>

<pallas_src>
import functools

import jax
import jax.numpy as jnp
from jax.experimental import pallas as pl
from jax.experimental.pallas import tpu as pltpu


def _rb_kernel(x_ref, xflat_ref, w1_ref, w2_ref, w3d_ref, out_ref,
               pad_ref, col_ref, res_ref):
  """Fused RB forward for one batch sample.

  x_ref    : (1, H, W, C)   NHWC input sample (unpadded)
  xflat_ref: (1, M/2, 2C)   same sample, lane-dense residual layout:
                            row q = [pixel q | pixel q + M/2]
  w1_ref   : (9C, C)        conv1 3x3 weights, rows ordered (kh, kw, cin)
  w2_ref   : (C, CR)        conv2 1x1 (squeeze) weights
  w3d_ref  : (CR, 2C)       conv3 1x1 (excite) weights, duplicated along N
  out_ref  : (1, M/2, 2C)   output, same lane-dense layout as xflat_ref
  pad_ref  : (H+2, W+2, C)  VMEM scratch: zero-padded activation
  col_ref  : (M, 9C)        VMEM scratch: im2col slab (taps stacked along K)
  res_ref  : (M/2, 2C)      VMEM scratch: lane-dense repack of conv output
  """
  hp, wp, c = pad_ref.shape
  h, w = hp - 2, wp - 2
  m = h * w
  m2 = m // 2
  f32 = jnp.float32

  # Zero only the 1-pixel halo (per-iteration; interior is rewritten below).
  zrow = jnp.zeros((1, wp, c), f32)
  pad_ref[0:1, :, :] = zrow
  pad_ref[hp - 1:hp, :, :] = zrow
  zcol = jnp.zeros((hp, 1, c), f32)
  pad_ref[:, 0:1, :] = zcol
  pad_ref[:, wp - 1:wp, :] = zcol

  def conv3x3_from_pad():
    # 3x3/pad=1 conv: pack the 9 shifted windows along K into the im2col
    # slab, then ONE (M, 9C) @ (9C, C) MXU matmul.
    for kh in range(3):
      for kw in range(3):
        tap = kh * 3 + kw
        col_ref[:, tap * c:(tap + 1) * c] = (
            pad_ref[kh:kh + h, kw:kw + w, :].reshape(m, c))
    return jnp.dot(col_ref[...], w1_ref[...], preferred_element_type=f32)

  # Pass 1: y1 = relu(conv1(x))
  pad_ref[1:1 + h, 1:1 + w, :] = x_ref[0]
  y1 = jnp.maximum(conv3x3_from_pad(), 0.0)                      # (M, C)

  # Pass 2: conv1(y1), then repack lane-dense: row q = [pix q | pix q+M/2].
  pad_ref[1:1 + h, 1:1 + w, :] = y1.reshape(h, w, c)
  acc2 = conv3x3_from_pad()                                      # (M, C)
  res_ref[:, 0:c] = acc2[:m2, :]
  res_ref[:, c:2 * c] = acc2[m2:, :]

  # res1 = conv1(y1) * 0.1 + x   (lane-dense (M/2, 2C): full 128-lane vregs)
  res1 = res_ref[...] * 0.1 + xflat_ref[0]

  # Squeeze-excite gate: sigmoid(w3 . relu(w2 . global_avg_pool(res1))),
  # produced directly at width 2C via the duplicated conv3 weights.
  colsum = jnp.sum(res1, axis=0, keepdims=True)                  # (1, 2C)
  pooled = (colsum[:, 0:c] + colsum[:, c:2 * c]) * (1.0 / m)     # (1, C)
  t = jnp.maximum(
      jnp.dot(pooled, w2_ref[...], preferred_element_type=f32), 0.0)
  s2 = jnp.dot(t, w3d_ref[...], preferred_element_type=f32)      # (1, 2C)
  gate2 = 1.0 / (1.0 + jnp.exp(-s2))

  out_ref[...] = (res1 * gate2).reshape(1, m2, 2 * c)


def prepare_rb_params(params):
  """One-time weight re-layout (hoisted out of the per-call path)."""
  c = params["w_conv1"].shape[0]
  cr = params["w_conv2"].shape[0]
  w1 = jnp.transpose(params["w_conv1"], (2, 3, 1, 0)).reshape(9 * c, c)
  w2 = params["w_conv2"].reshape(cr, c).T            # (C, CR)
  w3 = params["w_conv3"].reshape(c, cr).T            # (CR, C)
  w3d = jnp.concatenate([w3, w3], axis=1)            # (CR, 2C)
  return {"w1": w1, "w2": w2, "w3d": w3d}


def rb_forward(x_nchw, prepped):
  n, c, h, w = x_nchw.shape
  m = h * w
  m2 = m // 2
  assert m % 2 == 0, "spatial size must be even for the lane-dense layout"
  cr = prepped["w2"].shape[1]

  # Single layout copy in: NCHW -> NHWC (channels on lanes).  The lane-dense
  # residual view is derived from the same tensor and fuses with that copy.
  x_nhwc = jnp.transpose(x_nchw, (0, 2, 3, 1))
  xp = x_nhwc.reshape(n, m, c)
  x_flat = jnp.concatenate([xp[:, :m2, :], xp[:, m2:, :]], axis=-1)

  flops = 4 * n * m * (9 * c) * c + 4 * n * c * cr
  bytes_accessed = 4 * (x_nhwc.size + x_flat.size + 9 * c * c + c * cr +
                        cr * 2 * c + n * m2 * 2 * c)

  out = pl.pallas_call(
      _rb_kernel,
      out_shape=jax.ShapeDtypeStruct((n, m2, 2 * c), jnp.float32),
      grid=(n,),
      in_specs=[
          pl.BlockSpec((1, h, w, c), lambda i: (i, 0, 0, 0)),
          pl.BlockSpec((1, m2, 2 * c), lambda i: (i, 0, 0)),
          pl.BlockSpec((9 * c, c), lambda i: (0, 0)),
          pl.BlockSpec((c, cr), lambda i: (0, 0)),
          pl.BlockSpec((cr, 2 * c), lambda i: (0, 0)),
      ],
      out_specs=pl.BlockSpec((1, m2, 2 * c), lambda i: (i, 0, 0)),
      scratch_shapes=[
          pltpu.VMEM((h + 2, w + 2, c), jnp.float32),   # padded activation
          pltpu.VMEM((m, 9 * c), jnp.float32),          # im2col slab
          pltpu.VMEM((m2, 2 * c), jnp.float32),         # lane-dense repack
      ],
      compiler_params=pltpu.CompilerParams(
          dimension_semantics=("parallel",)),
      cost_estimate=pl.CostEstimate(
          flops=flops, transcendentals=2 * n * c,
          bytes_accessed=bytes_accessed),
  )(x_nhwc, x_flat, prepped["w1"], prepped["w2"], prepped["w3d"])

  # Undo the lane-dense packing + back to NCHW (fuses into one output copy).
  out_pix = jnp.concatenate([out[:, :, :c], out[:, :, c:]], axis=1)  # (n,M,C)
  return jnp.transpose(out_pix.reshape(n, h, w, c), (0, 3, 1, 2))


# ----------------------------------------------------------------------------
# Pure-JAX reference (lax convolutions) for a numerical cross-check.
# ----------------------------------------------------------------------------
def rb_reference(x, params):
  dn = ("NCHW", "OIHW", "NCHW")
  hi = jax.lax.Precision.HIGHEST
  conv = lambda v, wt, p: jax.lax.conv_general_dilated(
      v, wt, (1, 1), [(p, p), (p, p)], dimension_numbers=dn, precision=hi)
  w1, w2, w3 = params["w_conv1"], params["w_conv2"], params["w_conv3"]
  y = jax.nn.relu(conv(x, w1, 1))
  res1 = conv(y, w1, 1) * 0.1 + x
  g = jnp.mean(res1, axis=(2, 3), keepdims=True)          # AdaptiveAvgPool2d(1)
  g = jax.nn.relu(conv(g, w2, 0))
  g = jax.nn.sigmoid(conv(g, w3, 0))
  return g * res1


if __name__ == "__main__":
  key = jax.random.PRNGKey(0)
  kx, k1, k2, k3 = jax.random.split(key, 4)
  # RB requires 64 input channels (conv1 is 64->64).
  x = jax.random.normal(kx, (2, 64, 16, 16), jnp.float32)          # NCHW
  params = {
      "w_conv1": 0.05 * jax.random.normal(k1, (64, 64, 3, 3), jnp.float32),
      "w_conv2": 0.05 * jax.random.normal(k2, (4, 64, 1, 1), jnp.float32),
      "w_conv3": 0.05 * jax.random.normal(k3, (64, 4, 1, 1), jnp.float32),
      # (all convs in RB have bias=False, so no bias terms anywhere)
  }

  prepped = prepare_rb_params(params)          # one-time weight re-layout
  fwd = jax.jit(functools.partial(rb_forward, prepped=prepped))
  out = jax.block_until_ready(fwd(x))
  assert out.shape == (2, 64, 16, 16), out.shape

  ref = jax.block_until_ready(rb_reference(x, params))
  rel_err = float(jnp.max(jnp.abs(out - ref)) / (jnp.max(jnp.abs(ref)) + 1e-8))
  assert rel_err < 2e-3, f"mismatch vs reference: rel_err={rel_err}"

  print("KERNEL_OK")
</pallas_src>

<mosaic_0001>
module attributes {stable_mosaic.version = 11 : i64} {
  func.func @_rb_kernel(%arg0: i32, %arg1: memref<1x16x16x64xf32, #tpu.memory_space<vmem>>, %arg2: memref<1x128x128xf32, #tpu.memory_space<vmem>>, %arg3: memref<576x64xf32, #tpu.memory_space<vmem>>, %arg4: memref<64x4xf32, #tpu.memory_space<vmem>>, %arg5: memref<4x128xf32, #tpu.memory_space<vmem>>, %arg6: memref<1x128x128xf32, #tpu.memory_space<vmem>>, %arg7: memref<18x18x64xf32, #tpu.memory_space<vmem>>, %arg8: memref<256x576xf32, #tpu.memory_space<vmem>>, %arg9: memref<128x128xf32, #tpu.memory_space<vmem>>) attributes {dimension_semantics = [#tpu.dimension_semantics<parallel>], iteration_bounds = array<i64: 2>, scalar_prefetch = 0 : i64, scratch_operands = 3 : i64, tpu.core_type = #tpu.core_type<tc>, window_params = [{transform_indices = @transform_0, window_bounds = array<i64: 1, 16, 16, 64>}, {transform_indices = @transform_1, window_bounds = array<i64: 1, 128, 128>}, {pipeline_mode = #tpu.pipeline_mode<synchronous>, transform_indices = @transform_2, window_bounds = array<i64: 576, 64>}, {pipeline_mode = #tpu.pipeline_mode<synchronous>, transform_indices = @transform_3, window_bounds = array<i64: 64, 4>}, {pipeline_mode = #tpu.pipeline_mode<synchronous>, transform_indices = @transform_4, window_bounds = array<i64: 4, 128>}, {transform_indices = @transform_5, window_bounds = array<i64: 1, 128, 128>}]} {
    %cst = arith.constant 0.000000e+00 : f32
    %0 = vector.broadcast %cst : f32 to vector<1x18x64xf32>
    %c0 = arith.constant 0 : index
    %c0_0 = arith.constant 0 : index
    %c0_1 = arith.constant 0 : index
    %1 = vector.load %arg7[%c0, %c0_0, %c0_1] : memref<18x18x64xf32, #tpu.memory_space<vmem>>, vector<1x18x64xf32>
    tpu.vector_store %arg7[%c0, %c0_0, %c0_1], %0 {strides = array<i32>} : memref<18x18x64xf32, #tpu.memory_space<vmem>>, vector<1x18x64xf32>,
    %c17 = arith.constant 17 : index
    %c0_2 = arith.constant 0 : index
    %c0_3 = arith.constant 0 : index
    %2 = vector.load %arg7[%c17, %c0_2, %c0_3] : memref<18x18x64xf32, #tpu.memory_space<vmem>>, vector<1x18x64xf32>
    tpu.vector_store %arg7[%c17, %c0_2, %c0_3], %0 {strides = array<i32>} : memref<18x18x64xf32, #tpu.memory_space<vmem>>, vector<1x18x64xf32>,
    %cst_4 = arith.constant 0.000000e+00 : f32
    %3 = vector.broadcast %cst_4 : f32 to vector<18x1x64xf32>
    %c0_5 = arith.constant 0 : index
    %c0_6 = arith.constant 0 : index
    %c0_7 = arith.constant 0 : index
    %4 = vector.load %arg7[%c0_5, %c0_6, %c0_7] : memref<18x18x64xf32, #tpu.memory_space<vmem>>, vector<18x1x64xf32>
    tpu.vector_store %arg7[%c0_5, %c0_6, %c0_7], %3 {strides = array<i32>} : memref<18x18x64xf32, #tpu.memory_space<vmem>>, vector<18x1x64xf32>,
    %c0_8 = arith.constant 0 : index
    %c17_9 = arith.constant 17 : index
    %c0_10 = arith.constant 0 : index
    %5 = vector.load %arg7[%c0_8, %c17_9, %c0_10] : memref<18x18x64xf32, #tpu.memory_space<vmem>>, vector<18x1x64xf32>
    tpu.vector_store %arg7[%c0_8, %c17_9, %c0_10], %3 {strides = array<i32>} : memref<18x18x64xf32, #tpu.memory_space<vmem>>, vector<18x1x64xf32>,
    %c0_11 = arith.constant 0 : index
    %c0_12 = arith.constant 0 : index
    %c0_13 = arith.constant 0 : index
    %c0_14 = arith.constant 0 : index
    %6 = vector.load %arg1[%c0_11, %c0_12, %c0_13, %c0_14] : memref<1x16x16x64xf32, #tpu.memory_space<vmem>>, vector<1x16x16x64xf32>
    %7 = vector.shape_cast %6 : vector<1x16x16x64xf32> to vector<16x16x64xf32>
    %c1 = arith.constant 1 : index
    %c1_15 = arith.constant 1 : index
    %c0_16 = arith.constant 0 : index
    %8 = vector.load %arg7[%c1, %c1_15, %c0_16] : memref<18x18x64xf32, #tpu.memory_space<vmem>>, vector<16x16x64xf32>
    tpu.vector_store %arg7[%c1, %c1_15, %c0_16], %7 {strides = array<i32>} : memref<18x18x64xf32, #tpu.memory_space<vmem>>, vector<16x16x64xf32>,
    %c0_17 = arith.constant 0 : index
    %c0_18 = arith.constant 0 : index
    %c0_19 = arith.constant 0 : index
    %9 = vector.load %arg7[%c0_17, %c0_18, %c0_19] : memref<18x18x64xf32, #tpu.memory_space<vmem>>, vector<16x16x64xf32>
    %10 = vector.shape_cast %9 : vector<16x16x64xf32> to vector<256x64xf32>
    %c0_20 = arith.constant 0 : index
    %c0_21 = arith.constant 0 : index
    %11 = vector.load %arg8[%c0_20, %c0_21] : memref<256x576xf32, #tpu.memory_space<vmem>>, vector<256x64xf32>
    tpu.vector_store %arg8[%c0_20, %c0_21], %10 {strides = array<i32>} : memref<256x576xf32, #tpu.memory_space<vmem>>, vector<256x64xf32>,
    %c0_22 = arith.constant 0 : index
    %c1_23 = arith.constant 1 : index
    %c0_24 = arith.constant 0 : index
    %12 = vector.load %arg7[%c0_22, %c1_23, %c0_24] : memref<18x18x64xf32, #tpu.memory_space<vmem>>, vector<16x16x64xf32>
    %13 = vector.shape_cast %12 : vector<16x16x64xf32> to vector<256x64xf32>
    %c0_25 = arith.constant 0 : index
    %c64 = arith.constant 64 : index
    %14 = vector.load %arg8[%c0_25, %c64] : memref<256x576xf32, #tpu.memory_space<vmem>>, vector<256x64xf32>
    tpu.vector_store %arg8[%c0_25, %c64], %13 {strides = array<i32>} : memref<256x576xf32, #tpu.memory_space<vmem>>, vector<256x64xf32>,
    %c0_26 = arith.constant 0 : index
    %c2 = arith.constant 2 : index
    %c0_27 = arith.constant 0 : index
    %15 = vector.load %arg7[%c0_26, %c2, %c0_27] : memref<18x18x64xf32, #tpu.memory_space<vmem>>, vector<16x16x64xf32>
    %16 = vector.shape_cast %15 : vector<16x16x64xf32> to vector<256x64xf32>
    %c0_28 = arith.constant 0 : index
    %c128 = arith.constant 128 : index
    %17 = vector.load %arg8[%c0_28, %c128] : memref<256x576xf32, #tpu.memory_space<vmem>>, vector<256x64xf32>
    tpu.vector_store %arg8[%c0_28, %c128], %16 {strides = array<i32>} : memref<256x576xf32, #tpu.memory_space<vmem>>, vector<256x64xf32>,
    %c1_29 = arith.constant 1 : index
    %c0_30 = arith.constant 0 : index
    %c0_31 = arith.constant 0 : index
    %18 = vector.load %arg7[%c1_29, %c0_30, %c0_31] : memref<18x18x64xf32, #tpu.memory_space<vmem>>, vector<16x16x64xf32>
    %19 = vector.shape_cast %18 : vector<16x16x64xf32> to vector<256x64xf32>
    %c0_32 = arith.constant 0 : index
    %c192 = arith.constant 192 : index
    %20 = vector.load %arg8[%c0_32, %c192] : memref<256x576xf32, #tpu.memory_space<vmem>>, vector<256x64xf32>
    tpu.vector_store %arg8[%c0_32, %c192], %19 {strides = array<i32>} : memref<256x576xf32, #tpu.memory_space<vmem>>, vector<256x64xf32>,
    %c1_33 = arith.constant 1 : index
    %c1_34 = arith.constant 1 : index
    %c0_35 = arith.constant 0 : index
    %21 = vector.load %arg7[%c1_33, %c1_34, %c0_35] : memref<18x18x64xf32, #tpu.memory_space<vmem>>, vector<16x16x64xf32>
    %22 = vector.shape_cast %21 : vector<16x16x64xf32> to vector<256x64xf32>
    %c0_36 = arith.constant 0 : index
    %c256 = arith.constant 256 : index
    %23 = vector.load %arg8[%c0_36, %c256] : memref<256x576xf32, #tpu.memory_space<vmem>>, vector<256x64xf32>
    tpu.vector_store %arg8[%c0_36, %c256], %22 {strides = array<i32>} : memref<256x576xf32, #tpu.memory_space<vmem>>, vector<256x64xf32>,
    %c1_37 = arith.constant 1 : index
    %c2_38 = arith.constant 2 : index
    %c0_39 = arith.constant 0 : index
    %24 = vector.load %arg7[%c1_37, %c2_38, %c0_39] : memref<18x18x64xf32, #tpu.memory_space<vmem>>, vector<16x16x64xf32>
    %25 = vector.shape_cast %24 : vector<16x16x64xf32> to vector<256x64xf32>
    %c0_40 = arith.constant 0 : index
    %c320 = arith.constant 320 : index
    %26 = vector.load %arg8[%c0_40, %c320] : memref<256x576xf32, #tpu.memory_space<vmem>>, vector<256x64xf32>
    tpu.vector_store %arg8[%c0_40, %c320], %25 {strides = array<i32>} : memref<256x576xf32, #tpu.memory_space<vmem>>, vector<256x64xf32>,
    %c2_41 = arith.constant 2 : index
    %c0_42 = arith.constant 0 : index
    %c0_43 = arith.constant 0 : index
    %27 = vector.load %arg7[%c2_41, %c0_42, %c0_43] : memref<18x18x64xf32, #tpu.memory_space<vmem>>, vector<16x16x64xf32>
    %28 = vector.shape_cast %27 : vector<16x16x64xf32> to vector<256x64xf32>
    %c0_44 = arith.constant 0 : index
    %c384 = arith.constant 384 : index
    %29 = vector.load %arg8[%c0_44, %c384] : memref<256x576xf32, #tpu.memory_space<vmem>>, vector<256x64xf32>
    tpu.vector_store %arg8[%c0_44, %c384], %28 {strides = array<i32>} : memref<256x576xf32, #tpu.memory_space<vmem>>, vector<256x64xf32>,
    %c2_45 = arith.constant 2 : index
    %c1_46 = arith.constant 1 : index
    %c0_47 = arith.constant 0 : index
    %30 = vector.load %arg7[%c2_45, %c1_46, %c0_47] : memref<18x18x64xf32, #tpu.memory_space<vmem>>, vector<16x16x64xf32>
    %31 = vector.shape_cast %30 : vector<16x16x64xf32> to vector<256x64xf32>
    %c0_48 = arith.constant 0 : index
    %c448 = arith.constant 448 : index
    %32 = vector.load %arg8[%c0_48, %c448] : memref<256x576xf32, #tpu.memory_space<vmem>>, vector<256x64xf32>
    tpu.vector_store %arg8[%c0_48, %c448], %31 {strides = array<i32>} : memref<256x576xf32, #tpu.memory_space<vmem>>, vector<256x64xf32>,
    %c2_49 = arith.constant 2 : index
    %c2_50 = arith.constant 2 : index
    %c0_51 = arith.constant 0 : index
    %33 = vector.load %arg7[%c2_49, %c2_50, %c0_51] : memref<18x18x64xf32, #tpu.memory_space<vmem>>, vector<16x16x64xf32>
    %34 = vector.shape_cast %33 : vector<16x16x64xf32> to vector<256x64xf32>
    %c0_52 = arith.constant 0 : index
    %c512 = arith.constant 512 : index
    %35 = vector.load %arg8[%c0_52, %c512] : memref<256x576xf32, #tpu.memory_space<vmem>>, vector<256x64xf32>
    tpu.vector_store %arg8[%c0_52, %c512], %34 {strides = array<i32>} : memref<256x576xf32, #tpu.memory_space<vmem>>, vector<256x64xf32>,
    %c0_53 = arith.constant 0 : index
    %c0_54 = arith.constant 0 : index
    %36 = vector.load %arg8[%c0_53, %c0_54] : memref<256x576xf32, #tpu.memory_space<vmem>>, vector<256x576xf32>
    %c0_55 = arith.constant 0 : index
    %c0_56 = arith.constant 0 : index
    %37 = vector.load %arg3[%c0_55, %c0_56] : memref<576x64xf32, #tpu.memory_space<vmem>>, vector<576x64xf32>
    %cst_57 = arith.constant dense<0.000000e+00> : vector<256x64xf32>
    %38 = tpu.matmul %36, %37, %cst_57 {dimension_numbers = #tpu.dot_dimension_numbers<[1], [0], [0], [1], [0, 0, 1, 1], [], []>} : vector<256x576xf32>, vector<576x64xf32>, vector<256x64xf32> -> vector<256x64xf32>
    %cst_58 = arith.constant 0.000000e+00 : f32
    %39 = vector.broadcast %cst_58 : f32 to vector<256x64xf32>
    %40 = arith.maximumf %38, %39 : vector<256x64xf32>
    %41 = vector.shape_cast %40 : vector<256x64xf32> to vector<16x16x64xf32>
    %c1_59 = arith.constant 1 : index
    %c1_60 = arith.constant 1 : index
    %c0_61 = arith.constant 0 : index
    %42 = vector.load %arg7[%c1_59, %c1_60, %c0_61] : memref<18x18x64xf32, #tpu.memory_space<vmem>>, vector<16x16x64xf32>
    tpu.vector_store %arg7[%c1_59, %c1_60, %c0_61], %41 {strides = array<i32>} : memref<18x18x64xf32, #tpu.memory_space<vmem>>, vector<16x16x64xf32>,
    %c0_62 = arith.constant 0 : index
    %c0_63 = arith.constant 0 : index
    %c0_64 = arith.constant 0 : index
    %43 = vector.load %arg7[%c0_62, %c0_63, %c0_64] : memref<18x18x64xf32, #tpu.memory_space<vmem>>, vector<16x16x64xf32>
    %44 = vector.shape_cast %43 : vector<16x16x64xf32> to vector<256x64xf32>
    %c0_65 = arith.constant 0 : index
    %c0_66 = arith.constant 0 : index
    %45 = vector.load %arg8[%c0_65, %c0_66] : memref<256x576xf32, #tpu.memory_space<vmem>>, vector<256x64xf32>
    tpu.vector_store %arg8[%c0_65, %c0_66], %44 {strides = array<i32>} : memref<256x576xf32, #tpu.memory_space<vmem>>, vector<256x64xf32>,
    %c0_67 = arith.constant 0 : index
    %c1_68 = arith.constant 1 : index
    %c0_69 = arith.constant 0 : index
    %46 = vector.load %arg7[%c0_67, %c1_68, %c0_69] : memref<18x18x64xf32, #tpu.memory_space<vmem>>, vector<16x16x64xf32>
    %47 = vector.shape_cast %46 : vector<16x16x64xf32> to vector<256x64xf32>
    %c0_70 = arith.constant 0 : index
    %c64_71 = arith.constant 64 : index
    %48 = vector.load %arg8[%c0_70, %c64_71] : memref<256x576xf32, #tpu.memory_space<vmem>>, vector<256x64xf32>
    tpu.vector_store %arg8[%c0_70, %c64_71], %47 {strides = array<i32>} : memref<256x576xf32, #tpu.memory_space<vmem>>, vector<256x64xf32>,
    %c0_72 = arith.constant 0 : index
    %c2_73 = arith.constant 2 : index
    %c0_74 = arith.constant 0 : index
    %49 = vector.load %arg7[%c0_72, %c2_73, %c0_74] : memref<18x18x64xf32, #tpu.memory_space<vmem>>, vector<16x16x64xf32>
    %50 = vector.shape_cast %49 : vector<16x16x64xf32> to vector<256x64xf32>
    %c0_75 = arith.constant 0 : index
    %c128_76 = arith.constant 128 : index
    %51 = vector.load %arg8[%c0_75, %c128_76] : memref<256x576xf32, #tpu.memory_space<vmem>>, vector<256x64xf32>
    tpu.vector_store %arg8[%c0_75, %c128_76], %50 {strides = array<i32>} : memref<256x576xf32, #tpu.memory_space<vmem>>, vector<256x64xf32>,
    %c1_77 = arith.constant 1 : index
    %c0_78 = arith.constant 0 : index
    %c0_79 = arith.constant 0 : index
    %52 = vector.load %arg7[%c1_77, %c0_78, %c0_79] : memref<18x18x64xf32, #tpu.memory_space<vmem>>, vector<16x16x64xf32>
    %53 = vector.shape_cast %52 : vector<16x16x64xf32> to vector<256x64xf32>
    %c0_80 = arith.constant 0 : index
    %c192_81 = arith.constant 192 : index
    %54 = vector.load %arg8[%c0_80, %c192_81] : memref<256x576xf32, #tpu.memory_space<vmem>>, vector<256x64xf32>
    tpu.vector_store %arg8[%c0_80, %c192_81], %53 {strides = array<i32>} : memref<256x576xf32, #tpu.memory_space<vmem>>, vector<256x64xf32>,
    %c1_82 = arith.constant 1 : index
    %c1_83 = arith.constant 1 : index
    %c0_84 = arith.constant 0 : index
    %55 = vector.load %arg7[%c1_82, %c1_83, %c0_84] : memref<18x18x64xf32, #tpu.memory_space<vmem>>, vector<16x16x64xf32>
    %56 = vector.shape_cast %55 : vector<16x16x64xf32> to vector<256x64xf32>
    %c0_85 = arith.constant 0 : index
    %c256_86 = arith.constant 256 : index
    %57 = vector.load %arg8[%c0_85, %c256_86] : memref<256x576xf32, #tpu.memory_space<vmem>>, vector<256x64xf32>
    tpu.vector_store %arg8[%c0_85, %c256_86], %56 {strides = array<i32>} : memref<256x576xf32, #tpu.memory_space<vmem>>, vector<256x64xf32>,
    %c1_87 = arith.constant 1 : index
    %c2_88 = arith.constant 2 : index
    %c0_89 = arith.constant 0 : index
    %58 = vector.load %arg7[%c1_87, %c2_88, %c0_89] : memref<18x18x64xf32, #tpu.memory_space<vmem>>, vector<16x16x64xf32>
    %59 = vector.shape_cast %58 : vector<16x16x64xf32> to vector<256x64xf32>
    %c0_90 = arith.constant 0 : index
    %c320_91 = arith.constant 320 : index
    %60 = vector.load %arg8[%c0_90, %c320_91] : memref<256x576xf32, #tpu.memory_space<vmem>>, vector<256x64xf32>
    tpu.vector_store %arg8[%c0_90, %c320_91], %59 {strides = array<i32>} : memref<256x576xf32, #tpu.memory_space<vmem>>, vector<256x64xf32>,
    %c2_92 = arith.constant 2 : index
    %c0_93 = arith.constant 0 : index
    %c0_94 = arith.constant 0 : index
    %61 = vector.load %arg7[%c2_92, %c0_93, %c0_94] : memref<18x18x64xf32, #tpu.memory_space<vmem>>, vector<16x16x64xf32>
    %62 = vector.shape_cast %61 : vector<16x16x64xf32> to vector<256x64xf32>
    %c0_95 = arith.constant 0 : index
    %c384_96 = arith.constant 384 : index
    %63 = vector.load %arg8[%c0_95, %c384_96] : memref<256x576xf32, #tpu.memory_space<vmem>>, vector<256x64xf32>
    tpu.vector_store %arg8[%c0_95, %c384_96], %62 {strides = array<i32>} : memref<256x576xf32, #tpu.memory_space<vmem>>, vector<256x64xf32>,
    %c2_97 = arith.constant 2 : index
    %c1_98 = arith.constant 1 : index
    %c0_99 = arith.constant 0 : index
    %64 = vector.load %arg7[%c2_97, %c1_98, %c0_99] : memref<18x18x64xf32, #tpu.memory_space<vmem>>, vector<16x16x64xf32>
    %65 = vector.shape_cast %64 : vector<16x16x64xf32> to vector<256x64xf32>
    %c0_100 = arith.constant 0 : index
    %c448_101 = arith.constant 448 : index
    %66 = vector.load %arg8[%c0_100, %c448_101] : memref<256x576xf32, #tpu.memory_space<vmem>>, vector<256x64xf32>
    tpu.vector_store %arg8[%c0_100, %c448_101], %65 {strides = array<i32>} : memref<256x576xf32, #tpu.memory_space<vmem>>, vector<256x64xf32>,
    %c2_102 = arith.constant 2 : index
    %c2_103 = arith.constant 2 : index
    %c0_104 = arith.constant 0 : index
    %67 = vector.load %arg7[%c2_102, %c2_103, %c0_104] : memref<18x18x64xf32, #tpu.memory_space<vmem>>, vector<16x16x64xf32>
    %68 = vector.shape_cast %67 : vector<16x16x64xf32> to vector<256x64xf32>
    %c0_105 = arith.constant 0 : index
    %c512_106 = arith.constant 512 : index
    %69 = vector.load %arg8[%c0_105, %c512_106] : memref<256x576xf32, #tpu.memory_space<vmem>>, vector<256x64xf32>
    tpu.vector_store %arg8[%c0_105, %c512_106], %68 {strides = array<i32>} : memref<256x576xf32, #tpu.memory_space<vmem>>, vector<256x64xf32>,
    %c0_107 = arith.constant 0 : index
    %c0_108 = arith.constant 0 : index
    %70 = vector.load %arg8[%c0_107, %c0_108] : memref<256x576xf32, #tpu.memory_space<vmem>>, vector<256x576xf32>
    %c0_109 = arith.constant 0 : index
    %c0_110 = arith.constant 0 : index
    %71 = vector.load %arg3[%c0_109, %c0_110] : memref<576x64xf32, #tpu.memory_space<vmem>>, vector<576x64xf32>
    %cst_111 = arith.constant dense<0.000000e+00> : vector<256x64xf32>
    %72 = tpu.matmul %70, %71, %cst_111 {dimension_numbers = #tpu.dot_dimension_numbers<[1], [0], [0], [1], [0, 0, 1, 1], [], []>} : vector<256x576xf32>, vector<576x64xf32>, vector<256x64xf32> -> vector<256x64xf32>
    %73 = vector.extract_strided_slice %72 {offsets = [0, 0], sizes = [128, 64], strides = [1, 1]} : vector<256x64xf32> to vector<128x64xf32>
    %c0_112 = arith.constant 0 : index
    %c0_113 = arith.constant 0 : index
    %74 = vector.load %arg9[%c0_112, %c0_113] : memref<128x128xf32, #tpu.memory_space<vmem>>, vector<128x64xf32>
    tpu.vector_store %arg9[%c0_112, %c0_113], %73 {strides = array<i32>} : memref<128x128xf32, #tpu.memory_space<vmem>>, vector<128x64xf32>,
    %75 = vector.extract_strided_slice %72 {offsets = [128, 0], sizes = [128, 64], strides = [1, 1]} : vector<256x64xf32> to vector<128x64xf32>
    %c0_114 = arith.constant 0 : index
    %c64_115 = arith.constant 64 : index
    %76 = vector.load %arg9[%c0_114, %c64_115] : memref<128x128xf32, #tpu.memory_space<vmem>>, vector<128x64xf32>
    tpu.vector_store %arg9[%c0_114, %c64_115], %75 {strides = array<i32>} : memref<128x128xf32, #tpu.memory_space<vmem>>, vector<128x64xf32>,
    %c0_116 = arith.constant 0 : index
    %c0_117 = arith.constant 0 : index
    %77 = vector.load %arg9[%c0_116, %c0_117] : memref<128x128xf32, #tpu.memory_space<vmem>>, vector<128x128xf32>
    %cst_118 = arith.constant 1.000000e-01 : f32
    %78 = vector.broadcast %cst_118 : f32 to vector<128x128xf32>
    %79 = arith.mulf %77, %78 : vector<128x128xf32>
    %c0_119 = arith.constant 0 : index
    %c0_120 = arith.constant 0 : index
    %c0_121 = arith.constant 0 : index
    %80 = vector.load %arg2[%c0_119, %c0_120, %c0_121] : memref<1x128x128xf32, #tpu.memory_space<vmem>>, vector<1x128x128xf32>
    %81 = vector.shape_cast %80 : vector<1x128x128xf32> to vector<128x128xf32>
    %82 = arith.addf %79, %81 : vector<128x128xf32>
    %cst_122 = arith.constant dense<0.000000e+00> : vector<128xf32>
    %83 = vector.multi_reduction <add>, %82, %cst_122 [0] : vector<128x128xf32> to vector<128xf32>
    %84 = vector.shape_cast %83 : vector<128xf32> to vector<1x128xf32>
    %85 = vector.extract_strided_slice %84 {offsets = [0, 0], sizes = [1, 64], strides = [1, 1]} : vector<1x128xf32> to vector<1x64xf32>
    %86 = vector.extract_strided_slice %84 {offsets = [0, 64], sizes = [1, 64], strides = [1, 1]} : vector<1x128xf32> to vector<1x64xf32>
    %87 = arith.addf %85, %86 : vector<1x64xf32>
    %cst_123 = arith.constant 3.906250e-03 : f32
    %88 = vector.broadcast %cst_123 : f32 to vector<1x64xf32>
    %89 = arith.mulf %87, %88 : vector<1x64xf32>
    %c0_124 = arith.constant 0 : index
    %c0_125 = arith.constant 0 : index
    %90 = vector.load %arg4[%c0_124, %c0_125] : memref<64x4xf32, #tpu.memory_space<vmem>>, vector<64x4xf32>
    %cst_126 = arith.constant dense<0.000000e+00> : vector<1x4xf32>
    %91 = tpu.matmul %89, %90, %cst_126 {dimension_numbers = #tpu.dot_dimension_numbers<[1], [0], [0], [1], [0, 0, 1, 1], [], []>} : vector<1x64xf32>, vector<64x4xf32>, vector<1x4xf32> -> vector<1x4xf32>
    %cst_127 = arith.constant 0.000000e+00 : f32
    %92 = vector.broadcast %cst_127 : f32 to vector<1x4xf32>
    %93 = arith.maximumf %91, %92 : vector<1x4xf32>
    %c0_128 = arith.constant 0 : index
    %c0_129 = arith.constant 0 : index
    %94 = vector.load %arg5[%c0_128, %c0_129] : memref<4x128xf32, #tpu.memory_space<vmem>>, vector<4x128xf32>
    %cst_130 = arith.constant dense<0.000000e+00> : vector<1x128xf32>
    %95 = tpu.matmul %93, %94, %cst_130 {dimension_numbers = #tpu.dot_dimension_numbers<[1], [0], [0], [1], [0, 0, 1, 1], [], []>} : vector<1x4xf32>, vector<4x128xf32>, vector<1x128xf32> -> vector<1x128xf32>
    %cst_131 = arith.constant 0.000000e+00 : f32
    %96 = vector.broadcast %cst_131 : f32 to vector<1x128xf32>
    %97 = arith.subf %96, %95 : vector<1x128xf32>
    %98 = math.exp %97 : vector<1x128xf32>
    %cst_132 = arith.constant 1.000000e+00 : f32
    %99 = vector.broadcast %cst_132 : f32 to vector<1x128xf32>
    %100 = arith.addf %99, %98 : vector<1x128xf32>
    %cst_133 = arith.constant 1.000000e+00 : f32
    %101 = vector.broadcast %cst_133 : f32 to vector<1x128xf32>
    %102 = arith.divf %101, %100 : vector<1x128xf32>
    %103 = vector.broadcast %102 : vector<1x128xf32> to vector<128x128xf32>
    %104 = arith.mulf %82, %103 : vector<128x128xf32>
    %105 = vector.shape_cast %104 : vector<128x128xf32> to vector<1x128x128xf32>
    %c0_134 = arith.constant 0 : index
    %c0_135 = arith.constant 0 : index
    %c0_136 = arith.constant 0 : index
    %106 = vector.load %arg6[%c0_134, %c0_135, %c0_136] : memref<1x128x128xf32, #tpu.memory_space<vmem>>, vector<1x128x128xf32>
    tpu.vector_store %arg6[%c0_134, %c0_135, %c0_136], %105 {strides = array<i32>} : memref<1x128x128xf32, #tpu.memory_space<vmem>>, vector<1x128x128xf32>,
    return
  }
  func.func @transform_0(%arg0: i32) -> (i32, i32, i32, i32) {
    %c0_i32 = arith.constant 0 : i32
    %c0_i32_0 = arith.constant 0 : i32
    %c0_i32_1 = arith.constant 0 : i32
    %c0_i32_2 = arith.constant 0 : i32
    return %arg0, %c0_i32, %c0_i32_0, %c0_i32_1 : i32, i32, i32, i32
  }
  func.func @transform_1(%arg0: i32) -> (i32, i32, i32) {
    %c0_i32 = arith.constant 0 : i32
    %c0_i32_0 = arith.constant 0 : i32
    %c0_i32_1 = arith.constant 0 : i32
    return %arg0, %c0_i32, %c0_i32_0 : i32, i32, i32
  }
  func.func @transform_2(%arg0: i32) -> (i32, i32) {
    %c0_i32 = arith.constant 0 : i32
    %c0_i32_0 = arith.constant 0 : i32
    %c0_i32_1 = arith.constant 0 : i32
    return %c0_i32, %c0_i32_0 : i32, i32
  }
  func.func @transform_3(%arg0: i32) -> (i32, i32) {
    %c0_i32 = arith.constant 0 : i32
    %c0_i32_0 = arith.constant 0 : i32
    %c0_i32_1 = arith.constant 0 : i32
    return %c0_i32, %c0_i32_0 : i32, i32
  }
  func.func @transform_4(%arg0: i32) -> (i32, i32) {
    %c0_i32 = arith.constant 0 : i32
    %c0_i32_0 = arith.constant 0 : i32
    %c0_i32_1 = arith.constant 0 : i32
    return %c0_i32, %c0_i32_0 : i32, i32
  }
  func.func @transform_5(%arg0: i32) -> (i32, i32, i32) {
    %c0_i32 = arith.constant 0 : i32
    %c0_i32_0 = arith.constant 0 : i32
    %c0_i32_1 = arith.constant 0 : i32
    return %arg0, %c0_i32, %c0_i32_0 : i32, i32, i32
  }
}

</mosaic_0001>

<llo_original>
// kernel: rb_forward.1
$region0: #{rb_forward.1}
  #allocation0 [shape = 'u32[]', space=smem, size = 0x4, offset = 0x4, fixed_abs, tag = 'smem constant byte address 0x4 - core index']
  #allocation1 [shape = 'u32[144,128]{1,0:T(1,128)}', space=vmem, size = 0x12000, scoped, tag = 'internal scratch']
  #allocation2 [shape = 'f32[18,18,64]{2,1,0:T(8,128)}', space=vmem, size = 0x36000, scoped, tag = 'scratch operand']
  #allocation3 [shape = 'f32[256,576]{1,0:T(8,128)}', space=vmem, size = 0xa0000, scoped, tag = 'scratch operand']
  #allocation4 [shape = 'f32[128,128]{1,0:T(8,128)}', space=vmem, size = 0x10000, scoped, tag = 'scratch operand']
  %s0 = inlined_call_operand.vmem [shape: f32[2,16,16,64], index: 0, kind: input, shape index: {}]
  %s1 = inlined_call_operand.vmem [shape: f32[2,128,128], index: 1, kind: input, shape index: {}]
  %s2 = inlined_call_operand.vmem [shape: f32[576,64], index: 2, kind: input, shape index: {}]
  %s3 = inlined_call_operand.vmem [shape: f32[64,4], index: 3, kind: input, shape index: {}]
  %s4 = inlined_call_operand.vmem [shape: f32[4,128], index: 4, kind: input, shape index: {}]
  %s5 = inlined_call_operand.vmem [shape: f32[2,128,128], index: 5, kind: output, shape index: {}]
  %s6 = sld [smem:[#allocation0]]
  $region53: #{rb_forward.1} parent=0
    _
  %s8 = ssub.s32 1, %s6
  %s9 = scalar_select 0, %s8, %s6
  loop: start=0, step=1, limit=4
  $region2: #{rb_forward.1} parent=0 // loop_pre_header
    _
  $region3: #{rb_forward.1} parent=0 // loop_header
    %s11 = sphi 0, %s15
    %p12 = scmp.ge.s32.totalorder %s11, 4
    %s21 = sphi 0, %s23
    %s24 = sphi 0, %s21
    %s25 = sphi 0, %s24
    %s41 = sphi 0, %s25
    %s47 = sphi 0, %s49
    %s50 = sphi 0, %s47
    %s51 = sphi 0, %s50
    %s67 = sphi 0, %s51
    %s71 = sphi 0, %s71
    %s73 = sphi 0, %s71
    %s74 = sphi 0, %s73
    %s88 = sphi 0, %s74
    %s92 = sphi 0, %s92
    %s94 = sphi 0, %s92
    %s95 = sphi 0, %s94
    %s109 = sphi 0, %s95
    %s113 = sphi 0, %s113
    %s115 = sphi 0, %s113
    %s116 = sphi 0, %s115
    %s130 = sphi 0, %s116
    %s136 = sphi 0, %s138
    %s139 = sphi 0, %s136
    %s140 = sphi 0, %s139
    %s156 = sphi 0, %s140
  $region4: #{rb_forward.1} parent=0 // loop_header_branch
    %14 = sbr.rel (%p12) target = $region8
  $region5: #{rb_forward.1} parent=0 // loop_body
    %s16 = ssub.s32 %s11, 1
    %s17 = ssub.s32 %s11, 2
    %s18 = sadd.s32 %s11, 1
    %s19 = ssub.s32 %s11, %s18
    %p20 = scmp.eq.s32.totalorder %s19, 0
    %s22 = sadd.s32 %s21, 1
    %s23 = scalar_select %p20, %s21, %s22
    %p26 = pneg %p20
    %p27 = scmp.eq.s32.totalorder %s11, 1
    %p28 = por %p26, %p27
    %p29 = scmp.ne.s32.totalorder %s21, %s24
    %p30 = scmp.eq.s32.totalorder %s11, 0
    %p31 = por %p29, %p30
    %p32 = scmp.ne.s32.totalorder %s21, %s24
    %p33 = scmp.eq.s32.totalorder %s16, 1
    %p34 = por %p32, %p33
    %p35 = scmp.ne.s32.totalorder %s24, %s25
    %p36 = scmp.eq.s32.totalorder %s16, 0
    %p37 = por %p35, %p36
    %p38 = scmp.ne.s32.totalorder %s24, %s25
    %p39 = scmp.eq.s32.totalorder %s17, 1
    %p40 = por %p38, %p39
    %p42 = scmp.ne.s32.totalorder %s25, %s41
    %p43 = scmp.eq.s32.totalorder %s17, 0
    %p44 = por %p42, %p43
    %s45 = ssub.s32 %s11, %s18
    %p46 = scmp.eq.s32.totalorder %s45, 0
    %s48 = sadd.s32 %s47, 1
    %s49 = scalar_select %p46, %s47, %s48
    %p52 = pneg %p46
    %p53 = scmp.eq.s32.totalorder %s11, 1
    %p54 = por %p52, %p53
    %p55 = scmp.ne.s32.totalorder %s47, %s50
    %p56 = scmp.eq.s32.totalorder %s11, 0
    %p57 = por %p55, %p56
    %p58 = scmp.ne.s32.totalorder %s47, %s50
    %p59 = scmp.eq.s32.totalorder %s16, 1
    %p60 = por %p58, %p59
    %p61 = scmp.ne.s32.totalorder %s50, %s51
    %p62 = scmp.eq.s32.totalorder %s16, 0
    %p63 = por %p61, %p62
    %p64 = scmp.ne.s32.totalorder %s50, %s51
    %p65 = scmp.eq.s32.totalorder %s17, 1
    %p66 = por %p64, %p65
    %p68 = scmp.ne.s32.totalorder %s51, %s67
    %p69 = scmp.eq.s32.totalorder %s17, 0
    %p70 = por %p68, %p69
    %s72 = sadd.s32 %s71, 1
    %p75 = scmp.eq.s32.totalorder %s11, 1
    %p76 = scmp.ne.s32.totalorder %s71, %s73
    %p77 = scmp.eq.s32.totalorder %s11, 0
    %p78 = por %p76, %p77
    %p79 = scmp.ne.s32.totalorder %s71, %s73
    %p80 = scmp.eq.s32.totalorder %s16, 1
    %p81 = por %p79, %p80
    %p82 = scmp.ne.s32.totalorder %s73, %s74
    %p83 = scmp.eq.s32.totalorder %s16, 0
    %p84 = por %p82, %p83
    %p85 = scmp.ne.s32.totalorder %s73, %s74
    %p86 = scmp.eq.s32.totalorder %s17, 1
    %p87 = por %p85, %p86
    %p89 = scmp.ne.s32.totalorder %s74, %s88
    %p90 = scmp.eq.s32.totalorder %s17, 0
    %p91 = por %p89, %p90
    %s93 = sadd.s32 %s92, 1
    %p96 = scmp.eq.s32.totalorder %s11, 1
    %p97 = scmp.ne.s32.totalorder %s92, %s94
    %p98 = scmp.eq.s32.totalorder %s11, 0
    %p99 = por %p97, %p98
    %p100 = scmp.ne.s32.totalorder %s92, %s94
    %p101 = scmp.eq.s32.totalorder %s16, 1
    %p102 = por %p100, %p101
    %p103 = scmp.ne.s32.totalorder %s94, %s95
    %p104 = scmp.eq.s32.totalorder %s16, 0
    %p105 = por %p103, %p104
    %p106 = scmp.ne.s32.totalorder %s94, %s95
    %p107 = scmp.eq.s32.totalorder %s17, 1
    %p108 = por %p106, %p107
    %p110 = scmp.ne.s32.totalorder %s95, %s109
    %p111 = scmp.eq.s32.totalorder %s17, 0
    %p112 = por %p110, %p111
    %s114 = sadd.s32 %s113, 1
    %p117 = scmp.eq.s32.totalorder %s11, 1
    %p118 = scmp.ne.s32.totalorder %s113, %s115
    %p119 = scmp.eq.s32.totalorder %s11, 0
    %p120 = por %p118, %p119
    %p121 = scmp.ne.s32.totalorder %s113, %s115
    %p122 = scmp.eq.s32.totalorder %s16, 1
    %p123 = por %p121, %p122
    %p124 = scmp.ne.s32.totalorder %s115, %s116
    %p125 = scmp.eq.s32.totalorder %s16, 0
    %p126 = por %p124, %p125
    %p127 = scmp.ne.s32.totalorder %s115, %s116
    %p128 = scmp.eq.s32.totalorder %s17, 1
    %p129 = por %p127, %p128
    %p131 = scmp.ne.s32.totalorder %s116, %s130
    %p132 = scmp.eq.s32.totalorder %s17, 0
    %p133 = por %p131, %p132
    %s134 = ssub.s32 %s11, %s18
    %p135 = scmp.eq.s32.totalorder %s134, 0
    %s137 = sadd.s32 %s136, 1
    %s138 = scalar_select %p135, %s136, %s137
    %p141 = pneg %p135
    %p142 = scmp.eq.s32.totalorder %s11, 1
    %p143 = por %p141, %p142
    %p144 = scmp.ne.s32.totalorder %s136, %s139
    %p145 = scmp.eq.s32.totalorder %s11, 0
    %p146 = por %p144, %p145
    %p147 = scmp.ne.s32.totalorder %s136, %s139
    %p148 = scmp.eq.s32.totalorder %s16, 1
    %p149 = por %p147, %p148
    %p150 = scmp.ne.s32.totalorder %s139, %s140
    %p151 = scmp.eq.s32.totalorder %s16, 0
    %p152 = por %p150, %p151
    %p153 = scmp.ne.s32.totalorder %s139, %s140
    %p154 = scmp.eq.s32.totalorder %s17, 1
    %p155 = por %p153, %p154
    %p157 = scmp.ne.s32.totalorder %s140, %s156
    %p158 = scmp.eq.s32.totalorder %s17, 0
    %p159 = por %p157, %p158
    %p160 = scmp.le.s32.totalorder 1, %s11
    %p161 = scmp.lt.s32.totalorder %s11, 3
    %p162 = pnand %p160, %p161
    %p163 = pneg %p162
    // Predicated region
    $region9: #{rb_forward.1} parent=5 // pred_check
      _
    $region10: #{rb_forward.1} parent=5 // pred_check_branch
      %165 = sbr.rel (%p162) target = $region12
    $region11: #{rb_forward.1} parent=5 // pred_region
      %s166 = ssub.s32 %s11, 1
      // Predicated region
      $region13: #{rb_forward.1} parent=11 // pred_check
        %p167 = pneg %p84
      $region14: #{rb_forward.1} parent=11 // pred_check_branch
        %169 = sbr.rel (%p167) target = $region16
      $region15: #{rb_forward.1} parent=11 // pred_region
        _
      $region16: #{rb_forward.1} parent=11 // pred_fallthru
        _
      // Predicated region
      $region17: #{rb_forward.1} parent=11 // pred_check
        %p170 = pneg %p105
      $region18: #{rb_forward.1} parent=11 // pred_check_branch
        %172 = sbr.rel (%p170) target = $region20
      $region19: #{rb_forward.1} parent=11 // pred_region
        _
      $region20: #{rb_forward.1} parent=11 // pred_fallthru
        _
      // Predicated region
      $region21: #{rb_forward.1} parent=11 // pred_check
        %p173 = pneg %p126
      $region22: #{rb_forward.1} parent=11 // pred_check_branch
        %175 = sbr.rel (%p173) target = $region24
      $region23: #{rb_forward.1} parent=11 // pred_region
        _
      $region24: #{rb_forward.1} parent=11 // pred_fallthru
        _
    $region12: #{rb_forward.1} parent=5 // pred_fallthru
      _
    %p176 = scmp.lt.s32.totalorder %s11, 2
    // Predicated region
    $region25: #{rb_forward.1} parent=5 // pred_check
      %p177 = pneg %p176
    $region26: #{rb_forward.1} parent=5 // pred_check_branch
      %179 = sbr.rel (%p177) target = $region28
    $region27: #{rb_forward.1} parent=5 // pred_region
      // Predicated region
      $region29: #{rb_forward.1} parent=27 // pred_check
        %p180 = pneg %p31
      $region30: #{rb_forward.1} parent=27 // pred_check_branch
        %182 = sbr.rel (%p180) target = $region32
      $region31: #{rb_forward.1} parent=27 // pred_region
        %p183 = scmp.lt.s32.totalorder %s11, 1
        %s184 = scalar_select %p183, %s11, 1
        %s185 = smul.addr %s184, 32
        %s186 = smul.addr %s185, 8
        %s187 = scalar_lea.vmem %s0, %s186
      $region32: #{rb_forward.1} parent=27 // pred_fallthru
        _
      // Predicated region
      $region33: #{rb_forward.1} parent=27 // pred_check
        %p188 = pneg %p57
      $region34: #{rb_forward.1} parent=27 // pred_check_branch
        %190 = sbr.rel (%p188) target = $region36
      $region35: #{rb_forward.1} parent=27 // pred_region
        %p191 = scmp.lt.s32.totalorder %s11, 1
        %s192 = scalar_select %p191, %s11, 1
        %s193 = smul.addr %s192, 16
        %s194 = smul.addr %s193, 8
        %s195 = scalar_lea.vmem %s1, %s194
      $region36: #{rb_forward.1} parent=27 // pred_fallthru
        _
    $region28: #{rb_forward.1} parent=5 // pred_fallthru
      _
    %p196 = scmp.le.s32.totalorder 1, %s11
    %p197 = scmp.lt.s32.totalorder %s11, 3
    %p198 = pnand %p196, %p197
    %p199 = pneg %p198
    // Predicated region
    $region37: #{rb_forward.1} parent=5 // pred_check
      _
    $region38: #{rb_forward.1} parent=5 // pred_check_branch
      %201 = sbr.rel (%p198) target = $region40
    $region39: #{rb_forward.1} parent=5 // pred_region
      %s202 = ssub.s32 %s11, 1
      %p203 = scmp.lt.s32.totalorder %s16, 1
      %s204 = scalar_select %p203, %s16, 1
      %s205 = smul.addr %s204, 32
      %s206 = smul.addr %s205, 8
      %s207 = scalar_lea.vmem %s0, %s206
      %p208 = pneg %p37
      %p209 = pneg %p34
      %p210 = scmp.lt.s32.totalorder %s16, 1
      %s211 = scalar_select %p210, %s16, 1
      %s212 = smul.addr %s211, 16
      %s213 = smul.addr %s212, 8
      %s214 = scalar_lea.vmem %s1, %s213
      %p215 = pneg %p63
      %p216 = pneg %p60
      %p217 = pneg %p84
      %p218 = pneg %p81
      %p219 = pneg %p105
      %p220 = pneg %p102
      %p221 = pneg %p126
      %p222 = pneg %p123
      %p223 = pneg %p152
      %p224 = pneg %p149
      %p225 = scmp.lt.s32.totalorder %s16, 1
      %s226 = scalar_select %p225, %s16, 1
      %s227 = smul.addr %s226, 16
      %s228 = smul.addr %s227, 8
      %s229 = scalar_lea.vmem %s5, %s228
      %p230 = scmp.lt.s32.totalorder %s16, 1
      %s231 = scalar_select %p230, %s16, 1
      %s232 = smul.addr %s231, 32
      %s233 = smul.addr %s232, 8
      %s234 = scalar_lea.vmem %s0, %s233
      %p235 = scmp.lt.s32.totalorder %s16, 1
      %s236 = scalar_select %p235, %s16, 1
      %s237 = smul.addr %s236, 16
      %s238 = smul.addr %s237, 8
      %s239 = scalar_lea.vmem %s1, %s238
      %p240 = scmp.lt.s32.totalorder %s16, 1
      %s241 = scalar_select %p240, %s16, 1
      %s242 = smul.addr %s241, 16
      %s243 = smul.addr %s242, 8
      %s244 = scalar_lea.vmem %s5, %s243
      %vm245 = vcmask 523264
      %246 = vst.msk [vmem:[#allocation2] sm:$0xff] %vm245, 0.0
      %247 = vst.msk [vmem:[#allocation2 + $0x8] sm:$0xff] %vm245, 0.0
      %vm248 = vcmask 517120
      %249 = vst.msk [vmem:[#allocation2 + $0x10] sm:$0x3] %vm248, 0.0
      %s250 = scalar_lea.vmem [#allocation2], 408
      %251 = vst.msk [vmem:[%s250] sm:$0xff] %vm245, 0.0
      %252 = vst.msk [vmem:[%s250 + $0x8] sm:$0xff] %vm245, 0.0
      %253 = vst.msk [vmem:[%s250 + $0x10] sm:$0x3] %vm248, 0.0
      %vm254 = vcmask 516096
      %255 = vst.msk [vmem:[#allocation2] sm:$0x1] %vm254, 0.0
      %256 = vst.msk [vmem:[#allocation2 + $0x18] sm:$0x1] %vm254, 0.0
      %257 = vst.msk [vmem:[#allocation2 + $0x30] sm:$0x1] %vm254, 0.0
      %258 = vst.msk [vmem:[#allocation2 + $0x48] sm:$0x1] %vm254, 0.0
      %259 = vst.msk [vmem:[#allocation2 + $0x60] sm:$0x1] %vm254, 0.0
      %260 = vst.msk [vmem:[#allocation2 + $0x78] sm:$0x1] %vm254, 0.0
      %261 = vst.msk [vmem:[#allocation2 + $0x90] sm:$0x1] %vm254, 0.0
      %262 = vst.msk [vmem:[#allocation2 + $0xa8] sm:$0x1] %vm254, 0.0
      %263 = vst.msk [vmem:[#allocation2 + $0xc0] sm:$0x1] %vm254, 0.0
      %264 = vst.msk [vmem:[#allocation2 + $0xd8] sm:$0x1] %vm254, 0.0
      %265 = vst.msk [vmem:[#allocation2 + $0xf0] sm:$0x1] %vm254, 0.0
      %266 = vst.msk [vmem:[#allocation2 + $0x108] sm:$0x1] %vm254, 0.0
      %267 = vst.msk [vmem:[#allocation2 + $0x120] sm:$0x1] %vm254, 0.0
      %268 = vst.msk [vmem:[#allocation2 + $0x138] sm:$0x1] %vm254, 0.0
      %269 = vst.msk [vmem:[#allocation2 + $0x150] sm:$0x1] %vm254, 0.0
      %270 = vst.msk [vmem:[#allocation2 + $0x168] sm:$0x1] %vm254, 0.0
      %271 = vst.msk [vmem:[#allocation2 + $0x180] sm:$0x1] %vm254, 0.0
      %272 = vst.msk [vmem:[#allocation2 + $0x198] sm:$0x1] %vm254, 0.0
      %273 = vst.msk [vmem:[#allocation2 + $0x11] sm:$0x1] %vm254, 0.0
      %274 = vst.msk [vmem:[#allocation2 + $0x29] sm:$0x1] %vm254, 0.0
      %275 = vst.msk [vmem:[#allocation2 + $0x41] sm:$0x1] %vm254, 0.0
      %276 = vst.msk [vmem:[#allocation2 + $0x59] sm:$0x1] %vm254, 0.0
      %277 = vst.msk [vmem:[#allocation2 + $0x71] sm:$0x1] %vm254, 0.0
      %278 = vst.msk [vmem:[#allocation2 + $0x89] sm:$0x1] %vm254, 0.0
      %279 = vst.msk [vmem:[#allocation2 + $0xa1] sm:$0x1] %vm254, 0.0
      %280 = vst.msk [vmem:[#allocation2 + $0xb9] sm:$0x1] %vm254, 0.0
      %281 = vst.msk [vmem:[#allocation2 + $0xd1] sm:$0x1] %vm254, 0.0
      %282 = vst.msk [vmem:[#allocation2 + $0xe9] sm:$0x1] %vm254, 0.0
      %283 = vst.msk [vmem:[#allocation2 + $0x101] sm:$0x1] %vm254, 0.0
      %284 = vst.msk [vmem:[#allocation2 + $0x119] sm:$0x1] %vm254, 0.0
      %285 = vst.msk [vmem:[#allocation2 + $0x131] sm:$0x1] %vm254, 0.0
      %286 = vst.msk [vmem:[#allocation2 + $0x149] sm:$0x1] %vm254, 0.0
      %287 = vst.msk [vmem:[#allocation2 + $0x161] sm:$0x1] %vm254, 0.0
      %288 = vst.msk [vmem:[#allocation2 + $0x179] sm:$0x1] %vm254, 0.0
      %289 = vst.msk [vmem:[#allocation2 + $0x191] sm:$0x1] %vm254, 0.0
      %290 = vst.msk [vmem:[#allocation2 + $0x1a9] sm:$0x1] %vm254, 0.0
      %v291 = vld [vmem:[%s234] sm:$0xff]
      %v292 = vld [vmem:[%s234 + $0x8] sm:$0xff]
      %v293 = vld [vmem:[%s234 + $0x10] sm:$0xff]
      %v294 = vld [vmem:[%s234 + $0x18] sm:$0xff]
      %v295 = vld [vmem:[%s234 + $0x20] sm:$0xff]
      %v296 = vld [vmem:[%s234 + $0x28] sm:$0xff]
      %v297 = vld [vmem:[%s234 + $0x30] sm:$0xff]
      %v298 = vld [vmem:[%s234 + $0x38] sm:$0xff]
      %v299 = vld [vmem:[%s234 + $0x40] sm:$0xff]
      %v300 = vld [vmem:[%s234 + $0x48] sm:$0xff]
      %v301 = vld [vmem:[%s234 + $0x50] sm:$0xff]
      %v302 = vld [vmem:[%s234 + $0x58] sm:$0xff]
      %v303 = vld [vmem:[%s234 + $0x60] sm:$0xff]
      %v304 = vld [vmem:[%s234 + $0x68] sm:$0xff]
      %v305 = vld [vmem:[%s234 + $0x70] sm:$0xff]
      %v306 = vld [vmem:[%s234 + $0x78] sm:$0xff]
      %v307 = vld [vmem:[%s234 + $0x80] sm:$0xff]
      %v308 = vld [vmem:[%s234 + $0x88] sm:$0xff]
      %v309 = vld [vmem:[%s234 + $0x90] sm:$0xff]
      %v310 = vld [vmem:[%s234 + $0x98] sm:$0xff]
      %v311 = vld [vmem:[%s234 + $0xa0] sm:$0xff]
      %v312 = vld [vmem:[%s234 + $0xa8] sm:$0xff]
      %v313 = vld [vmem:[%s234 + $0xb0] sm:$0xff]
      %v314 = vld [vmem:[%s234 + $0xb8] sm:$0xff]
      %v315 = vld [vmem:[%s234 + $0xc0] sm:$0xff]
      %v316 = vld [vmem:[%s234 + $0xc8] sm:$0xff]
      %v317 = vld [vmem:[%s234 + $0xd0] sm:$0xff]
      %v318 = vld [vmem:[%s234 + $0xd8] sm:$0xff]
      %v319 = vld [vmem:[%s234 + $0xe0] sm:$0xff]
      %v320 = vld [vmem:[%s234 + $0xe8] sm:$0xff]
      %v321 = vld [vmem:[%s234 + $0xf0] sm:$0xff]
      %v322 = vld [vmem:[%s234 + $0xf8] sm:$0xff]
      %s323 = scalar_lea.vmem [#allocation2], 24
      %324 = vst.msk [vmem:[%s323 + $0x1] sm:$0xff] %vm245, %v291
      %325 = vst.msk [vmem:[%s323 + $0x9] sm:$0xff] %vm245, %v292
      %326 = vst.msk [vmem:[%s323 + $0x19] sm:$0xff] %vm245, %v293
      %327 = vst.msk [vmem:[%s323 + $0x21] sm:$0xff] %vm245, %v294
      %328 = vst.msk [vmem:[%s323 + $0x31] sm:$0xff] %vm245, %v295
      %329 = vst.msk [vmem:[%s323 + $0x39] sm:$0xff] %vm245, %v296
      %330 = vst.msk [vmem:[%s323 + $0x49] sm:$0xff] %vm245, %v297
      %331 = vst.msk [vmem:[%s323 + $0x51] sm:$0xff] %vm245, %v298
      %332 = vst.msk [vmem:[%s323 + $0x61] sm:$0xff] %vm245, %v299
      %333 = vst.msk [vmem:[%s323 + $0x69] sm:$0xff] %vm245, %v300
      %334 = vst.msk [vmem:[%s323 + $0x79] sm:$0xff] %vm245, %v301
      %335 = vst.msk [vmem:[%s323 + $0x81] sm:$0xff] %vm245, %v302
      %336 = vst.msk [vmem:[%s323 + $0x91] sm:$0xff] %vm245, %v303
      %337 = vst.msk [vmem:[%s323 + $0x99] sm:$0xff] %vm245, %v304
      %338 = vst.msk [vmem:[%s323 + $0xa9] sm:$0xff] %vm245, %v305
      %339 = vst.msk [vmem:[%s323 + $0xb1] sm:$0xff] %vm245, %v306
      %340 = vst.msk [vmem:[%s323 + $0xc1] sm:$0xff] %vm245, %v307
      %341 = vst.msk [vmem:[%s323 + $0xc9] sm:$0xff] %vm245, %v308
      %342 = vst.msk [vmem:[%s323 + $0xd9] sm:$0xff] %vm245, %v309
      %343 = vst.msk [vmem:[%s323 + $0xe1] sm:$0xff] %vm245, %v310
      %344 = vst.msk [vmem:[%s323 + $0xf1] sm:$0xff] %vm245, %v311
      %345 = vst.msk [vmem:[%s323 + $0xf9] sm:$0xff] %vm245, %v312
      %346 = vst.msk [vmem:[%s323 + $0x109] sm:$0xff] %vm245, %v313
      %347 = vst.msk [vmem:[%s323 + $0x111] sm:$0xff] %vm245, %v314
      %348 = vst.msk [vmem:[%s323 + $0x121] sm:$0xff] %vm245, %v315
      %349 = vst.msk [vmem:[%s323 + $0x129] sm:$0xff] %vm245, %v316
      %350 = vst.msk [vmem:[%s323 + $0x139] sm:$0xff] %vm245, %v317
      %351 = vst.msk [vmem:[%s323 + $0x141] sm:$0xff] %vm245, %v318
      %352 = vst.msk [vmem:[%s323 + $0x151] sm:$0xff] %vm245, %v319
      %353 = vst.msk [vmem:[%s323 + $0x159] sm:$0xff] %vm245, %v320
      %354 = vst.msk [vmem:[%s323 + $0x169] sm:$0xff] %vm245, %v321
      %355 = vst.msk [vmem:[%s323 + $0x171] sm:$0xff] %vm245, %v322
      %v356 = vld [vmem:[#allocation2] sm:$0xff]
      %v357 = vld [vmem:[#allocation2 + $0x8] sm:$0xff]
      %v358 = vld [vmem:[#allocation2 + $0x18] sm:$0xff]
      %v359 = vld [vmem:[#allocation2 + $0x20] sm:$0xff]
      %v360 = vld [vmem:[#allocation2 + $0x30] sm:$0xff]
      %v361 = vld [vmem:[#allocation2 + $0x38] sm:$0xff]
      %v362 = vld [vmem:[#allocation2 + $0x48] sm:$0xff]
      %v363 = vld [vmem:[#allocation2 + $0x50] sm:$0xff]
      %v364 = vld [vmem:[#allocation2 + $0x60] sm:$0xff]
      %v365 = vld [vmem:[#allocation2 + $0x68] sm:$0xff]
      %v366 = vld [vmem:[#allocation2 + $0x78] sm:$0xff]
      %v367 = vld [vmem:[#allocation2 + $0x80] sm:$0xff]
      %v368 = vld [vmem:[#allocation2 + $0x90] sm:$0xff]
      %v369 = vld [vmem:[#allocation2 + $0x98] sm:$0xff]
      %v370 = vld [vmem:[#allocation2 + $0xa8] sm:$0xff]
      %v371 = vld [vmem:[#allocation2 + $0xb0] sm:$0xff]
      %v372 = vld [vmem:[#allocation2 + $0xc0] sm:$0xff]
      %v373 = vld [vmem:[#allocation2 + $0xc8] sm:$0xff]
      %v374 = vld [vmem:[#allocation2 + $0xd8] sm:$0xff]
      %v375 = vld [vmem:[#allocation2 + $0xe0] sm:$0xff]
      %v376 = vld [vmem:[#allocation2 + $0xf0] sm:$0xff]
      %v377 = vld [vmem:[#allocation2 + $0xf8] sm:$0xff]
      %v378 = vld [vmem:[#allocation2 + $0x108] sm:$0xff]
      %v379 = vld [vmem:[#allocation2 + $0x110] sm:$0xff]
      %v380 = vld [vmem:[#allocation2 + $0x120] sm:$0xff]
      %v381 = vld [vmem:[#allocation2 + $0x128] sm:$0xff]
      %v382 = vld [vmem:[#allocation2 + $0x138] sm:$0xff]
      %v383 = vld [vmem:[#allocation2 + $0x140] sm:$0xff]
      %v384 = vld [vmem:[#allocation2 + $0x150] sm:$0xff]
      %v385 = vld [vmem:[#allocation2 + $0x158] sm:$0xff]
      %v386 = vld [vmem:[#allocation2 + $0x168] sm:$0xff]
      %v387 = vld [vmem:[#allocation2 + $0x170] sm:$0xff]
      %388 = vst.msk [vmem:[#allocation3] sm:$0xff] %vm245, %v356
      %389 = vst.msk [vmem:[#allocation3 + $0x28] sm:$0xff] %vm245, %v357
      %390 = vst.msk [vmem:[#allocation3 + $0x50] sm:$0xff] %vm245, %v358
      %391 = vst.msk [vmem:[#allocation3 + $0x78] sm:$0xff] %vm245, %v359
      %392 = vst.msk [vmem:[#allocation3 + $0xa0] sm:$0xff] %vm245, %v360
      %393 = vst.msk [vmem:[#allocation3 + $0xc8] sm:$0xff] %vm245, %v361
      %394 = vst.msk [vmem:[#allocation3 + $0xf0] sm:$0xff] %vm245, %v362
      %395 = vst.msk [vmem:[#allocation3 + $0x118] sm:$0xff] %vm245, %v363
      %396 = vst.msk [vmem:[#allocation3 + $0x140] sm:$0xff] %vm245, %v364
      %397 = vst.msk [vmem:[#allocation3 + $0x168] sm:$0xff] %vm245, %v365
      %398 = vst.msk [vmem:[#allocation3 + $0x190] sm:$0xff] %vm245, %v366
      %399 = vst.msk [vmem:[#allocation3 + $0x1b8] sm:$0xff] %vm245, %v367
      %400 = vst.msk [vmem:[#allocation3 + $0x1e0] sm:$0xff] %vm245, %v368
      %401 = vst.msk [vmem:[#allocation3 + $0x208] sm:$0xff] %vm245, %v369
      %402 = vst.msk [vmem:[#allocation3 + $0x230] sm:$0xff] %vm245, %v370
      %403 = vst.msk [vmem:[#allocation3 + $0x258] sm:$0xff] %vm245, %v371
      %404 = vst.msk [vmem:[#allocation3 + $0x280] sm:$0xff] %vm245, %v372
      %405 = vst.msk [vmem:[#allocation3 + $0x2a8] sm:$0xff] %vm245, %v373
      %406 = vst.msk [vmem:[#allocation3 + $0x2d0] sm:$0xff] %vm245, %v374
      %407 = vst.msk [vmem:[#allocation3 + $0x2f8] sm:$0xff] %vm245, %v375
      %408 = vst.msk [vmem:[#allocation3 + $0x320] sm:$0xff] %vm245, %v376
      %409 = vst.msk [vmem:[#allocation3 + $0x348] sm:$0xff] %vm245, %v377
      %410 = vst.msk [vmem:[#allocation3 + $0x370] sm:$0xff] %vm245, %v378
      %411 = vst.msk [vmem:[#allocation3 + $0x398] sm:$0xff] %vm245, %v379
      %412 = vst.msk [vmem:[#allocation3 + $0x3c0] sm:$0xff] %vm245, %v380
      %413 = vst.msk [vmem:[#allocation3 + $0x3e8] sm:$0xff] %vm245, %v381
      %414 = vst.msk [vmem:[#allocation3 + $0x410] sm:$0xff] %vm245, %v382
      %415 = vst.msk [vmem:[#allocation3 + $0x438] sm:$0xff] %vm245, %v383
      %416 = vst.msk [vmem:[#allocation3 + $0x460] sm:$0xff] %vm245, %v384
      %417 = vst.msk [vmem:[#allocation3 + $0x488] sm:$0xff] %vm245, %v385
      %418 = vst.msk [vmem:[#allocation3 + $0x4b0] sm:$0xff] %vm245, %v386
      %419 = vst.msk [vmem:[#allocation3 + $0x4d8] sm:$0xff] %vm245, %v387
      %v420 = vld [vmem:[#allocation2 + $0x1] sm:$0xff]
      %v421 = vld [vmem:[#allocation2 + $0x9] sm:$0xff]
      %v422 = vld [vmem:[#allocation2 + $0x19] sm:$0xff]
      %v423 = vld [vmem:[#allocation2 + $0x21] sm:$0xff]
      %v424 = vld [vmem:[#allocation2 + $0x31] sm:$0xff]
      %v425 = vld [vmem:[#allocation2 + $0x39] sm:$0xff]
      %v426 = vld [vmem:[#allocation2 + $0x49] sm:$0xff]
      %v427 = vld [vmem:[#allocation2 + $0x51] sm:$0xff]
      %v428 = vld [vmem:[#allocation2 + $0x61] sm:$0xff]
      %v429 = vld [vmem:[#allocation2 + $0x69] sm:$0xff]
      %v430 = vld [vmem:[#allocation2 + $0x79] sm:$0xff]
      %v431 = vld [vmem:[#allocation2 + $0x81] sm:$0xff]
      %v432 = vld [vmem:[#allocation2 + $0x91] sm:$0xff]
      %v433 = vld [vmem:[#allocation2 + $0x99] sm:$0xff]
      %v434 = vld [vmem:[#allocation2 + $0xa9] sm:$0xff]
      %v435 = vld [vmem:[#allocation2 + $0xb1] sm:$0xff]
      %v436 = vld [vmem:[#allocation2 + $0xc1] sm:$0xff]
      %v437 = vld [vmem:[#allocation2 + $0xc9] sm:$0xff]
      %v438 = vld [vmem:[#allocation2 + $0xd9] sm:$0xff]
      %v439 = vld [vmem:[#allocation2 + $0xe1] sm:$0xff]
      %v440 = vld [vmem:[#allocation2 + $0xf1] sm:$0xff]
      %v441 = vld [vmem:[#allocation2 + $0xf9] sm:$0xff]
      %v442 = vld [vmem:[#allocation2 + $0x109] sm:$0xff]
      %v443 = vld [vmem:[#allocation2 + $0x111] sm:$0xff]
      %v444 = vld [vmem:[#allocation2 + $0x121] sm:$0xff]
      %v445 = vld [vmem:[#allocation2 + $0x129] sm:$0xff]
      %v446 = vld [vmem:[#allocation2 + $0x139] sm:$0xff]
      %v447 = vld [vmem:[#allocation2 + $0x141] sm:$0xff]
      %v448 = vld [vmem:[#allocation2 + $0x151] sm:$0xff]
      %v449 = vld [vmem:[#allocation2 + $0x159] sm:$0xff]
      %v450 = vld [vmem:[#allocation2 + $0x169] sm:$0xff]
      %v451 = vld [vmem:[#allocation2 + $0x171] sm:$0xff]
      %484 = vrot.lane.b32.xlu0 %v420, 64
      %v485 = vpop.permute.xlu0 %484
      %486 = vrot.lane.b32.xlu0 %v421, 64
      %v487 = vpop.permute.xlu0 %486
      %488 = vrot.lane.b32.xlu0 %v422, 64
      %v489 = vpop.permute.xlu0 %488
      %490 = vrot.lane.b32.xlu0 %v423, 64
      %v491 = vpop.permute.xlu0 %490
      %492 = vrot.lane.b32.xlu0 %v424, 64
      %v493 = vpop.permute.xlu0 %492
      %494 = vrot.lane.b32.xlu0 %v425, 64
      %v495 = vpop.permute.xlu0 %494
      %496 = vrot.lane.b32.xlu0 %v426, 64
      %v497 = vpop.permute.xlu0 %496
      %498 = vrot.lane.b32.xlu0 %v427, 64
      %v499 = vpop.permute.xlu0 %498
      %500 = vrot.lane.b32.xlu0 %v428, 64
      %v501 = vpop.permute.xlu0 %500
      %502 = vrot.lane.b32.xlu0 %v429, 64
      %v503 = vpop.permute.xlu0 %502
      %504 = vrot.lane.b32.xlu0 %v430, 64
      %v505 = vpop.permute.xlu0 %504
      %506 = vrot.lane.b32.xlu0 %v431, 64
      %v507 = vpop.permute.xlu0 %506
      %508 = vrot.lane.b32.xlu0 %v432, 64
      %v509 = vpop.permute.xlu0 %508
      %510 = vrot.lane.b32.xlu0 %v433, 64
      %v511 = vpop.permute.xlu0 %510
      %512 = vrot.lane.b32.xlu0 %v434, 64
      %v513 = vpop.permute.xlu0 %512
      %514 = vrot.lane.b32.xlu0 %v435, 64
      %v515 = vpop.permute.xlu0 %514
      %516 = vrot.lane.b32.xlu0 %v436, 64
      %v517 = vpop.permute.xlu0 %516
      %518 = vrot.lane.b32.xlu0 %v437, 64
      %v519 = vpop.permute.xlu0 %518
      %520 = vrot.lane.b32.xlu0 %v438, 64
      %v521 = vpop.permute.xlu0 %520
      %522 = vrot.lane.b32.xlu0 %v439, 64
      %v523 = vpop.permute.xlu0 %522
      %524 = vrot.lane.b32.xlu0 %v440, 64
      %v525 = vpop.permute.xlu0 %524
      %526 = vrot.lane.b32.xlu0 %v441, 64
      %v527 = vpop.permute.xlu0 %526
      %528 = vrot.lane.b32.xlu0 %v442, 64
      %v529 = vpop.permute.xlu0 %528
      %530 = vrot.lane.b32.xlu0 %v443, 64
      %v531 = vpop.permute.xlu0 %530
      %532 = vrot.lane.b32.xlu0 %v444, 64
      %v533 = vpop.permute.xlu0 %532
      %534 = vrot.lane.b32.xlu0 %v445, 64
      %v535 = vpop.permute.xlu0 %534
      %536 = vrot.lane.b32.xlu0 %v446, 64
      %v537 = vpop.permute.xlu0 %536
      %538 = vrot.lane.b32.xlu0 %v447, 64
      %v539 = vpop.permute.xlu0 %538
      %540 = vrot.lane.b32.xlu0 %v448, 64
      %v541 = vpop.permute.xlu0 %540
      %542 = vrot.lane.b32.xlu0 %v449, 64
      %v543 = vpop.permute.xlu0 %542
      %544 = vrot.lane.b32.xlu0 %v450, 64
      %v545 = vpop.permute.xlu0 %544
      %546 = vrot.lane.b32.xlu0 %v451, 64
      %v547 = vpop.permute.xlu0 %546
      %vm580 = vcmask 1048064
      %581 = vst.msk [vmem:[#allocation3] sm:$0xff] %vm580, %v485
      %582 = vst.msk [vmem:[#allocation3 + $0x28] sm:$0xff] %vm580, %v487
      %583 = vst.msk [vmem:[#allocation3 + $0x50] sm:$0xff] %vm580, %v489
      %584 = vst.msk [vmem:[#allocation3 + $0x78] sm:$0xff] %vm580, %v491
      %585 = vst.msk [vmem:[#allocation3 + $0xa0] sm:$0xff] %vm580, %v493
      %586 = vst.msk [vmem:[#allocation3 + $0xc8] sm:$0xff] %vm580, %v495
      %587 = vst.msk [vmem:[#allocation3 + $0xf0] sm:$0xff] %vm580, %v497
      %588 = vst.msk [vmem:[#allocation3 + $0x118] sm:$0xff] %vm580, %v499
      %589 = vst.msk [vmem:[#allocation3 + $0x140] sm:$0xff] %vm580, %v501
      %590 = vst.msk [vmem:[#allocation3 + $0x168] sm:$0xff] %vm580, %v503
      %591 = vst.msk [vmem:[#allocation3 + $0x190] sm:$0xff] %vm580, %v505
      %592 = vst.msk [vmem:[#allocation3 + $0x1b8] sm:$0xff] %vm580, %v507
      %593 = vst.msk [vmem:[#allocation3 + $0x1e0] sm:$0xff] %vm580, %v509
      %594 = vst.msk [vmem:[#allocation3 + $0x208] sm:$0xff] %vm580, %v511
      %595 = vst.msk [vmem:[#allocation3 + $0x230] sm:$0xff] %vm580, %v513
      %596 = vst.msk [vmem:[#allocation3 + $0x258] sm:$0xff] %vm580, %v515
      %597 = vst.msk [vmem:[#allocation3 + $0x280] sm:$0xff] %vm580, %v517
      %598 = vst.msk [vmem:[#allocation3 + $0x2a8] sm:$0xff] %vm580, %v519
      %599 = vst.msk [vmem:[#allocation3 + $0x2d0] sm:$0xff] %vm580, %v521
      %600 = vst.msk [vmem:[#allocation3 + $0x2f8] sm:$0xff] %vm580, %v523
      %601 = vst.msk [vmem:[#allocation3 + $0x320] sm:$0xff] %vm580, %v525
      %602 = vst.msk [vmem:[#allocation3 + $0x348] sm:$0xff] %vm580, %v527
      %603 = vst.msk [vmem:[#allocation3 + $0x370] sm:$0xff] %vm580, %v529
      %604 = vst.msk [vmem:[#allocation3 + $0x398] sm:$0xff] %vm580, %v531
      %605 = vst.msk [vmem:[#allocation3 + $0x3c0] sm:$0xff] %vm580, %v533
      %606 = vst.msk [vmem:[#allocation3 + $0x3e8] sm:$0xff] %vm580, %v535
      %607 = vst.msk [vmem:[#allocation3 + $0x410] sm:$0xff] %vm580, %v537
      %608 = vst.msk [vmem:[#allocation3 + $0x438] sm:$0xff] %vm580, %v539
      %609 = vst.msk [vmem:[#allocation3 + $0x460] sm:$0xff] %vm580, %v541
      %610 = vst.msk [vmem:[#allocation3 + $0x488] sm:$0xff] %vm580, %v543
      %611 = vst.msk [vmem:[#allocation3 + $0x4b0] sm:$0xff] %vm580, %v545
      %612 = vst.msk [vmem:[#allocation3 + $0x4d8] sm:$0xff] %vm580, %v547
      %v613 = vld [vmem:[#allocation2 + $0x2] sm:$0xff]
      %v614 = vld [vmem:[#allocation2 + $0xa] sm:$0xff]
      %v615 = vld [vmem:[#allocation2 + $0x1a] sm:$0xff]
      %v616 = vld [vmem:[#allocation2 + $0x22] sm:$0xff]
      %v617 = vld [vmem:[#allocation2 + $0x32] sm:$0xff]
      %v618 = vld [vmem:[#allocation2 + $0x3a] sm:$0xff]
      %v619 = vld [vmem:[#allocation2 + $0x4a] sm:$0xff]
      %v620 = vld [vmem:[#allocation2 + $0x52] sm:$0xff]
      %v621 = vld [vmem:[#allocation2 + $0x62] sm:$0xff]
      %v622 = vld [vmem:[#allocation2 + $0x6a] sm:$0xff]
      %v623 = vld [vmem:[#allocation2 + $0x7a] sm:$0xff]
      %v624 = vld [vmem:[#allocation2 + $0x82] sm:$0xff]
      %v625 = vld [vmem:[#allocation2 + $0x92] sm:$0xff]
      %v626 = vld [vmem:[#allocation2 + $0x9a] sm:$0xff]
      %v627 = vld [vmem:[#allocation2 + $0xaa] sm:$0xff]
      %v628 = vld [vmem:[#allocation2 + $0xb2] sm:$0xff]
      %v629 = vld [vmem:[#allocation2 + $0xc2] sm:$0xff]
      %v630 = vld [vmem:[#allocation2 + $0xca] sm:$0xff]
      %v631 = vld [vmem:[#allocation2 + $0xda] sm:$0xff]
      %v632 = vld [vmem:[#allocation2 + $0xe2] sm:$0xff]
      %v633 = vld [vmem:[#allocation2 + $0xf2] sm:$0xff]
      %v634 = vld [vmem:[#allocation2 + $0xfa] sm:$0xff]
      %v635 = vld [vmem:[#allocation2 + $0x10a] sm:$0xff]
      %v636 = vld [vmem:[#allocation2 + $0x112] sm:$0xff]
      %v637 = vld [vmem:[#allocation2 + $0x122] sm:$0xff]
      %v638 = vld [vmem:[#allocation2 + $0x12a] sm:$0xff]
      %v639 = vld [vmem:[#allocation2 + $0x13a] sm:$0xff]
      %v640 = vld [vmem:[#allocation2 + $0x142] sm:$0xff]
      %v641 = vld [vmem:[#allocation2 + $0x152] sm:$0xff]
      %v642 = vld [vmem:[#allocation2 + $0x15a] sm:$0xff]
      %v643 = vld [vmem:[#allocation2 + $0x16a] sm:$0xff]
      %v644 = vld [vmem:[#allocation2 + $0x172] sm:$0xff]
      %645 = vst.msk [vmem:[#allocation3 + $0x8] sm:$0xff] %vm245, %v613
      %646 = vst.msk [vmem:[#allocation3 + $0x30] sm:$0xff] %vm245, %v614
      %647 = vst.msk [vmem:[#allocation3 + $0x58] sm:$0xff] %vm245, %v615
      %648 = vst.msk [vmem:[#allocation3 + $0x80] sm:$0xff] %vm245, %v616
      %649 = vst.msk [vmem:[#allocation3 + $0xa8] sm:$0xff] %vm245, %v617
      %650 = vst.msk [vmem:[#allocation3 + $0xd0] sm:$0xff] %vm245, %v618
      %651 = vst.msk [vmem:[#allocation3 + $0xf8] sm:$0xff] %vm245, %v619
      %652 = vst.msk [vmem:[#allocation3 + $0x120] sm:$0xff] %vm245, %v620
      %653 = vst.msk [vmem:[#allocation3 + $0x148] sm:$0xff] %vm245, %v621
      %654 = vst.msk [vmem:[#allocation3 + $0x170] sm:$0xff] %vm245, %v622
      %655 = vst.msk [vmem:[#allocation3 + $0x198] sm:$0xff] %vm245, %v623
      %656 = vst.msk [vmem:[#allocation3 + $0x1c0] sm:$0xff] %vm245, %v624
      %657 = vst.msk [vmem:[#allocation3 + $0x1e8] sm:$0xff] %vm245, %v625
      %658 = vst.msk [vmem:[#allocation3 + $0x210] sm:$0xff] %vm245, %v626
      %659 = vst.msk [vmem:[#allocation3 + $0x238] sm:$0xff] %vm245, %v627
      %660 = vst.msk [vmem:[#allocation3 + $0x260] sm:$0xff] %vm245, %v628
      %661 = vst.msk [vmem:[#allocation3 + $0x288] sm:$0xff] %vm245, %v629
      %662 = vst.msk [vmem:[#allocation3 + $0x2b0] sm:$0xff] %vm245, %v630
      %663 = vst.msk [vmem:[#allocation3 + $0x2d8] sm:$0xff] %vm245, %v631
      %664 = vst.msk [vmem:[#allocation3 + $0x300] sm:$0xff] %vm245, %v632
      %665 = vst.msk [vmem:[#allocation3 + $0x328] sm:$0xff] %vm245, %v633
      %666 = vst.msk [vmem:[#allocation3 + $0x350] sm:$0xff] %vm245, %v634
      %667 = vst.msk [vmem:[#allocation3 + $0x378] sm:$0xff] %vm245, %v635
      %668 = vst.msk [vmem:[#allocation3 + $0x3a0] sm:$0xff] %vm245, %v636
      %669 = vst.msk [vmem:[#allocation3 + $0x3c8] sm:$0xff] %vm245, %v637
      %670 = vst.msk [vmem:[#allocation3 + $0x3f0] sm:$0xff] %vm245, %v638
      %671 = vst.msk [vmem:[#allocation3 + $0x418] sm:$0xff] %vm245, %v639
      %672 = vst.msk [vmem:[#allocation3 + $0x440] sm:$0xff] %vm245, %v640
      %673 = vst.msk [vmem:[#allocation3 + $0x468] sm:$0xff] %vm245, %v641
      %674 = vst.msk [vmem:[#allocation3 + $0x490] sm:$0xff] %vm245, %v642
      %675 = vst.msk [vmem:[#allocation3 + $0x4b8] sm:$0xff] %vm245, %v643
      %676 = vst.msk [vmem:[#allocation3 + $0x4e0] sm:$0xff] %vm245, %v644
      %v677 = vld [vmem:[%s323] sm:$0xff]
      %v678 = vld [vmem:[%s323 + $0x8] sm:$0xff]
      %v679 = vld [vmem:[%s323 + $0x18] sm:$0xff]
      %v680 = vld [vmem:[%s323 + $0x20] sm:$0xff]
      %v681 = vld [vmem:[%s323 + $0x30] sm:$0xff]
      %v682 = vld [vmem:[%s323 + $0x38] sm:$0xff]
      %v683 = vld [vmem:[%s323 + $0x48] sm:$0xff]
      %v684 = vld [vmem:[%s323 + $0x50] sm:$0xff]
      %v685 = vld [vmem:[%s323 + $0x60] sm:$0xff]
      %v686 = vld [vmem:[%s323 + $0x68] sm:$0xff]
      %v687 = vld [vmem:[%s323 + $0x78] sm:$0xff]
      %v688 = vld [vmem:[%s323 + $0x80] sm:$0xff]
      %v689 = vld [vmem:[%s323 + $0x90] sm:$0xff]
      %v690 = vld [vmem:[%s323 + $0x98] sm:$0xff]
      %v691 = vld [vmem:[%s323 + $0xa8] sm:$0xff]
      %v692 = vld [vmem:[%s323 + $0xb0] sm:$0xff]
      %v693 = vld [vmem:[%s323 + $0xc0] sm:$0xff]
      %v694 = vld [vmem:[%s323 + $0xc8] sm:$0xff]
      %v695 = vld [vmem:[%s323 + $0xd8] sm:$0xff]
      %v696 = vld [vmem:[%s323 + $0xe0] sm:$0xff]
      %v697 = vld [vmem:[%s323 + $0xf0] sm:$0xff]
      %v698 = vld [vmem:[%s323 + $0xf8] sm:$0xff]
      %v699 = vld [vmem:[%s323 + $0x108] sm:$0xff]
      %v700 = vld [vmem:[%s323 + $0x110] sm:$0xff]
      %v701 = vld [vmem:[%s323 + $0x120] sm:$0xff]
      %v702 = vld [vmem:[%s323 + $0x128] sm:$0xff]
      %v703 = vld [vmem:[%s323 + $0x138] sm:$0xff]
      %v704 = vld [vmem:[%s323 + $0x140] sm:$0xff]
      %v705 = vld [vmem:[%s323 + $0x150] sm:$0xff]
      %v706 = vld [vmem:[%s323 + $0x158] sm:$0xff]
      %v707 = vld [vmem:[%s323 + $0x168] sm:$0xff]
      %v708 = vld [vmem:[%s323 + $0x170] sm:$0xff]
      %741 = vrot.lane.b32.xlu0 %v677, 64
      %v742 = vpop.permute.xlu0 %741
      %743 = vrot.lane.b32.xlu0 %v678, 64
      %v744 = vpop.permute.xlu0 %743
      %745 = vrot.lane.b32.xlu0 %v679, 64
      %v746 = vpop.permute.xlu0 %745
      %747 = vrot.lane.b32.xlu0 %v680, 64
      %v748 = vpop.permute.xlu0 %747
      %749 = vrot.lane.b32.xlu0 %v681, 64
      %v750 = vpop.permute.xlu0 %749
      %751 = vrot.lane.b32.xlu0 %v682, 64
      %v752 = vpop.permute.xlu0 %751
      %753 = vrot.lane.b32.xlu0 %v683, 64
      %v754 = vpop.permute.xlu0 %753
      %755 = vrot.lane.b32.xlu0 %v684, 64
      %v756 = vpop.permute.xlu0 %755
      %757 = vrot.lane.b32.xlu0 %v685, 64
      %v758 = vpop.permute.xlu0 %757
      %759 = vrot.lane.b32.xlu0 %v686, 64
      %v760 = vpop.permute.xlu0 %759
      %761 = vrot.lane.b32.xlu0 %v687, 64
      %v762 = vpop.permute.xlu0 %761
      %763 = vrot.lane.b32.xlu0 %v688, 64
      %v764 = vpop.permute.xlu0 %763
      %765 = vrot.lane.b32.xlu0 %v689, 64
      %v766 = vpop.permute.xlu0 %765
      %767 = vrot.lane.b32.xlu0 %v690, 64
      %v768 = vpop.permute.xlu0 %767
      %769 = vrot.lane.b32.xlu0 %v691, 64
      %v770 = vpop.permute.xlu0 %769
      %771 = vrot.lane.b32.xlu0 %v692, 64
      %v772 = vpop.permute.xlu0 %771
      %773 = vrot.lane.b32.xlu0 %v693, 64
      %v774 = vpop.permute.xlu0 %773
      %775 = vrot.lane.b32.xlu0 %v694, 64
      %v776 = vpop.permute.xlu0 %775
      %777 = vrot.lane.b32.xlu0 %v695, 64
      %v778 = vpop.permute.xlu0 %777
      %779 = vrot.lane.b32.xlu0 %v696, 64
      %v780 = vpop.permute.xlu0 %779
      %781 = vrot.lane.b32.xlu0 %v697, 64
      %v782 = vpop.permute.xlu0 %781
      %783 = vrot.lane.b32.xlu0 %v698, 64
      %v784 = vpop.permute.xlu0 %783
      %785 = vrot.lane.b32.xlu0 %v699, 64
      %v786 = vpop.permute.xlu0 %785
      %787 = vrot.lane.b32.xlu0 %v700, 64
      %v788 = vpop.permute.xlu0 %787
      %789 = vrot.lane.b32.xlu0 %v701, 64
      %v790 = vpop.permute.xlu0 %789
      %791 = vrot.lane.b32.xlu0 %v702, 64
      %v792 = vpop.permute.xlu0 %791
      %793 = vrot.lane.b32.xlu0 %v703, 64
      %v794 = vpop.permute.xlu0 %793
      %795 = vrot.lane.b32.xlu0 %v704, 64
      %v796 = vpop.permute.xlu0 %795
      %797 = vrot.lane.b32.xlu0 %v705, 64
      %v798 = vpop.permute.xlu0 %797
      %799 = vrot.lane.b32.xlu0 %v706, 64
      %v800 = vpop.permute.xlu0 %799
      %801 = vrot.lane.b32.xlu0 %v707, 64
      %v802 = vpop.permute.xlu0 %801
      %803 = vrot.lane.b32.xlu0 %v708, 64
      %v804 = vpop.permute.xlu0 %803
      %837 = vst.msk [vmem:[#allocation3 + $0x8] sm:$0xff] %vm580, %v742
      %838 = vst.msk [vmem:[#allocation3 + $0x30] sm:$0xff] %vm580, %v744
      %839 = vst.msk [vmem:[#allocation3 + $0x58] sm:$0xff] %vm580, %v746
      %840 = vst.msk [vmem:[#allocation3 + $0x80] sm:$0xff] %vm580, %v748
      %841 = vst.msk [vmem:[#allocation3 + $0xa8] sm:$0xff] %vm580, %v750
      %842 = vst.msk [vmem:[#allocation3 + $0xd0] sm:$0xff] %vm580, %v752
      %843 = vst.msk [vmem:[#allocation3 + $0xf8] sm:$0xff] %vm580, %v754
      %844 = vst.msk [vmem:[#allocation3 + $0x120] sm:$0xff] %vm580, %v756
      %845 = vst.msk [vmem:[#allocation3 + $0x148] sm:$0xff] %vm580, %v758
      %846 = vst.msk [vmem:[#allocation3 + $0x170] sm:$0xff] %vm580, %v760
      %847 = vst.msk [vmem:[#allocation3 + $0x198] sm:$0xff] %vm580, %v762
      %848 = vst.msk [vmem:[#allocation3 + $0x1c0] sm:$0xff] %vm580, %v764
      %849 = vst.msk [vmem:[#allocation3 + $0x1e8] sm:$0xff] %vm580, %v766
      %850 = vst.msk [vmem:[#allocation3 + $0x210] sm:$0xff] %vm580, %v768
      %851 = vst.msk [vmem:[#allocation3 + $0x238] sm:$0xff] %vm580, %v770
      %852 = vst.msk [vmem:[#allocation3 + $0x260] sm:$0xff] %vm580, %v772
      %853 = vst.msk [vmem:[#allocation3 + $0x288] sm:$0xff] %vm580, %v774
      %854 = vst.msk [vmem:[#allocation3 + $0x2b0] sm:$0xff] %vm580, %v776
      %855 = vst.msk [vmem:[#allocation3 + $0x2d8] sm:$0xff] %vm580, %v778
      %856 = vst.msk [vmem:[#allocation3 + $0x300] sm:$0xff] %vm580, %v780
      %857 = vst.msk [vmem:[#allocation3 + $0x328] sm:$0xff] %vm580, %v782
      %858 = vst.msk [vmem:[#allocation3 + $0x350] sm:$0xff] %vm580, %v784
      %859 = vst.msk [vmem:[#allocation3 + $0x378] sm:$0xff] %vm580, %v786
      %860 = vst.msk [vmem:[#allocation3 + $0x3a0] sm:$0xff] %vm580, %v788
      %861 = vst.msk [vmem:[#allocation3 + $0x3c8] sm:$0xff] %vm580, %v790
      %862 = vst.msk [vmem:[#allocation3 + $0x3f0] sm:$0xff] %vm580, %v792
      %863 = vst.msk [vmem:[#allocation3 + $0x418] sm:$0xff] %vm580, %v794
      %864 = vst.msk [vmem:[#allocation3 + $0x440] sm:$0xff] %vm580, %v796
      %865 = vst.msk [vmem:[#allocation3 + $0x468] sm:$0xff] %vm580, %v798
      %866 = vst.msk [vmem:[#allocation3 + $0x490] sm:$0xff] %vm580, %v800
      %867 = vst.msk [vmem:[#allocation3 + $0x4b8] sm:$0xff] %vm580, %v802
      %868 = vst.msk [vmem:[#allocation3 + $0x4e0] sm:$0xff] %vm580, %v804
      %v869 = vld [vmem:[%s323 + $0x1] sm:$0xff]
      %v870 = vld [vmem:[%s323 + $0x9] sm:$0xff]
      %v871 = vld [vmem:[%s323 + $0x19] sm:$0xff]
      %v872 = vld [vmem:[%s323 + $0x21] sm:$0xff]
      %v873 = vld [vmem:[%s323 + $0x31] sm:$0xff]
      %v874 = vld [vmem:[%s323 + $0x39] sm:$0xff]
      %v875 = vld [vmem:[%s323 + $0x49] sm:$0xff]
      %v876 = vld [vmem:[%s323 + $0x51] sm:$0xff]
      %v877 = vld [vmem:[%s323 + $0x61] sm:$0xff]
      %v878 = vld [vmem:[%s323 + $0x69] sm:$0xff]
      %v879 = vld [vmem:[%s323 + $0x79] sm:$0xff]
      %v880 = vld [vmem:[%s323 + $0x81] sm:$0xff]
      %v881 = vld [vmem:[%s323 + $0x91] sm:$0xff]
      %v882 = vld [vmem:[%s323 + $0x99] sm:$0xff]
      %v883 = vld [vmem:[%s323 + $0xa9] sm:$0xff]
      %v884 = vld [vmem:[%s323 + $0xb1] sm:$0xff]
      %v885 = vld [vmem:[%s323 + $0xc1] sm:$0xff]
      %v886 = vld [vmem:[%s323 + $0xc9] sm:$0xff]
      %v887 = vld [vmem:[%s323 + $0xd9] sm:$0xff]
      %v888 = vld [vmem:[%s323 + $0xe1] sm:$0xff]
      %v889 = vld [vmem:[%s323 + $0xf1] sm:$0xff]
      %v890 = vld [vmem:[%s323 + $0xf9] sm:$0xff]
      %v891 = vld [vmem:[%s323 + $0x109] sm:$0xff]
      %v892 = vld [vmem:[%s323 + $0x111] sm:$0xff]
      %v893 = vld [vmem:[%s323 + $0x121] sm:$0xff]
      %v894 = vld [vmem:[%s323 + $0x129] sm:$0xff]
      %v895 = vld [vmem:[%s323 + $0x139] sm:$0xff]
      %v896 = vld [vmem:[%s323 + $0x141] sm:$0xff]
      %v897 = vld [vmem:[%s323 + $0x151] sm:$0xff]
      %v898 = vld [vmem:[%s323 + $0x159] sm:$0xff]
      %v899 = vld [vmem:[%s323 + $0x169] sm:$0xff]
      %v900 = vld [vmem:[%s323 + $0x171] sm:$0xff]
      %901 = vst.msk [vmem:[#allocation3 + $0x10] sm:$0xff] %vm245, %v869
      %902 = vst.msk [vmem:[#allocation3 + $0x38] sm:$0xff] %vm245, %v870
      %903 = vst.msk [vmem:[#allocation3 + $0x60] sm:$0xff] %vm245, %v871
      %904 = vst.msk [vmem:[#allocation3 + $0x88] sm:$0xff] %vm245, %v872
      %905 = vst.msk [vmem:[#allocation3 + $0xb0] sm:$0xff] %vm245, %v873
      %906 = vst.msk [vmem:[#allocation3 + $0xd8] sm:$0xff] %vm245, %v874
      %907 = vst.msk [vmem:[#allocation3 + $0x100] sm:$0xff] %vm245, %v875
      %908 = vst.msk [vmem:[#allocation3 + $0x128] sm:$0xff] %vm245, %v876
      %909 = vst.msk [vmem:[#allocation3 + $0x150] sm:$0xff] %vm245, %v877
      %910 = vst.msk [vmem:[#allocation3 + $0x178] sm:$0xff] %vm245, %v878
      %911 = vst.msk [vmem:[#allocation3 + $0x1a0] sm:$0xff] %vm245, %v879
      %912 = vst.msk [vmem:[#allocation3 + $0x1c8] sm:$0xff] %vm245, %v880
      %913 = vst.msk [vmem:[#allocation3 + $0x1f0] sm:$0xff] %vm245, %v881
      %914 = vst.msk [vmem:[#allocation3 + $0x218] sm:$0xff] %vm245, %v882
      %915 = vst.msk [vmem:[#allocation3 + $0x240] sm:$0xff] %vm245, %v883
      %916 = vst.msk [vmem:[#allocation3 + $0x268] sm:$0xff] %vm245, %v884
      %917 = vst.msk [vmem:[#allocation3 + $0x290] sm:$0xff] %vm245, %v885
      %918 = vst.msk [vmem:[#allocation3 + $0x2b8] sm:$0xff] %vm245, %v886
      %919 = vst.msk [vmem:[#allocation3 + $0x2e0] sm:$0xff] %vm245, %v887
      %920 = vst.msk [vmem:[#allocation3 + $0x308] sm:$0xff] %vm245, %v888
      %921 = vst.msk [vmem:[#allocation3 + $0x330] sm:$0xff] %vm245, %v889
      %922 = vst.msk [vmem:[#allocation3 + $0x358] sm:$0xff] %vm245, %v890
      %923 = vst.msk [vmem:[#allocation3 + $0x380] sm:$0xff] %vm245, %v891
      %924 = vst.msk [vmem:[#allocation3 + $0x3a8] sm:$0xff] %vm245, %v892
      %925 = vst.msk [vmem:[#allocation3 + $0x3d0] sm:$0xff] %vm245, %v893
      %926 = vst.msk [vmem:[#allocation3 + $0x3f8] sm:$0xff] %vm245, %v894
      %927 = vst.msk [vmem:[#allocation3 + $0x420] sm:$0xff] %vm245, %v895
      %928 = vst.msk [vmem:[#allocation3 + $0x448] sm:$0xff] %vm245, %v896
      %929 = vst.msk [vmem:[#allocation3 + $0x470] sm:$0xff] %vm245, %v897
      %930 = vst.msk [vmem:[#allocation3 + $0x498] sm:$0xff] %vm245, %v898
      %931 = vst.msk [vmem:[#allocation3 + $0x4c0] sm:$0xff] %vm245, %v899
      %932 = vst.msk [vmem:[#allocation3 + $0x4e8] sm:$0xff] %vm245, %v900
      %v933 = vld [vmem:[%s323 + $0x2] sm:$0xff]
      %v934 = vld [vmem:[%s323 + $0xa] sm:$0xff]
      %v935 = vld [vmem:[%s323 + $0x1a] sm:$0xff]
      %v936 = vld [vmem:[%s323 + $0x22] sm:$0xff]
      %v937 = vld [vmem:[%s323 + $0x32] sm:$0xff]
      %v938 = vld [vmem:[%s323 + $0x3a] sm:$0xff]
      %v939 = vld [vmem:[%s323 + $0x4a] sm:$0xff]
      %v940 = vld [vmem:[%s323 + $0x52] sm:$0xff]
      %v941 = vld [vmem:[%s323 + $0x62] sm:$0xff]
      %v942 = vld [vmem:[%s323 + $0x6a] sm:$0xff]
      %v943 = vld [vmem:[%s323 + $0x7a] sm:$0xff]
      %v944 = vld [vmem:[%s323 + $0x82] sm:$0xff]
      %v945 = vld [vmem:[%s323 + $0x92] sm:$0xff]
      %v946 = vld [vmem:[%s323 + $0x9a] sm:$0xff]
      %v947 = vld [vmem:[%s323 + $0xaa] sm:$0xff]
      %v948 = vld [vmem:[%s323 + $0xb2] sm:$0xff]
      %v949 = vld [vmem:[%s323 + $0xc2] sm:$0xff]
      %v950 = vld [vmem:[%s323 + $0xca] sm:$0xff]
      %v951 = vld [vmem:[%s323 + $0xda] sm:$0xff]
      %v952 = vld [vmem:[%s323 + $0xe2] sm:$0xff]
      %v953 = vld [vmem:[%s323 + $0xf2] sm:$0xff]
      %v954 = vld [vmem:[%s323 + $0xfa] sm:$0xff]
      %v955 = vld [vmem:[%s323 + $0x10a] sm:$0xff]
      %v956 = vld [vmem:[%s323 + $0x112] sm:$0xff]
      %v957 = vld [vmem:[%s323 + $0x122] sm:$0xff]
      %v958 = vld [vmem:[%s323 + $0x12a] sm:$0xff]
      %v959 = vld [vmem:[%s323 + $0x13a] sm:$0xff]
      %v960 = vld [vmem:[%s323 + $0x142] sm:$0xff]
      %v961 = vld [vmem:[%s323 + $0x152] sm:$0xff]
      %v962 = vld [vmem:[%s323 + $0x15a] sm:$0xff]
      %v963 = vld [vmem:[%s323 + $0x16a] sm:$0xff]
      %v964 = vld [vmem:[%s323 + $0x172] sm:$0xff]
      %997 = vrot.lane.b32.xlu0 %v933, 64
      %v998 = vpop.permute.xlu0 %997
      %999 = vrot.lane.b32.xlu0 %v934, 64
      %v1000 = vpop.permute.xlu0 %999
      %1001 = vrot.lane.b32.xlu0 %v935, 64
      %v1002 = vpop.permute.xlu0 %1001
      %1003 = vrot.lane.b32.xlu0 %v936, 64
      %v1004 = vpop.permute.xlu0 %1003
      %1005 = vrot.lane.b32.xlu0 %v937, 64
      %v1006 = vpop.permute.xlu0 %1005
      %1007 = vrot.lane.b32.xlu0 %v938, 64
      %v1008 = vpop.permute.xlu0 %1007
      %1009 = vrot.lane.b32.xlu0 %v939, 64
      %v1010 = vpop.permute.xlu0 %1009
      %1011 = vrot.lane.b32.xlu0 %v940, 64
      %v1012 = vpop.permute.xlu0 %1011
      %1013 = vrot.lane.b32.xlu0 %v941, 64
      %v1014 = vpop.permute.xlu0 %1013
      %1015 = vrot.lane.b32.xlu0 %v942, 64
      %v1016 = vpop.permute.xlu0 %1015
      %1017 = vrot.lane.b32.xlu0 %v943, 64
      %v1018 = vpop.permute.xlu0 %1017
      %1019 = vrot.lane.b32.xlu0 %v944, 64
      %v1020 = vpop.permute.xlu0 %1019
      %1021 = vrot.lane.b32.xlu0 %v945, 64
      %v1022 = vpop.permute.xlu0 %1021
      %1023 = vrot.lane.b32.xlu0 %v946, 64
      %v1024 = vpop.permute.xlu0 %1023
      %1025 = vrot.lane.b32.xlu0 %v947, 64
      %v1026 = vpop.permute.xlu0 %1025
      %1027 = vrot.lane.b32.xlu0 %v948, 64
      %v1028 = vpop.permute.xlu0 %1027
      %1029 = vrot.lane.b32.xlu0 %v949, 64
      %v1030 = vpop.permute.xlu0 %1029
      %1031 = vrot.lane.b32.xlu0 %v950, 64
      %v1032 = vpop.permute.xlu0 %1031
      %1033 = vrot.lane.b32.xlu0 %v951, 64
      %v1034 = vpop.permute.xlu0 %1033
      %1035 = vrot.lane.b32.xlu0 %v952, 64
      %v1036 = vpop.permute.xlu0 %1035
      %1037 = vrot.lane.b32.xlu0 %v953, 64
      %v1038 = vpop.permute.xlu0 %1037
      %1039 = vrot.lane.b32.xlu0 %v954, 64
      %v1040 = vpop.permute.xlu0 %1039
      %1041 = vrot.lane.b32.xlu0 %v955, 64
      %v1042 = vpop.permute.xlu0 %1041
      %1043 = vrot.lane.b32.xlu0 %v956, 64
      %v1044 = vpop.permute.xlu0 %1043
      %1045 = vrot.lane.b32.xlu0 %v957, 64
      %v1046 = vpop.permute.xlu0 %1045
      %1047 = vrot.lane.b32.xlu0 %v958, 64
      %v1048 = vpop.permute.xlu0 %1047
      %1049 = vrot.lane.b32.xlu0 %v959, 64
      %v1050 = vpop.permute.xlu0 %1049
      %1051 = vrot.lane.b32.xlu0 %v960, 64
      %v1052 = vpop.permute.xlu0 %1051
      %1053 = vrot.lane.b32.xlu0 %v961, 64
      %v1054 = vpop.permute.xlu0 %1053
      %1055 = vrot.lane.b32.xlu0 %v962, 64
      %v1056 = vpop.permute.xlu0 %1055
      %1057 = vrot.lane.b32.xlu0 %v963, 64
      %v1058 = vpop.permute.xlu0 %1057
      %1059 = vrot.lane.b32.xlu0 %v964, 64
      %v1060 = vpop.permute.xlu0 %1059
      %1093 = vst.msk [vmem:[#allocation3 + $0x10] sm:$0xff] %vm580, %v998
      %1094 = vst.msk [vmem:[#allocation3 + $0x38] sm:$0xff] %vm580, %v1000
      %1095 = vst.msk [vmem:[#allocation3 + $0x60] sm:$0xff] %vm580, %v1002
      %1096 = vst.msk [vmem:[#allocation3 + $0x88] sm:$0xff] %vm580, %v1004
      %1097 = vst.msk [vmem:[#allocation3 + $0xb0] sm:$0xff] %vm580, %v1006
      %1098 = vst.msk [vmem:[#allocation3 + $0xd8] sm:$0xff] %vm580, %v1008
      %1099 = vst.msk [vmem:[#allocation3 + $0x100] sm:$0xff] %vm580, %v1010
      %1100 = vst.msk [vmem:[#allocation3 + $0x128] sm:$0xff] %vm580, %v1012
      %1101 = vst.msk [vmem:[#allocation3 + $0x150] sm:$0xff] %vm580, %v1014
      %1102 = vst.msk [vmem:[#allocation3 + $0x178] sm:$0xff] %vm580, %v1016
      %1103 = vst.msk [vmem:[#allocation3 + $0x1a0] sm:$0xff] %vm580, %v1018
      %1104 = vst.msk [vmem:[#allocation3 + $0x1c8] sm:$0xff] %vm580, %v1020
      %1105 = vst.msk [vmem:[#allocation3 + $0x1f0] sm:$0xff] %vm580, %v1022
      %1106 = vst.msk [vmem:[#allocation3 + $0x218] sm:$0xff] %vm580, %v1024
      %1107 = vst.msk [vmem:[#allocation3 + $0x240] sm:$0xff] %vm580, %v1026
      %1108 = vst.msk [vmem:[#allocation3 + $0x268] sm:$0xff] %vm580, %v1028
      %1109 = vst.msk [vmem:[#allocation3 + $0x290] sm:$0xff] %vm580, %v1030
      %1110 = vst.msk [vmem:[#allocation3 + $0x2b8] sm:$0xff] %vm580, %v1032
      %1111 = vst.msk [vmem:[#allocation3 + $0x2e0] sm:$0xff] %vm580, %v1034
      %1112 = vst.msk [vmem:[#allocation3 + $0x308] sm:$0xff] %vm580, %v1036
      %1113 = vst.msk [vmem:[#allocation3 + $0x330] sm:$0xff] %vm580, %v1038
      %1114 = vst.msk [vmem:[#allocation3 + $0x358] sm:$0xff] %vm580, %v1040
      %1115 = vst.msk [vmem:[#allocation3 + $0x380] sm:$0xff] %vm580, %v1042
      %1116 = vst.msk [vmem:[#allocation3 + $0x3a8] sm:$0xff] %vm580, %v1044
      %1117 = vst.msk [vmem:[#allocation3 + $0x3d0] sm:$0xff] %vm580, %v1046
      %1118 = vst.msk [vmem:[#allocation3 + $0x3f8] sm:$0xff] %vm580, %v1048
      %1119 = vst.msk [vmem:[#allocation3 + $0x420] sm:$0xff] %vm580, %v1050
      %1120 = vst.msk [vmem:[#allocation3 + $0x448] sm:$0xff] %vm580, %v1052
      %1121 = vst.msk [vmem:[#allocation3 + $0x470] sm:$0xff] %vm580, %v1054
      %1122 = vst.msk [vmem:[#allocation3 + $0x498] sm:$0xff] %vm580, %v1056
      %1123 = vst.msk [vmem:[#allocation3 + $0x4c0] sm:$0xff] %vm580, %v1058
      %1124 = vst.msk [vmem:[#allocation3 + $0x4e8] sm:$0xff] %vm580, %v1060
      %s1125 = scalar_lea.vmem [#allocation2], 48
      %v1126 = vld [vmem:[%s1125] sm:$0xff]
      %v1127 = vld [vmem:[%s1125 + $0x8] sm:$0xff]
      %v1128 = vld [vmem:[%s1125 + $0x18] sm:$0xff]
      %v1129 = vld [vmem:[%s1125 + $0x20] sm:$0xff]
      %v1130 = vld [vmem:[%s1125 + $0x30] sm:$0xff]
      %v1131 = vld [vmem:[%s1125 + $0x38] sm:$0xff]
      %v1132 = vld [vmem:[%s1125 + $0x48] sm:$0xff]
      %v1133 = vld [vmem:[%s1125 + $0x50] sm:$0xff]
      %v1134 = vld [vmem:[%s1125 + $0x60] sm:$0xff]
      %v1135 = vld [vmem:[%s1125 + $0x68] sm:$0xff]
      %v1136 = vld [vmem:[%s1125 + $0x78] sm:$0xff]
      %v1137 = vld [vmem:[%s1125 + $0x80] sm:$0xff]
      %v1138 = vld [vmem:[%s1125 + $0x90] sm:$0xff]
      %v1139 = vld [vmem:[%s1125 + $0x98] sm:$0xff]
      %v1140 = vld [vmem:[%s1125 + $0xa8] sm:$0xff]
      %v1141 = vld [vmem:[%s1125 + $0xb0] sm:$0xff]
      %v1142 = vld [vmem:[%s1125 + $0xc0] sm:$0xff]
      %v1143 = vld [vmem:[%s1125 + $0xc8] sm:$0xff]
      %v1144 = vld [vmem:[%s1125 + $0xd8] sm:$0xff]
      %v1145 = vld [vmem:[%s1125 + $0xe0] sm:$0xff]
      %v1146 = vld [vmem:[%s1125 + $0xf0] sm:$0xff]
      %v1147 = vld [vmem:[%s1125 + $0xf8] sm:$0xff]
      %v1148 = vld [vmem:[%s1125 + $0x108] sm:$0xff]
      %v1149 = vld [vmem:[%s1125 + $0x110] sm:$0xff]
      %v1150 = vld [vmem:[%s1125 + $0x120] sm:$0xff]
      %v1151 = vld [vmem:[%s1125 + $0x128] sm:$0xff]
      %v1152 = vld [vmem:[%s1125 + $0x138] sm:$0xff]
      %v1153 = vld [vmem:[%s1125 + $0x140] sm:$0xff]
      %v1154 = vld [vmem:[%s1125 + $0x150] sm:$0xff]
      %v1155 = vld [vmem:[%s1125 + $0x158] sm:$0xff]
      %v1156 = vld [vmem:[%s1125 + $0x168] sm:$0xff]
      %v1157 = vld [vmem:[%s1125 + $0x170] sm:$0xff]
      %1158 = vst.msk [vmem:[#allocation3 + $0x18] sm:$0xff] %vm245, %v1126
      %1159 = vst.msk [vmem:[#allocation3 + $0x40] sm:$0xff] %vm245, %v1127
      %1160 = vst.msk [vmem:[#allocation3 + $0x68] sm:$0xff] %vm245, %v1128
      %1161 = vst.msk [vmem:[#allocation3 + $0x90] sm:$0xff] %vm245, %v1129
      %1162 = vst.msk [vmem:[#allocation3 + $0xb8] sm:$0xff] %vm245, %v1130
      %1163 = vst.msk [vmem:[#allocation3 + $0xe0] sm:$0xff] %vm245, %v1131
      %1164 = vst.msk [vmem:[#allocation3 + $0x108] sm:$0xff] %vm245, %v1132
      %1165 = vst.msk [vmem:[#allocation3 + $0x130] sm:$0xff] %vm245, %v1133
      %1166 = vst.msk [vmem:[#allocation3 + $0x158] sm:$0xff] %vm245, %v1134
      %1167 = vst.msk [vmem:[#allocation3 + $0x180] sm:$0xff] %vm245, %v1135
      %1168 = vst.msk [vmem:[#allocation3 + $0x1a8] sm:$0xff] %vm245, %v1136
      %1169 = vst.msk [vmem:[#allocation3 + $0x1d0] sm:$0xff] %vm245, %v1137
      %1170 = vst.msk [vmem:[#allocation3 + $0x1f8] sm:$0xff] %vm245, %v1138
      %1171 = vst.msk [vmem:[#allocation3 + $0x220] sm:$0xff] %vm245, %v1139
      %1172 = vst.msk [vmem:[#allocation3 + $0x248] sm:$0xff] %vm245, %v1140
      %1173 = vst.msk [vmem:[#allocation3 + $0x270] sm:$0xff] %vm245, %v1141
      %1174 = vst.msk [vmem:[#allocation3 + $0x298] sm:$0xff] %vm245, %v1142
      %1175 = vst.msk [vmem:[#allocation3 + $0x2c0] sm:$0xff] %vm245, %v1143
      %1176 = vst.msk [vmem:[#allocation3 + $0x2e8] sm:$0xff] %vm245, %v1144
      %1177 = vst.msk [vmem:[#allocation3 + $0x310] sm:$0xff] %vm245, %v1145
      %1178 = vst.msk [vmem:[#allocation3 + $0x338] sm:$0xff] %vm245, %v1146
      %1179 = vst.msk [vmem:[#allocation3 + $0x360] sm:$0xff] %vm245, %v1147
      %1180 = vst.msk [vmem:[#allocation3 + $0x388] sm:$0xff] %vm245, %v1148
      %1181 = vst.msk [vmem:[#allocation3 + $0x3b0] sm:$0xff] %vm245, %v1149
      %1182 = vst.msk [vmem:[#allocation3 + $0x3d8] sm:$0xff] %vm245, %v1150
      %1183 = vst.msk [vmem:[#allocation3 + $0x400] sm:$0xff] %vm245, %v1151
      %1184 = vst.msk [vmem:[#allocation3 + $0x428] sm:$0xff] %vm245, %v1152
      %1185 = vst.msk [vmem:[#allocation3 + $0x450] sm:$0xff] %vm245, %v1153
      %1186 = vst.msk [vmem:[#allocation3 + $0x478] sm:$0xff] %vm245, %v1154
      %1187 = vst.msk [vmem:[#allocation3 + $0x4a0] sm:$0xff] %vm245, %v1155
      %1188 = vst.msk [vmem:[#allocation3 + $0x4c8] sm:$0xff] %vm245, %v1156
      %1189 = vst.msk [vmem:[#allocation3 + $0x4f0] sm:$0xff] %vm245, %v1157
      %v1190 = vld [vmem:[%s1125 + $0x1] sm:$0xff]
      %v1191 = vld [vmem:[%s1125 + $0x9] sm:$0xff]
      %v1192 = vld [vmem:[%s1125 + $0x19] sm:$0xff]
      %v1193 = vld [vmem:[%s1125 + $0x21] sm:$0xff]
      %v1194 = vld [vmem:[%s1125 + $0x31] sm:$0xff]
      %v1195 = vld [vmem:[%s1125 + $0x39] sm:$0xff]
      %v1196 = vld [vmem:[%s1125 + $0x49] sm:$0xff]
      %v1197 = vld [vmem:[%s1125 + $0x51] sm:$0xff]
      %v1198 = vld [vmem:[%s1125 + $0x61] sm:$0xff]
      %v1199 = vld [vmem:[%s1125 + $0x69] sm:$0xff]
      %v1200 = vld [vmem:[%s1125 + $0x79] sm:$0xff]
      %v1201 = vld [vmem:[%s1125 + $0x81] sm:$0xff]
      %v1202 = vld [vmem:[%s1125 + $0x91] sm:$0xff]
      %v1203 = vld [vmem:[%s1125 + $0x99] sm:$0xff]
      %v1204 = vld [vmem:[%s1125 + $0xa9] sm:$0xff]
      %v1205 = vld [vmem:[%s1125 + $0xb1] sm:$0xff]
      %v1206 = vld [vmem:[%s1125 + $0xc1] sm:$0xff]
      %v1207 = vld [vmem:[%s1125 + $0xc9] sm:$0xff]
      %v1208 = vld [vmem:[%s1125 + $0xd9] sm:$0xff]
      %v1209 = vld [vmem:[%s1125 + $0xe1] sm:$0xff]
      %v1210 = vld [vmem:[%s1125 + $0xf1] sm:$0xff]
      %v1211 = vld [vmem:[%s1125 + $0xf9] sm:$0xff]
      %v1212 = vld [vmem:[%s1125 + $0x109] sm:$0xff]
      %v1213 = vld [vmem:[%s1125 + $0x111] sm:$0xff]
      %v1214 = vld [vmem:[%s1125 + $0x121] sm:$0xff]
      %v1215 = vld [vmem:[%s1125 + $0x129] sm:$0xff]
      %v1216 = vld [vmem:[%s1125 + $0x139] sm:$0xff]
      %v1217 = vld [vmem:[%s1125 + $0x141] sm:$0xff]
      %v1218 = vld [vmem:[%s1125 + $0x151] sm:$0xff]
      %v1219 = vld [vmem:[%s1125 + $0x159] sm:$0xff]
      %v1220 = vld [vmem:[%s1125 + $0x169] sm:$0xff]
      %v1221 = vld [vmem:[%s1125 + $0x171] sm:$0xff]
      %1254 = vrot.lane.b32.xlu0 %v1190, 64
      %v1255 = vpop.permute.xlu0 %1254
      %1256 = vrot.lane.b32.xlu0 %v1191, 64
      %v1257 = vpop.permute.xlu0 %1256
      %1258 = vrot.lane.b32.xlu0 %v1192, 64
      %v1259 = vpop.permute.xlu0 %1258
      %1260 = vrot.lane.b32.xlu0 %v1193, 64
      %v1261 = vpop.permute.xlu0 %1260
      %1262 = vrot.lane.b32.xlu0 %v1194, 64
      %v1263 = vpop.permute.xlu0 %1262
      %1264 = vrot.lane.b32.xlu0 %v1195, 64
      %v1265 = vpop.permute.xlu0 %1264
      %1266 = vrot.lane.b32.xlu0 %v1196, 64
      %v1267 = vpop.permute.xlu0 %1266
      %1268 = vrot.lane.b32.xlu0 %v1197, 64
      %v1269 = vpop.permute.xlu0 %1268
      %1270 = vrot.lane.b32.xlu0 %v1198, 64
      %v1271 = vpop.permute.xlu0 %1270
      %1272 = vrot.lane.b32.xlu0 %v1199, 64
      %v1273 = vpop.permute.xlu0 %1272
      %1274 = vrot.lane.b32.xlu0 %v1200, 64
      %v1275 = vpop.permute.xlu0 %1274
      %1276 = vrot.lane.b32.xlu0 %v1201, 64
      %v1277 = vpop.permute.xlu0 %1276
      %1278 = vrot.lane.b32.xlu0 %v1202, 64
      %v1279 = vpop.permute.xlu0 %1278
      %1280 = vrot.lane.b32.xlu0 %v1203, 64
      %v1281 = vpop.permute.xlu0 %1280
      %1282 = vrot.lane.b32.xlu0 %v1204, 64
      %v1283 = vpop.permute.xlu0 %1282
      %1284 = vrot.lane.b32.xlu0 %v1205, 64
      %v1285 = vpop.permute.xlu0 %1284
      %1286 = vrot.lane.b32.xlu0 %v1206, 64
      %v1287 = vpop.permute.xlu0 %1286
      %1288 = vrot.lane.b32.xlu0 %v1207, 64
      %v1289 = vpop.permute.xlu0 %1288
      %1290 = vrot.lane.b32.xlu0 %v1208, 64
      %v1291 = vpop.permute.xlu0 %1290
      %1292 = vrot.lane.b32.xlu0 %v1209, 64
      %v1293 = vpop.permute.xlu0 %1292
      %1294 = vrot.lane.b32.xlu0 %v1210, 64
      %v1295 = vpop.permute.xlu0 %1294
      %1296 = vrot.lane.b32.xlu0 %v1211, 64
      %v1297 = vpop.permute.xlu0 %1296
      %1298 = vrot.lane.b32.xlu0 %v1212, 64
      %v1299 = vpop.permute.xlu0 %1298
      %1300 = vrot.lane.b32.xlu0 %v1213, 64
      %v1301 = vpop.permute.xlu0 %1300
      %1302 = vrot.lane.b32.xlu0 %v1214, 64
      %v1303 = vpop.permute.xlu0 %1302
      %1304 = vrot.lane.b32.xlu0 %v1215, 64
      %v1305 = vpop.permute.xlu0 %1304
      %1306 = vrot.lane.b32.xlu0 %v1216, 64
      %v1307 = vpop.permute.xlu0 %1306
      %1308 = vrot.lane.b32.xlu0 %v1217, 64
      %v1309 = vpop.permute.xlu0 %1308
      %1310 = vrot.lane.b32.xlu0 %v1218, 64
      %v1311 = vpop.permute.xlu0 %1310
      %1312 = vrot.lane.b32.xlu0 %v1219, 64
      %v1313 = vpop.permute.xlu0 %1312
      %1314 = vrot.lane.b32.xlu0 %v1220, 64
      %v1315 = vpop.permute.xlu0 %1314
      %1316 = vrot.lane.b32.xlu0 %v1221, 64
      %v1317 = vpop.permute.xlu0 %1316
      %1350 = vst.msk [vmem:[#allocation3 + $0x18] sm:$0xff] %vm580, %v1255
      %1351 = vst.msk [vmem:[#allocation3 + $0x40] sm:$0xff] %vm580, %v1257
      %1352 = vst.msk [vmem:[#allocation3 + $0x68] sm:$0xff] %vm580, %v1259
      %1353 = vst.msk [vmem:[#allocation3 + $0x90] sm:$0xff] %vm580, %v1261
      %1354 = vst.msk [vmem:[#allocation3 + $0xb8] sm:$0xff] %vm580, %v1263
      %1355 = vst.msk [vmem:[#allocation3 + $0xe0] sm:$0xff] %vm580, %v1265
      %1356 = vst.msk [vmem:[#allocation3 + $0x108] sm:$0xff] %vm580, %v1267
      %1357 = vst.msk [vmem:[#allocation3 + $0x130] sm:$0xff] %vm580, %v1269
      %1358 = vst.msk [vmem:[#allocation3 + $0x158] sm:$0xff] %vm580, %v1271
      %1359 = vst.msk [vmem:[#allocation3 + $0x180] sm:$0xff] %vm580, %v1273
      %1360 = vst.msk [vmem:[#allocation3 + $0x1a8] sm:$0xff] %vm580, %v1275
      %1361 = vst.msk [vmem:[#allocation3 + $0x1d0] sm:$0xff] %vm580, %v1277
      %1362 = vst.msk [vmem:[#allocation3 + $0x1f8] sm:$0xff] %vm580, %v1279
      %1363 = vst.msk [vmem:[#allocation3 + $0x220] sm:$0xff] %vm580, %v1281
      %1364 = vst.msk [vmem:[#allocation3 + $0x248] sm:$0xff] %vm580, %v1283
      %1365 = vst.msk [vmem:[#allocation3 + $0x270] sm:$0xff] %vm580, %v1285
      %1366 = vst.msk [vmem:[#allocation3 + $0x298] sm:$0xff] %vm580, %v1287
      %1367 = vst.msk [vmem:[#allocation3 + $0x2c0] sm:$0xff] %vm580, %v1289
      %1368 = vst.msk [vmem:[#allocation3 + $0x2e8] sm:$0xff] %vm580, %v1291
      %1369 = vst.msk [vmem:[#allocation3 + $0x310] sm:$0xff] %vm580, %v1293
      %1370 = vst.msk [vmem:[#allocation3 + $0x338] sm:$0xff] %vm580, %v1295
      %1371 = vst.msk [vmem:[#allocation3 + $0x360] sm:$0xff] %vm580, %v1297
      %1372 = vst.msk [vmem:[#allocation3 + $0x388] sm:$0xff] %vm580, %v1299
      %1373 = vst.msk [vmem:[#allocation3 + $0x3b0] sm:$0xff] %vm580, %v1301
      %1374 = vst.msk [vmem:[#allocation3 + $0x3d8] sm:$0xff] %vm580, %v1303
      %1375 = vst.msk [vmem:[#allocation3 + $0x400] sm:$0xff] %vm580, %v1305
      %1376 = vst.msk [vmem:[#allocation3 + $0x428] sm:$0xff] %vm580, %v1307
      %1377 = vst.msk [vmem:[#allocation3 + $0x450] sm:$0xff] %vm580, %v1309
      %1378 = vst.msk [vmem:[#allocation3 + $0x478] sm:$0xff] %vm580, %v1311
      %1379 = vst.msk [vmem:[#allocation3 + $0x4a0] sm:$0xff] %vm580, %v1313
      %1380 = vst.msk [vmem:[#allocation3 + $0x4c8] sm:$0xff] %vm580, %v1315
      %1381 = vst.msk [vmem:[#allocation3 + $0x4f0] sm:$0xff] %vm580, %v1317
      %v1382 = vld [vmem:[%s1125 + $0x2] sm:$0xff]
      %v1383 = vld [vmem:[%s1125 + $0xa] sm:$0xff]
      %v1384 = vld [vmem:[%s1125 + $0x1a] sm:$0xff]
      %v1385 = vld [vmem:[%s1125 + $0x22] sm:$0xff]
      %v1386 = vld [vmem:[%s1125 + $0x32] sm:$0xff]
      %v1387 = vld [vmem:[%s1125 + $0x3a] sm:$0xff]
      %v1388 = vld [vmem:[%s1125 + $0x4a] sm:$0xff]
      %v1389 = vld [vmem:[%s1125 + $0x52] sm:$0xff]
      %v1390 = vld [vmem:[%s1125 + $0x62] sm:$0xff]
      %v1391 = vld [vmem:[%s1125 + $0x6a] sm:$0xff]
      %v1392 = vld [vmem:[%s1125 + $0x7a] sm:$0xff]
      %v1393 = vld [vmem:[%s1125 + $0x82] sm:$0xff]
      %v1394 = vld [vmem:[%s1125 + $0x92] sm:$0xff]
      %v1395 = vld [vmem:[%s1125 + $0x9a] sm:$0xff]
      %v1396 = vld [vmem:[%s1125 + $0xaa] sm:$0xff]
      %v1397 = vld [vmem:[%s1125 + $0xb2] sm:$0xff]
      %v1398 = vld [vmem:[%s1125 + $0xc2] sm:$0xff]
      %v1399 = vld [vmem:[%s1125 + $0xca] sm:$0xff]
      %v1400 = vld [vmem:[%s1125 + $0xda] sm:$0xff]
      %v1401 = vld [vmem:[%s1125 + $0xe2] sm:$0xff]
      %v1402 = vld [vmem:[%s1125 + $0xf2] sm:$0xff]
      %v1403 = vld [vmem:[%s1125 + $0xfa] sm:$0xff]
      %v1404 = vld [vmem:[%s1125 + $0x10a] sm:$0xff]
      %v1405 = vld [vmem:[%s1125 + $0x112] sm:$0xff]
      %v1406 = vld [vmem:[%s1125 + $0x122] sm:$0xff]
      %v1407 = vld [vmem:[%s1125 + $0x12a] sm:$0xff]
      %v1408 = vld [vmem:[%s1125 + $0x13a] sm:$0xff]
      %v1409 = vld [vmem:[%s1125 + $0x142] sm:$0xff]
      %v1410 = vld [vmem:[%s1125 + $0x152] sm:$0xff]
      %v1411 = vld [vmem:[%s1125 + $0x15a] sm:$0xff]
      %v1412 = vld [vmem:[%s1125 + $0x16a] sm:$0xff]
      %v1413 = vld [vmem:[%s1125 + $0x172] sm:$0xff]
      %1414 = vst.msk [vmem:[#allocation3 + $0x20] sm:$0xff] %vm245, %v1382
      %1415 = vst.msk [vmem:[#allocation3 + $0x48] sm:$0xff] %vm245, %v1383
      %1416 = vst.msk [vmem:[#allocation3 + $0x70] sm:$0xff] %vm245, %v1384
      %1417 = vst.msk [vmem:[#allocation3 + $0x98] sm:$0xff] %vm245, %v1385
      %1418 = vst.msk [vmem:[#allocation3 + $0xc0] sm:$0xff] %vm245, %v1386
      %1419 = vst.msk [vmem:[#allocation3 + $0xe8] sm:$0xff] %vm245, %v1387
      %1420 = vst.msk [vmem:[#allocation3 + $0x110] sm:$0xff] %vm245, %v1388
      %1421 = vst.msk [vmem:[#allocation3 + $0x138] sm:$0xff] %vm245, %v1389
      %1422 = vst.msk [vmem:[#allocation3 + $0x160] sm:$0xff] %vm245, %v1390
      %1423 = vst.msk [vmem:[#allocation3 + $0x188] sm:$0xff] %vm245, %v1391
      %1424 = vst.msk [vmem:[#allocation3 + $0x1b0] sm:$0xff] %vm245, %v1392
      %1425 = vst.msk [vmem:[#allocation3 + $0x1d8] sm:$0xff] %vm245, %v1393
      %1426 = vst.msk [vmem:[#allocation3 + $0x200] sm:$0xff] %vm245, %v1394
      %1427 = vst.msk [vmem:[#allocation3 + $0x228] sm:$0xff] %vm245, %v1395
      %1428 = vst.msk [vmem:[#allocation3 + $0x250] sm:$0xff] %vm245, %v1396
      %1429 = vst.msk [vmem:[#allocation3 + $0x278] sm:$0xff] %vm245, %v1397
      %1430 = vst.msk [vmem:[#allocation3 + $0x2a0] sm:$0xff] %vm245, %v1398
      %1431 = vst.msk [vmem:[#allocation3 + $0x2c8] sm:$0xff] %vm245, %v1399
      %1432 = vst.msk [vmem:[#allocation3 + $0x2f0] sm:$0xff] %vm245, %v1400
      %1433 = vst.msk [vmem:[#allocation3 + $0x318] sm:$0xff] %vm245, %v1401
      %1434 = vst.msk [vmem:[#allocation3 + $0x340] sm:$0xff] %vm245, %v1402
      %1435 = vst.msk [vmem:[#allocation3 + $0x368] sm:$0xff] %vm245, %v1403
      %1436 = vst.msk [vmem:[#allocation3 + $0x390] sm:$0xff] %vm245, %v1404
      %1437 = vst.msk [vmem:[#allocation3 + $0x3b8] sm:$0xff] %vm245, %v1405
      %1438 = vst.msk [vmem:[#allocation3 + $0x3e0] sm:$0xff] %vm245, %v1406
      %1439 = vst.msk [vmem:[#allocation3 + $0x408] sm:$0xff] %vm245, %v1407
      %1440 = vst.msk [vmem:[#allocation3 + $0x430] sm:$0xff] %vm245, %v1408
      %1441 = vst.msk [vmem:[#allocation3 + $0x458] sm:$0xff] %vm245, %v1409
      %1442 = vst.msk [vmem:[#allocation3 + $0x480] sm:$0xff] %vm245, %v1410
      %1443 = vst.msk [vmem:[#allocation3 + $0x4a8] sm:$0xff] %vm245, %v1411
      %1444 = vst.msk [vmem:[#allocation3 + $0x4d0] sm:$0xff] %vm245, %v1412
      %1445 = vst.msk [vmem:[#allocation3 + $0x4f8] sm:$0xff] %vm245, %v1413
      %v1446 = vld [vmem:[#allocation3] sm:$0xff]
      %v1447 = vld [vmem:[#allocation3 + $0x8] sm:$0xff]
      %v1448 = vld [vmem:[#allocation3 + $0x10] sm:$0xff]
      %v1449 = vld [vmem:[#allocation3 + $0x18] sm:$0xff]
      %v1450 = vld [vmem:[#allocation3 + $0x20] sm:$0xff]
      %v1451 = vld [vmem:[#allocation3 + $0x28] sm:$0xff]
      %v1452 = vld [vmem:[#allocation3 + $0x30] sm:$0xff]
      %v1453 = vld [vmem:[#allocation3 + $0x38] sm:$0xff]
      %v1454 = vld [vmem:[#allocation3 + $0x40] sm:$0xff]
      %v1455 = vld [vmem:[#allocation3 + $0x48] sm:$0xff]
      %v1456 = vld [vmem:[#allocation3 + $0x50] sm:$0xff]
      %v1457 = vld [vmem:[#allocation3 + $0x58] sm:$0xff]
      %v1458 = vld [vmem:[#allocation3 + $0x60] sm:$0xff]
      %v1459 = vld [vmem:[#allocation3 + $0x68] sm:$0xff]
      %v1460 = vld [vmem:[#allocation3 + $0x70] sm:$0xff]
      %v1461 = vld [vmem:[#allocation3 + $0x78] sm:$0xff]
      %v1462 = vld [vmem:[#allocation3 + $0x80] sm:$0xff]
      %v1463 = vld [vmem:[#allocation3 + $0x88] sm:$0xff]
      %v1464 = vld [vmem:[#allocation3 + $0x90] sm:$0xff]
      %v1465 = vld [vmem:[#allocation3 + $0x98] sm:$0xff]
      %v1466 = vld [vmem:[#allocation3 + $0xa0] sm:$0xff]
      %v1467 = vld [vmem:[#allocation3 + $0xa8] sm:$0xff]
      %v1468 = vld [vmem:[#allocation3 + $0xb0] sm:$0xff]
      %v1469 = vld [vmem:[#allocation3 + $0xb8] sm:$0xff]
      %v1470 = vld [vmem:[#allocation3 + $0xc0] sm:$0xff]
      %v1471 = vld [vmem:[#allocation3 + $0xc8] sm:$0xff]
      %v1472 = vld [vmem:[#allocation3 + $0xd0] sm:$0xff]
      %v1473 = vld [vmem:[#allocation3 + $0xd8] sm:$0xff]
      %v1474 = vld [vmem:[#allocation3 + $0xe0] sm:$0xff]
      %v1475 = vld [vmem:[#allocation3 + $0xe8] sm:$0xff]
      %v1476 = vld [vmem:[#allocation3 + $0xf0] sm:$0xff]
      %v1477 = vld [vmem:[#allocation3 + $0xf8] sm:$0xff]
      %v1478 = vld [vmem:[#allocation3 + $0x100] sm:$0xff]
      %v1479 = vld [vmem:[#allocation3 + $0x108] sm:$0xff]
      %v1480 = vld [vmem:[#allocation3 + $0x110] sm:$0xff]
      %v1481 = vld [vmem:[#allocation3 + $0x118] sm:$0xff]
      %v1482 = vld [vmem:[#allocation3 + $0x120] sm:$0xff]
      %v1483 = vld [vmem:[#allocation3 + $0x128] sm:$0xff]
      %v1484 = vld [vmem:[#allocation3 + $0x130] sm:$0xff]
      %v1485 = vld [vmem:[#allocation3 + $0x138] sm:$0xff]
      %v1486 = vld [vmem:[#allocation3 + $0x140] sm:$0xff]
      %v1487 = vld [vmem:[#allocation3 + $0x148] sm:$0xff]
      %v1488 = vld [vmem:[#allocation3 + $0x150] sm:$0xff]
      %v1489 = vld [vmem:[#allocation3 + $0x158] sm:$0xff]
      %v1490 = vld [vmem:[#allocation3 + $0x160] sm:$0xff]
      %v1491 = vld [vmem:[#allocation3 + $0x168] sm:$0xff]
      %v1492 = vld [vmem:[#allocation3 + $0x170] sm:$0xff]
      %v1493 = vld [vmem:[#allocation3 + $0x178] sm:$0xff]
      %v1494 = vld [vmem:[#allocation3 + $0x180] sm:$0xff]
      %v1495 = vld [vmem:[#allocation3 + $0x188] sm:$0xff]
      %v1496 = vld [vmem:[#allocation3 + $0x190] sm:$0xff]
      %v1497 = vld [vmem:[#allocation3 + $0x198] sm:$0xff]
      %v1498 = vld [vmem:[#allocation3 + $0x1a0] sm:$0xff]
      %v1499 = vld [vmem:[#allocation3 + $0x1a8] sm:$0xff]
      %v1500 = vld [vmem:[#allocation3 + $0x1b0] sm:$0xff]
      %v1501 = vld [vmem:[#allocation3 + $0x1b8] sm:$0xff]
      %v1502 = vld [vmem:[#allocation3 + $0x1c0] sm:$0xff]
      %v1503 = vld [vmem:[#allocation3 + $0x1c8] sm:$0xff]
      %v1504 = vld [vmem:[#allocation3 + $0x1d0] sm:$0xff]
      %v1505 = vld [vmem:[#allocation3 + $0x1d8] sm:$0xff]
      %v1506 = vld [vmem:[#allocation3 + $0x1e0] sm:$0xff]
      %v1507 = vld [vmem:[#allocation3 + $0x1e8] sm:$0xff]
      %v1508 = vld [vmem:[#allocation3 + $0x1f0] sm:$0xff]
      %v1509 = vld [vmem:[#allocation3 + $0x1f8] sm:$0xff]
      %v1510 = vld [vmem:[#allocation3 + $0x200] sm:$0xff]
      %v1511 = vld [vmem:[#allocation3 + $0x208] sm:$0xff]
      %v1512 = vld [vmem:[#allocation3 + $0x210] sm:$0xff]
      %v1513 = vld [vmem:[#allocation3 + $0x218] sm:$0xff]
      %v1514 = vld [vmem:[#allocation3 + $0x220] sm:$0xff]
      %v1515 = vld [vmem:[#allocation3 + $0x228] sm:$0xff]
      %v1516 = vld [vmem:[#allocation3 + $0x230] sm:$0xff]
      %v1517 = vld [vmem:[#allocation3 + $0x238] sm:$0xff]
      %v1518 = vld [vmem:[#allocation3 + $0x240] sm:$0xff]
      %v1519 = vld [vmem:[#allocation3 + $0x248] sm:$0xff]
      %v1520 = vld [vmem:[#allocation3 + $0x250] sm:$0xff]
      %v1521 = vld [vmem:[#allocation3 + $0x258] sm:$0xff]
      %v1522 = vld [vmem:[#allocation3 + $0x260] sm:$0xff]
      %v1523 = vld [vmem:[#allocation3 + $0x268] sm:$0xff]
      %v1524 = vld [vmem:[#allocation3 + $0x270] sm:$0xff]
      %v1525 = vld [vmem:[#allocation3 + $0x278] sm:$0xff]
      %v1526 = vld [vmem:[#allocation3 + $0x280] sm:$0xff]
      %v1527 = vld [vmem:[#allocation3 + $0x288] sm:$0xff]
      %v1528 = vld [vmem:[#allocation3 + $0x290] sm:$0xff]
      %v1529 = vld [vmem:[#allocation3 + $0x298] sm:$0xff]
      %v1530 = vld [vmem:[#allocation3 + $0x2a0] sm:$0xff]
      %v1531 = vld [vmem:[#allocation3 + $0x2a8] sm:$0xff]
      %v1532 = vld [vmem:[#allocation3 + $0x2b0] sm:$0xff]
      %v1533 = vld [vmem:[#allocation3 + $0x2b8] sm:$0xff]
      %v1534 = vld [vmem:[#allocation3 + $0x2c0] sm:$0xff]
      %v1535 = vld [vmem:[#allocation3 + $0x2c8] sm:$0xff]
      %v1536 = vld [vmem:[#allocation3 + $0x2d0] sm:$0xff]
      %v1537 = vld [vmem:[#allocation3 + $0x2d8] sm:$0xff]
      %v1538 = vld [vmem:[#allocation3 + $0x2e0] sm:$0xff]
      %v1539 = vld [vmem:[#allocation3 + $0x2e8] sm:$0xff]
      %v1540 = vld [vmem:[#allocation3 + $0x2f0] sm:$0xff]
      %v1541 = vld [vmem:[#allocation3 + $0x2f8] sm:$0xff]
      %v1542 = vld [vmem:[#allocation3 + $0x300] sm:$0xff]
      %v1543 = vld [vmem:[#allocation3 + $0x308] sm:$0xff]
      %v1544 = vld [vmem:[#allocation3 + $0x310] sm:$0xff]
      %v1545 = vld [vmem:[#allocation3 + $0x318] sm:$0xff]
      %v1546 = vld [vmem:[#allocation3 + $0x320] sm:$0xff]
      %v1547 = vld [vmem:[#allocation3 + $0x328] sm:$0xff]
      %v1548 = vld [vmem:[#allocation3 + $0x330] sm:$0xff]
      %v1549 = vld [vmem:[#allocation3 + $0x338] sm:$0xff]
      %v1550 = vld [vmem:[#allocation3 + $0x340] sm:$0xff]
      %v1551 = vld [vmem:[#allocation3 + $0x348] sm:$0xff]
      %v1552 = vld [vmem:[#allocation3 + $0x350] sm:$0xff]
      %v1553 = vld [vmem:[#allocation3 + $0x358] sm:$0xff]
      %v1554 = vld [vmem:[#allocation3 + $0x360] sm:$0xff]
      %v1555 = vld [vmem:[#allocation3 + $0x368] sm:$0xff]
      %v1556 = vld [vmem:[#allocation3 + $0x370] sm:$0xff]
      %v1557 = vld [vmem:[#allocation3 + $0x378] sm:$0xff]
      %v1558 = vld [vmem:[#allocation3 + $0x380] sm:$0xff]
      %v1559 = vld [vmem:[#allocation3 + $0x388] sm:$0xff]
      %v1560 = vld [vmem:[#allocation3 + $0x390] sm:$0xff]
      %v1561 = vld [vmem:[#allocation3 + $0x398] sm:$0xff]
      %v1562 = vld [vmem:[#allocation3 + $0x3a0] sm:$0xff]
      %v1563 = vld [vmem:[#allocation3 + $0x3a8] sm:$0xff]
      %v1564 = vld [vmem:[#allocation3 + $0x3b0] sm:$0xff]
      %v1565 = vld [vmem:[#allocation3 + $0x3b8] sm:$0xff]
      %v1566 = vld [vmem:[#allocation3 + $0x3c0] sm:$0xff]
      %v1567 = vld [vmem:[#allocation3 + $0x3c8] sm:$0xff]
      %v1568 = vld [vmem:[#allocation3 + $0x3d0] sm:$0xff]
      %v1569 = vld [vmem:[#allocation3 + $0x3d8] sm:$0xff]
      %v1570 = vld [vmem:[#allocation3 + $0x3e0] sm:$0xff]
      %v1571 = vld [vmem:[#allocation3 + $0x3e8] sm:$0xff]
      %v1572 = vld [vmem:[#allocation3 + $0x3f0] sm:$0xff]
      %v1573 = vld [vmem:[#allocation3 + $0x3f8] sm:$0xff]
      %v1574 = vld [vmem:[#allocation3 + $0x400] sm:$0xff]
      %v1575 = vld [vmem:[#allocation3 + $0x408] sm:$0xff]
      %v1576 = vld [vmem:[#allocation3 + $0x410] sm:$0xff]
      %v1577 = vld [vmem:[#allocation3 + $0x418] sm:$0xff]
      %v1578 = vld [vmem:[#allocation3 + $0x420] sm:$0xff]
      %v1579 = vld [vmem:[#allocation3 + $0x428] sm:$0xff]
      %v1580 = vld [vmem:[#allocation3 + $0x430] sm:$0xff]
      %v1581 = vld [vmem:[#allocation3 + $0x438] sm:$0xff]
      %v1582 = vld [vmem:[#allocation3 + $0x440] sm:$0xff]
      %v1583 = vld [vmem:[#allocation3 + $0x448] sm:$0xff]
      %v1584 = vld [vmem:[#allocation3 + $0x450] sm:$0xff]
      %v1585 = vld [vmem:[#allocation3 + $0x458] sm:$0xff]
      %v1586 = vld [vmem:[#allocation3 + $0x460] sm:$0xff]
      %v1587 = vld [vmem:[#allocation3 + $0x468] sm:$0xff]
      %v1588 = vld [vmem:[#allocation3 + $0x470] sm:$0xff]
      %v1589 = vld [vmem:[#allocation3 + $0x478] sm:$0xff]
      %v1590 = vld [vmem:[#allocation3 + $0x480] sm:$0xff]
      %v1591 = vld [vmem:[#allocation3 + $0x488] sm:$0xff]
      %v1592 = vld [vmem:[#allocation3 + $0x490] sm:$0xff]
      %v1593 = vld [vmem:[#allocation3 + $0x498] sm:$0xff]
      %v1594 = vld [vmem:[#allocation3 + $0x4a0] sm:$0xff]
      %v1595 = vld [vmem:[#allocation3 + $0x4a8] sm:$0xff]
      %v1596 = vld [vmem:[#allocation3 + $0x4b0] sm:$0xff]
      %v1597 = vld [vmem:[#allocation3 + $0x4b8] sm:$0xff]
      %v1598 = vld [vmem:[#allocation3 + $0x4c0] sm:$0xff]
      %v1599 = vld [vmem:[#allocation3 + $0x4c8] sm:$0xff]
      %v1600 = vld [vmem:[#allocation3 + $0x4d0] sm:$0xff]
      %v1601 = vld [vmem:[#allocation3 + $0x4d8] sm:$0xff]
      %v1602 = vld [vmem:[#allocation3 + $0x4e0] sm:$0xff]
      %v1603 = vld [vmem:[#allocation3 + $0x4e8] sm:$0xff]
      %v1604 = vld [vmem:[#allocation3 + $0x4f0] sm:$0xff]
      %v1605 = vld [vmem:[#allocation3 + $0x4f8] sm:$0xff]
      %v1606 = vld [vmem:[%s2] sm:$0xff]
      %v1607 = vld [vmem:[%s2 + $0x8] sm:$0xff]
      %v1608 = vld [vmem:[%s2 + $0x10] sm:$0xff]
      %v1609 = vld [vmem:[%s2 + $0x18] sm:$0xff]
      %v1610 = vld [vmem:[%s2 + $0x20] sm:$0xff]
      %v1611 = vld [vmem:[%s2 + $0x28] sm:$0xff]
      %v1612 = vld [vmem:[%s2 + $0x30] sm:$0xff]
      %v1613 = vld [vmem:[%s2 + $0x38] sm:$0xff]
      %v1614 = vld [vmem:[%s2 + $0x40] sm:$0xff]
      %v1615 = vld [vmem:[%s2 + $0x48] sm:$0xff]
      %v1616 = vld [vmem:[%s2 + $0x50] sm:$0xff]
      %v1617 = vld [vmem:[%s2 + $0x58] sm:$0xff]
      %v1618 = vld [vmem:[%s2 + $0x60] sm:$0xff]
      %v1619 = vld [vmem:[%s2 + $0x68] sm:$0xff]
      %v1620 = vld [vmem:[%s2 + $0x70] sm:$0xff]
      %v1621 = vld [vmem:[%s2 + $0x78] sm:$0xff]
      %v1622 = vld [vmem:[%s2 + $0x80] sm:$0xff]
      %v1623 = vld [vmem:[%s2 + $0x88] sm:$0xff]
      %v1624 = vld [vmem:[%s2 + $0x90] sm:$0xff]
      %v1625 = vld [vmem:[%s2 + $0x98] sm:$0xff]
      %v1626 = vld [vmem:[%s2 + $0xa0] sm:$0xff]
      %v1627 = vld [vmem:[%s2 + $0xa8] sm:$0xff]
      %v1628 = vld [vmem:[%s2 + $0xb0] sm:$0xff]
      %v1629 = vld [vmem:[%s2 + $0xb8] sm:$0xff]
      %v1630 = vld [vmem:[%s2 + $0xc0] sm:$0xff]
      %v1631 = vld [vmem:[%s2 + $0xc8] sm:$0xff]
      %v1632 = vld [vmem:[%s2 + $0xd0] sm:$0xff]
      %v1633 = vld [vmem:[%s2 + $0xd8] sm:$0xff]
      %v1634 = vld [vmem:[%s2 + $0xe0] sm:$0xff]
      %v1635 = vld [vmem:[%s2 + $0xe8] sm:$0xff]
      %v1636 = vld [vmem:[%s2 + $0xf0] sm:$0xff]
      %v1637 = vld [vmem:[%s2 + $0xf8] sm:$0xff]
      %v1638 = vld [vmem:[%s2 + $0x100] sm:$0xff]
      %v1639 = vld [vmem:[%s2 + $0x108] sm:$0xff]
      %v1640 = vld [vmem:[%s2 + $0x110] sm:$0xff]
      %v1641 = vld [vmem:[%s2 + $0x118] sm:$0xff]
      %v1642 = vld [vmem:[%s2 + $0x120] sm:$0xff]
      %v1643 = vld [vmem:[%s2 + $0x128] sm:$0xff]
      %v1644 = vld [vmem:[%s2 + $0x130] sm:$0xff]
      %v1645 = vld [vmem:[%s2 + $0x138] sm:$0xff]
      %v1646 = vld [vmem:[%s2 + $0x140] sm:$0xff]
      %v1647 = vld [vmem:[%s2 + $0x148] sm:$0xff]
      %v1648 = vld [vmem:[%s2 + $0x150] sm:$0xff]
      %v1649 = vld [vmem:[%s2 + $0x158] sm:$0xff]
      %v1650 = vld [vmem:[%s2 + $0x160] sm:$0xff]
      %v1651 = vld [vmem:[%s2 + $0x168] sm:$0xff]
      %v1652 = vld [vmem:[%s2 + $0x170] sm:$0xff]
      %v1653 = vld [vmem:[%s2 + $0x178] sm:$0xff]
      %v1654 = vld [vmem:[%s2 + $0x180] sm:$0xff]
      %v1655 = vld [vmem:[%s2 + $0x188] sm:$0xff]
      %v1656 = vld [vmem:[%s2 + $0x190] sm:$0xff]
      %v1657 = vld [vmem:[%s2 + $0x198] sm:$0xff]
      %v1658 = vld [vmem:[%s2 + $0x1a0] sm:$0xff]
      %v1659 = vld [vmem:[%s2 + $0x1a8] sm:$0xff]
      %v1660 = vld [vmem:[%s2 + $0x1b0] sm:$0xff]
      %v1661 = vld [vmem:[%s2 + $0x1b8] sm:$0xff]
      %v1662 = vld [vmem:[%s2 + $0x1c0] sm:$0xff]
      %v1663 = vld [vmem:[%s2 + $0x1c8] sm:$0xff]
      %v1664 = vld [vmem:[%s2 + $0x1d0] sm:$0xff]
      %v1665 = vld [vmem:[%s2 + $0x1d8] sm:$0xff]
      %v1666 = vld [vmem:[%s2 + $0x1e0] sm:$0xff]
      %v1667 = vld [vmem:[%s2 + $0x1e8] sm:$0xff]
      %v1668 = vld [vmem:[%s2 + $0x1f0] sm:$0xff]
      %v1669 = vld [vmem:[%s2 + $0x1f8] sm:$0xff]
      %v1670 = vld [vmem:[%s2 + $0x200] sm:$0xff]
      %v1671 = vld [vmem:[%s2 + $0x208] sm:$0xff]
      %v1672 = vld [vmem:[%s2 + $0x210] sm:$0xff]
      %v1673 = vld [vmem:[%s2 + $0x218] sm:$0xff]
      %v1674 = vld [vmem:[%s2 + $0x220] sm:$0xff]
      %v1675 = vld [vmem:[%s2 + $0x228] sm:$0xff]
      %v1676 = vld [vmem:[%s2 + $0x230] sm:$0xff]
      %v1677 = vld [vmem:[%s2 + $0x238] sm:$0xff]
      %v1679 = vsel %vm245, %v1450, 0
      %v1682 = vsel %vm245, %v1455, 0
      %v1685 = vsel %vm245, %v1460, 0
      %v1688 = vsel %vm245, %v1465, 0
      %v1691 = vsel %vm245, %v1470, 0
      %v1694 = vsel %vm245, %v1475, 0
      %v1697 = vsel %vm245, %v1480, 0
      %v1700 = vsel %vm245, %v1485, 0
      %v1703 = vsel %vm245, %v1490, 0
      %v1706 = vsel %vm245, %v1495, 0
      %v1709 = vsel %vm245, %v1500, 0
      %v1712 = vsel %vm245, %v1505, 0
      %v1715 = vsel %vm245, %v1510, 0
      %v1718 = vsel %vm245, %v1515, 0
      %v1721 = vsel %vm245, %v1520, 0
      %v1724 = vsel %vm245, %v1525, 0
      %v1727 = vsel %vm245, %v1530, 0
      %v1730 = vsel %vm245, %v1535, 0
      %v1733 = vsel %vm245, %v1540, 0
      %v1736 = vsel %vm245, %v1545, 0
      %v1739 = vsel %vm245, %v1550, 0
      %v1742 = vsel %vm245, %v1555, 0
      %v1745 = vsel %vm245, %v1560, 0
      %v1748 = vsel %vm245, %v1565, 0
      %v1751 = vsel %vm245, %v1570, 0
      %v1754 = vsel %vm245, %v1575, 0
      %v1757 = vsel %vm245, %v1580, 0
      %v1760 = vsel %vm245, %v1585, 0
      %v1763 = vsel %vm245, %v1590, 0
      %v1766 = vsel %vm245, %v1595, 0
      %v1769 = vsel %vm245, %v1600, 0
      %v1772 = vsel %vm245, %v1605, 0
      %1774 = vmatprep.subr.mxu0 0.0
      %1775 = vmatpush1.msra.mxu0 %v1621
      %1776 = vmatprep.subr.mxu0 0.0
      %1777 = vmatpush1.msra.mxu0 %v1620
      %1778 = vmatprep.subr.mxu0 0.0
      %1779 = vmatpush1.msra.mxu0 %v1619
      %1780 = vmatprep.subr.mxu0 0.0
      %1781 = vmatpush1.msra.mxu0 %v1618
      %1782 = vmatprep.subr.mxu0 0.0
      %1783 = vmatpush1.msra.mxu0 %v1617
      %1784 = vmatprep.subr.mxu0 0.0
      %1785 = vmatpush1.msra.mxu0 %v1616
      %1786 = vmatprep.subr.mxu0 0.0
      %1787 = vmatpush1.msra.mxu0 %v1615
      %1788 = vmatprep.subr.mxu0 0.0
      %1789 = vmatpush1.msra.mxu0 %v1614
      %1790 = vmatprep.subr.mxu0 0.0
      %1791 = vmatpush1.msra.mxu0 %v1613
      %1792 = vmatprep.subr.mxu0 0.0
      %1793 = vmatpush1.msra.mxu0 %v1612
      %1794 = vmatprep.subr.mxu0 0.0
      %1795 = vmatpush1.msra.mxu0 %v1611
      %1796 = vmatprep.subr.mxu0 0.0
      %1797 = vmatpush1.msra.mxu0 %v1610
      %1798 = vmatprep.subr.mxu0 0.0
      %1799 = vmatpush1.msra.mxu0 %v1609
      %1800 = vmatprep.subr.mxu0 0.0
      %1801 = vmatpush1.msra.mxu0 %v1608
      %1802 = vmatprep.subr.mxu0 0.0
      %1803 = vmatpush1.msra.mxu0 %v1607
      %1804 = vmatprep.subr.mxu0 0.0
      %1805 = vmatpush1.msra.mxu0 %v1606
      %1806 = vmatprep.subr.mxu0 0.0
      %1807 = vmatpush2.msra.mxu0 %v1637
      %1808 = vmatprep.subr.mxu0 0.0
      %1809 = vmatpush2.msra.mxu0 %v1636
      %1810 = vmatprep.subr.mxu0 0.0
      %1811 = vmatpush2.msra.mxu0 %v1635
      %1812 = vmatprep.subr.mxu0 0.0
      %1813 = vmatpush2.msra.mxu0 %v1634
      %1814 = vmatprep.subr.mxu0 0.0
      %1815 = vmatpush2.msra.mxu0 %v1633
      %1816 = vmatprep.subr.mxu0 0.0
      %1817 = vmatpush2.msra.mxu0 %v1632
      %1818 = vmatprep.subr.mxu0 0.0
      %1819 = vmatpush2.msra.mxu0 %v1631
      %1820 = vmatprep.subr.mxu0 0.0
      %1821 = vmatpush2.msra.mxu0 %v1630
      %1822 = vmatprep.subr.mxu0 0.0
      %1823 = vmatpush2.msra.mxu0 %v1629
      %1824 = vmatprep.subr.mxu0 0.0
      %1825 = vmatpush2.msra.mxu0 %v1628
      %1826 = vmatprep.subr.mxu0 0.0
      %1827 = vmatpush2.msra.mxu0 %v1627
      %1828 = vmatprep.subr.mxu0 0.0
      %1829 = vmatpush2.msra.mxu0 %v1626
      %1830 = vmatprep.subr.mxu0 0.0
      %1831 = vmatpush2.msra.mxu0 %v1625
      %1832 = vmatprep.subr.mxu0 0.0
      %1833 = vmatpush2.msra.mxu0 %v1624
      %1834 = vmatprep.subr.mxu0 0.0
      %1835 = vmatpush2.msra.mxu0 %v1623
      %1836 = vmatprep.subr.mxu0 0.0
      %1837 = vmatpush2.msra.mxu0 %v1622
      %1838 = vmatprep.mubr.f32.mxu0 %v1447
      %1839 = vmatmul.mubr.f32.gmra.mxu0 %v1446
      %v1840 = vpop.f32.mrf.mxu0
      %v1841 = vadd.f32 0.0, %v1840
      %v1842 = vpop.f32.mrf.mxu0
      %1843 = vmatprep.mubr.f32.mxu0 %v1452
      %1844 = vmatmul.mubr.f32.gmra.mxu0 %v1451
      %v1845 = vpop.f32.mrf.mxu0
      %v1846 = vadd.f32 0.0, %v1845
      %v1847 = vpop.f32.mrf.mxu0
      %1848 = vmatprep.mubr.f32.mxu0 %v1457
      %1849 = vmatmul.mubr.f32.gmra.mxu0 %v1456
      %v1850 = vpop.f32.mrf.mxu0
      %v1851 = vadd.f32 0.0, %v1850
      %v1852 = vpop.f32.mrf.mxu0
      %1853 = vmatprep.mubr.f32.mxu0 %v1462
      %1854 = vmatmul.mubr.f32.gmra.mxu0 %v1461
      %v1855 = vpop.f32.mrf.mxu0
      %v1856 = vadd.f32 0.0, %v1855
      %v1857 = vpop.f32.mrf.mxu0
      %1858 = vmatprep.mubr.f32.mxu0 %v1467
      %1859 = vmatmul.mubr.f32.gmra.mxu0 %v1466
      %v1860 = vpop.f32.mrf.mxu0
      %v1861 = vadd.f32 0.0, %v1860
      %v1862 = vpop.f32.mrf.mxu0
      %1863 = vmatprep.mubr.f32.mxu0 %v1472
      %1864 = vmatmul.mubr.f32.gmra.mxu0 %v1471
      %v1865 = vpop.f32.mrf.mxu0
      %v1866 = vadd.f32 0.0, %v1865
      %v1867 = vpop.f32.mrf.mxu0
      %1868 = vmatprep.mubr.f32.mxu0 %v1477
      %1869 = vmatmul.mubr.f32.gmra.mxu0 %v1476
      %v1870 = vpop.f32.mrf.mxu0
      %v1871 = vadd.f32 0.0, %v1870
      %v1872 = vpop.f32.mrf.mxu0
      %1873 = vmatprep.mubr.f32.mxu0 %v1482
      %1874 = vmatmul.mubr.f32.gmra.mxu0 %v1481
      %v1875 = vpop.f32.mrf.mxu0
      %v1876 = vadd.f32 0.0, %v1875
      %v1877 = vpop.f32.mrf.mxu0
      %1878 = vmatprep.mubr.f32.mxu0 %v1487
      %1879 = vmatmul.mubr.f32.gmra.mxu0 %v1486
      %v1880 = vpop.f32.mrf.mxu0
      %v1881 = vadd.f32 0.0, %v1880
      %v1882 = vpop.f32.mrf.mxu0
      %1883 = vmatprep.mubr.f32.mxu0 %v1492
      %1884 = vmatmul.mubr.f32.gmra.mxu0 %v1491
      %v1885 = vpop.f32.mrf.mxu0
      %v1886 = vadd.f32 0.0, %v1885
      %v1887 = vpop.f32.mrf.mxu0
      %1888 = vmatprep.mubr.f32.mxu0 %v1497
      %1889 = vmatmul.mubr.f32.gmra.mxu0 %v1496
      %v1890 = vpop.f32.mrf.mxu0
      %v1891 = vadd.f32 0.0, %v1890
      %v1892 = vpop.f32.mrf.mxu0
      %1893 = vmatprep.mubr.f32.mxu0 %v1502
      %1894 = vmatmul.mubr.f32.gmra.mxu0 %v1501
      %v1895 = vpop.f32.mrf.mxu0
      %v1896 = vadd.f32 0.0, %v1895
      %v1897 = vpop.f32.mrf.mxu0
      %1898 = vmatprep.mubr.f32.mxu0 %v1507
      %1899 = vmatmul.mubr.f32.gmra.mxu0 %v1506
      %v1900 = vpop.f32.mrf.mxu0
      %v1901 = vadd.f32 0.0, %v1900
      %v1902 = vpop.f32.mrf.mxu0
      %1903 = vmatprep.mubr.f32.mxu0 %v1512
      %1904 = vmatmul.mubr.f32.gmra.mxu0 %v1511
      %v1905 = vpop.f32.mrf.mxu0
      %v1906 = vadd.f32 0.0, %v1905
      %v1907 = vpop.f32.mrf.mxu0
      %1908 = vmatprep.mubr.f32.mxu0 %v1517
      %1909 = vmatmul.mubr.f32.gmra.mxu0 %v1516
      %v1910 = vpop.f32.mrf.mxu0
      %v1911 = vadd.f32 0.0, %v1910
      %v1912 = vpop.f32.mrf.mxu0
      %1913 = vmatprep.mubr.f32.mxu0 %v1522
      %1914 = vmatmul.mubr.f32.gmra.mxu0 %v1521
      %v1915 = vpop.f32.mrf.mxu0
      %v1916 = vadd.f32 0.0, %v1915
      %v1917 = vpop.f32.mrf.mxu0
      %1918 = vmatprep.mubr.f32.mxu0 %v1527
      %1919 = vmatmul.mubr.f32.gmra.mxu0 %v1526
      %v1920 = vpop.f32.mrf.mxu0
      %v1921 = vadd.f32 0.0, %v1920
      %v1922 = vpop.f32.mrf.mxu0
      %1923 = vmatprep.mubr.f32.mxu0 %v1532
      %1924 = vmatmul.mubr.f32.gmra.mxu0 %v1531
      %v1925 = vpop.f32.mrf.mxu0
      %v1926 = vadd.f32 0.0, %v1925
      %v1927 = vpop.f32.mrf.mxu0
      %1928 = vmatprep.mubr.f32.mxu0 %v1537
      %1929 = vmatmul.mubr.f32.gmra.mxu0 %v1536
      %v1930 = vpop.f32.mrf.mxu0
      %v1931 = vadd.f32 0.0, %v1930
      %v1932 = vpop.f32.mrf.mxu0
      %1933 = vmatprep.mubr.f32.mxu0 %v1542
      %1934 = vmatmul.mubr.f32.gmra.mxu0 %v1541
      %v1935 = vpop.f32.mrf.mxu0
      %v1936 = vadd.f32 0.0, %v1935
      %v1937 = vpop.f32.mrf.mxu0
      %1938 = vmatprep.mubr.f32.mxu0 %v1547
      %1939 = vmatmul.mubr.f32.gmra.mxu0 %v1546
      %v1940 = vpop.f32.mrf.mxu0
      %v1941 = vadd.f32 0.0, %v1940
      %v1942 = vpop.f32.mrf.mxu0
      %1943 = vmatprep.mubr.f32.mxu0 %v1552
      %1944 = vmatmul.mubr.f32.gmra.mxu0 %v1551
      %v1945 = vpop.f32.mrf.mxu0
      %v1946 = vadd.f32 0.0, %v1945
      %v1947 = vpop.f32.mrf.mxu0
      %1948 = vmatprep.mubr.f32.mxu0 %v1557
      %1949 = vmatmul.mubr.f32.gmra.mxu0 %v1556
      %v1950 = vpop.f32.mrf.mxu0
      %v1951 = vadd.f32 0.0, %v1950
      %v1952 = vpop.f32.mrf.mxu0
      %1953 = vmatprep.mubr.f32.mxu0 %v1562
      %1954 = vmatmul.mubr.f32.gmra.mxu0 %v1561
      %v1955 = vpop.f32.mrf.mxu0
      %v1956 = vadd.f32 0.0, %v1955
      %v1957 = vpop.f32.mrf.mxu0
      %1958 = vmatprep.mubr.f32.mxu0 %v1567
      %1959 = vmatmul.mubr.f32.gmra.mxu0 %v1566
      %v1960 = vpop.f32.mrf.mxu0
      %v1961 = vadd.f32 0.0, %v1960
      %v1962 = vpop.f32.mrf.mxu0
      %1963 = vmatprep.mubr.f32.mxu0 %v1572
      %1964 = vmatmul.mubr.f32.gmra.mxu0 %v1571
      %v1965 = vpop.f32.mrf.mxu0
      %v1966 = vadd.f32 0.0, %v1965
      %v1967 = vpop.f32.mrf.mxu0
      %1968 = vmatprep.mubr.f32.mxu0 %v1577
      %1969 = vmatmul.mubr.f32.gmra.mxu0 %v1576
      %v1970 = vpop.f32.mrf.mxu0
      %v1971 = vadd.f32 0.0, %v1970
      %v1972 = vpop.f32.mrf.mxu0
      %1973 = vmatprep.mubr.f32.mxu0 %v1582
      %1974 = vmatmul.mubr.f32.gmra.mxu0 %v1581
      %v1975 = vpop.f32.mrf.mxu0
      %v1976 = vadd.f32 0.0, %v1975
      %v1977 = vpop.f32.mrf.mxu0
      %1978 = vmatprep.mubr.f32.mxu0 %v1587
      %1979 = vmatmul.mubr.f32.gmra.mxu0 %v1586
      %v1980 = vpop.f32.mrf.mxu0
      %v1981 = vadd.f32 0.0, %v1980
      %v1982 = vpop.f32.mrf.mxu0
      %1983 = vmatprep.mubr.f32.mxu0 %v1592
      %1984 = vmatmul.mubr.f32.gmra.mxu0 %v1591
      %v1985 = vpop.f32.mrf.mxu0
      %v1986 = vadd.f32 0.0, %v1985
      %v1987 = vpop.f32.mrf.mxu0
      %1988 = vmatprep.mubr.f32.mxu0 %v1597
      %1989 = vmatmul.mubr.f32.gmra.mxu0 %v1596
      %v1990 = vpop.f32.mrf.mxu0
      %v1991 = vadd.f32 0.0, %v1990
      %v1992 = vpop.f32.mrf.mxu0
      %1993 = vmatprep.mubr.f32.mxu0 %v1602
      %1994 = vmatmul.mubr.f32.gmra.mxu0 %v1601
      %v1995 = vpop.f32.mrf.mxu0
      %v1996 = vadd.f32 0.0, %v1995
      %v1997 = vpop.f32.mrf.mxu0
      %1998 = vdwg.mxu0
      %1999 = vmatprep.subr.mxu0 0.0
      %2000 = vmatpush1.msra.mxu0 %v1653
      %2001 = vmatprep.subr.mxu0 0.0
      %2002 = vmatpush1.msra.mxu0 %v1652
      %2003 = vmatprep.subr.mxu0 0.0
      %2004 = vmatpush1.msra.mxu0 %v1651
      %2005 = vmatprep.subr.mxu0 0.0
      %2006 = vmatpush1.msra.mxu0 %v1650
      %2007 = vmatprep.subr.mxu0 0.0
      %2008 = vmatpush1.msra.mxu0 %v1649
      %2009 = vmatprep.subr.mxu0 0.0
      %2010 = vmatpush1.msra.mxu0 %v1648
      %2011 = vmatprep.subr.mxu0 0.0
      %2012 = vmatpush1.msra.mxu0 %v1647
      %2013 = vmatprep.subr.mxu0 0.0
      %2014 = vmatpush1.msra.mxu0 %v1646
      %2015 = vmatprep.subr.mxu0 0.0
      %2016 = vmatpush1.msra.mxu0 %v1645
      %2017 = vmatprep.subr.mxu0 0.0
      %2018 = vmatpush1.msra.mxu0 %v1644
      %2019 = vmatprep.subr.mxu0 0.0
      %2020 = vmatpush1.msra.mxu0 %v1643
      %2021 = vmatprep.subr.mxu0 0.0
      %2022 = vmatpush1.msra.mxu0 %v1642
      %2023 = vmatprep.subr.mxu0 0.0
      %2024 = vmatpush1.msra.mxu0 %v1641
      %2025 = vmatprep.subr.mxu0 0.0
      %2026 = vmatpush1.msra.mxu0 %v1640
      %2027 = vmatprep.subr.mxu0 0.0
      %2028 = vmatpush1.msra.mxu0 %v1639
      %2029 = vmatprep.subr.mxu0 0.0
      %2030 = vmatpush1.msra.mxu0 %v1638
      %2031 = vmatprep.subr.mxu0 0.0
      %2032 = vmatpush2.msra.mxu0 %v1669
      %2033 = vmatprep.subr.mxu0 0.0
      %2034 = vmatpush2.msra.mxu0 %v1668
      %2035 = vmatprep.subr.mxu0 0.0
      %2036 = vmatpush2.msra.mxu0 %v1667
      %2037 = vmatprep.subr.mxu0 0.0
      %2038 = vmatpush2.msra.mxu0 %v1666
      %2039 = vmatprep.subr.mxu0 0.0
      %2040 = vmatpush2.msra.mxu0 %v1665
      %2041 = vmatprep.subr.mxu0 0.0
      %2042 = vmatpush2.msra.mxu0 %v1664
      %2043 = vmatprep.subr.mxu0 0.0
      %2044 = vmatpush2.msra.mxu0 %v1663
      %2045 = vmatprep.subr.mxu0 0.0
      %2046 = vmatpush2.msra.mxu0 %v1662
      %2047 = vmatprep.subr.mxu0 0.0
      %2048 = vmatpush2.msra.mxu0 %v1661
      %2049 = vmatprep.subr.mxu0 0.0
      %2050 = vmatpush2.msra.mxu0 %v1660
      %2051 = vmatprep.subr.mxu0 0.0
      %2052 = vmatpush2.msra.mxu0 %v1659
      %2053 = vmatprep.subr.mxu0 0.0
      %2054 = vmatpush2.msra.mxu0 %v1658
      %2055 = vmatprep.subr.mxu0 0.0
      %2056 = vmatpush2.msra.mxu0 %v1657
      %2057 = vmatprep.subr.mxu0 0.0
      %2058 = vmatpush2.msra.mxu0 %v1656
      %2059 = vmatprep.subr.mxu0 0.0
      %2060 = vmatpush2.msra.mxu0 %v1655
      %2061 = vmatprep.subr.mxu0 0.0
      %2062 = vmatpush2.msra.mxu0 %v1654
      %2063 = vmatprep.mubr.f32.mxu0 %v1449
      %2064 = vmatmul.mubr.f32.gmra.mxu0 %v1448
      %v2065 = vpop.f32.mrf.mxu0
      %v2066 = vadd.f32 %v1841, %v2065
      %v2067 = vpop.f32.mrf.mxu0
      %2068 = vmatprep.mubr.f32.mxu0 %v1454
      %2069 = vmatmul.mubr.f32.gmra.mxu0 %v1453
      %v2070 = vpop.f32.mrf.mxu0
      %v2071 = vadd.f32 %v1846, %v2070
      %v2072 = vpop.f32.mrf.mxu0
      %2073 = vmatprep.mubr.f32.mxu0 %v1459
      %2074 = vmatmul.mubr.f32.gmra.mxu0 %v1458
      %v2075 = vpop.f32.mrf.mxu0
      %v2076 = vadd.f32 %v1851, %v2075
      %v2077 = vpop.f32.mrf.mxu0
      %2078 = vmatprep.mubr.f32.mxu0 %v1464
      %2079 = vmatmul.mubr.f32.gmra.mxu0 %v1463
      %v2080 = vpop.f32.mrf.mxu0
      %v2081 = vadd.f32 %v1856, %v2080
      %v2082 = vpop.f32.mrf.mxu0
      %2083 = vmatprep.mubr.f32.mxu0 %v1469
      %2084 = vmatmul.mubr.f32.gmra.mxu0 %v1468
      %v2085 = vpop.f32.mrf.mxu0
      %v2086 = vadd.f32 %v1861, %v2085
      %v2087 = vpop.f32.mrf.mxu0
      %2088 = vmatprep.mubr.f32.mxu0 %v1474
      %2089 = vmatmul.mubr.f32.gmra.mxu0 %v1473
      %v2090 = vpop.f32.mrf.mxu0
      %v2091 = vadd.f32 %v1866, %v2090
      %v2092 = vpop.f32.mrf.mxu0
      %2093 = vmatprep.mubr.f32.mxu0 %v1479
      %2094 = vmatmul.mubr.f32.gmra.mxu0 %v1478
      %v2095 = vpop.f32.mrf.mxu0
      %v2096 = vadd.f32 %v1871, %v2095
      %v2097 = vpop.f32.mrf.mxu0
      %2098 = vmatprep.mubr.f32.mxu0 %v1484
      %2099 = vmatmul.mubr.f32.gmra.mxu0 %v1483
      %v2100 = vpop.f32.mrf.mxu0
      %v2101 = vadd.f32 %v1876, %v2100
      %v2102 = vpop.f32.mrf.mxu0
      %2103 = vmatprep.mubr.f32.mxu0 %v1489
      %2104 = vmatmul.mubr.f32.gmra.mxu0 %v1488
      %v2105 = vpop.f32.mrf.mxu0
      %v2106 = vadd.f32 %v1881, %v2105
      %v2107 = vpop.f32.mrf.mxu0
      %2108 = vmatprep.mubr.f32.mxu0 %v1494
      %2109 = vmatmul.mubr.f32.gmra.mxu0 %v1493
      %v2110 = vpop.f32.mrf.mxu0
      %v2111 = vadd.f32 %v1886, %v2110
      %v2112 = vpop.f32.mrf.mxu0
      %2113 = vmatprep.mubr.f32.mxu0 %v1499
      %2114 = vmatmul.mubr.f32.gmra.mxu0 %v1498
      %v2115 = vpop.f32.mrf.mxu0
      %v2116 = vadd.f32 %v1891, %v2115
      %v2117 = vpop.f32.mrf.mxu0
      %2118 = vmatprep.mubr.f32.mxu0 %v1504
      %2119 = vmatmul.mubr.f32.gmra.mxu0 %v1503
      %v2120 = vpop.f32.mrf.mxu0
      %v2121 = vadd.f32 %v1896, %v2120
      %v2122 = vpop.f32.mrf.mxu0
      %2123 = vmatprep.mubr.f32.mxu0 %v1509
      %2124 = vmatmul.mubr.f32.gmra.mxu0 %v1508
      %v2125 = vpop.f32.mrf.mxu0
      %v2126 = vadd.f32 %v1901, %v2125
      %v2127 = vpop.f32.mrf.mxu0
      %2128 = vmatprep.mubr.f32.mxu0 %v1514
      %2129 = vmatmul.mubr.f32.gmra.mxu0 %v1513
      %v2130 = vpop.f32.mrf.mxu0
      %v2131 = vadd.f32 %v1906, %v2130
      %v2132 = vpop.f32.mrf.mxu0
      %2133 = vmatprep.mubr.f32.mxu0 %v1519
      %2134 = vmatmul.mubr.f32.gmra.mxu0 %v1518
      %v2135 = vpop.f32.mrf.mxu0
      %v2136 = vadd.f32 %v1911, %v2135
      %v2137 = vpop.f32.mrf.mxu0
      %2138 = vmatprep.mubr.f32.mxu0 %v1524
      %2139 = vmatmul.mubr.f32.gmra.mxu0 %v1523
      %v2140 = vpop.f32.mrf.mxu0
      %v2141 = vadd.f32 %v1916, %v2140
      %v2142 = vpop.f32.mrf.mxu0
      %2143 = vmatprep.mubr.f32.mxu0 %v1529
      %2144 = vmatmul.mubr.f32.gmra.mxu0 %v1528
      %v2145 = vpop.f32.mrf.mxu0
      %v2146 = vadd.f32 %v1921, %v2145
      %v2147 = vpop.f32.mrf.mxu0
      %2148 = vmatprep.mubr.f32.mxu0 %v1534
      %2149 = vmatmul.mubr.f32.gmra.mxu0 %v1533
      %v2150 = vpop.f32.mrf.mxu0
      %v2151 = vadd.f32 %v1926, %v2150
      %v2152 = vpop.f32.mrf.mxu0
      %2153 = vmatprep.mubr.f32.mxu0 %v1539
      %2154 = vmatmul.mubr.f32.gmra.mxu0 %v1538
      %v2155 = vpop.f32.mrf.mxu0
      %v2156 = vadd.f32 %v1931, %v2155
      %v2157 = vpop.f32.mrf.mxu0
      %2158 = vmatprep.mubr.f32.mxu0 %v1544
      %2159 = vmatmul.mubr.f32.gmra.mxu0 %v1543
      %v2160 = vpop.f32.mrf.mxu0
      %v2161 = vadd.f32 %v1936, %v2160
      %v2162 = vpop.f32.mrf.mxu0
      %2163 = vmatprep.mubr.f32.mxu0 %v1549
      %2164 = vmatmul.mubr.f32.gmra.mxu0 %v1548
      %v2165 = vpop.f32.mrf.mxu0
      %v2166 = vadd.f32 %v1941, %v2165
      %v2167 = vpop.f32.mrf.mxu0
      %2168 = vmatprep.mubr.f32.mxu0 %v1554
      %2169 = vmatmul.mubr.f32.gmra.mxu0 %v1553
      %v2170 = vpop.f32.mrf.mxu0
      %v2171 = vadd.f32 %v1946, %v2170
      %v2172 = vpop.f32.mrf.mxu0
      %2173 = vmatprep.mubr.f32.mxu0 %v1559
      %2174 = vmatmul.mubr.f32.gmra.mxu0 %v1558
      %v2175 = vpop.f32.mrf.mxu0
      %v2176 = vadd.f32 %v1951, %v2175
      %v2177 = vpop.f32.mrf.mxu0
      %2178 = vmatprep.mubr.f32.mxu0 %v1564
      %2179 = vmatmul.mubr.f32.gmra.mxu0 %v1563
      %v2180 = vpop.f32.mrf.mxu0
      %v2181 = vadd.f32 %v1956, %v2180
      %v2182 = vpop.f32.mrf.mxu0
      %2183 = vmatprep.mubr.f32.mxu0 %v1569
      %2184 = vmatmul.mubr.f32.gmra.mxu0 %v1568
      %v2185 = vpop.f32.mrf.mxu0
      %v2186 = vadd.f32 %v1961, %v2185
      %v2187 = vpop.f32.mrf.mxu0
      %2188 = vmatprep.mubr.f32.mxu0 %v1574
      %2189 = vmatmul.mubr.f32.gmra.mxu0 %v1573
      %v2190 = vpop.f32.mrf.mxu0
      %v2191 = vadd.f32 %v1966, %v2190
      %v2192 = vpop.f32.mrf.mxu0
      %2193 = vmatprep.mubr.f32.mxu0 %v1579
      %2194 = vmatmul.mubr.f32.gmra.mxu0 %v1578
      %v2195 = vpop.f32.mrf.mxu0
      %v2196 = vadd.f32 %v1971, %v2195
      %v2197 = vpop.f32.mrf.mxu0
      %2198 = vmatprep.mubr.f32.mxu0 %v1584
      %2199 = vmatmul.mubr.f32.gmra.mxu0 %v1583
      %v2200 = vpop.f32.mrf.mxu0
      %v2201 = vadd.f32 %v1976, %v2200
      %v2202 = vpop.f32.mrf.mxu0
      %2203 = vmatprep.mubr.f32.mxu0 %v1589
      %2204 = vmatmul.mubr.f32.gmra.mxu0 %v1588
      %v2205 = vpop.f32.mrf.mxu0
      %v2206 = vadd.f32 %v1981, %v2205
      %v2207 = vpop.f32.mrf.mxu0
      %2208 = vmatprep.mubr.f32.mxu0 %v1594
      %2209 = vmatmul.mubr.f32.gmra.mxu0 %v1593
      %v2210 = vpop.f32.mrf.mxu0
      %v2211 = vadd.f32 %v1986, %v2210
      %v2212 = vpop.f32.mrf.mxu0
      %2213 = vmatprep.mubr.f32.mxu0 %v1599
      %2214 = vmatmul.mubr.f32.gmra.mxu0 %v1598
      %v2215 = vpop.f32.mrf.mxu0
      %v2216 = vadd.f32 %v1991, %v2215
      %v2217 = vpop.f32.mrf.mxu0
      %2218 = vmatprep.mubr.f32.mxu0 %v1604
      %2219 = vmatmul.mubr.f32.gmra.mxu0 %v1603
      %v2220 = vpop.f32.mrf.mxu0
      %v2221 = vadd.f32 %v1996, %v2220
      %v2222 = vpop.f32.mrf.mxu0
      %2223 = vdwg.mxu0
      %2224 = vmatprep.subr.mxu0 0.0
      %2225 = vmatpush1.msra.mxu0 0.0
      %2226 = vmatprep.subr.mxu0 0.0
      %2227 = vmatpush1.msra.mxu0 0.0
      %2228 = vmatprep.subr.mxu0 0.0
      %2229 = vmatpush1.msra.mxu0 0.0
      %2230 = vmatprep.subr.mxu0 0.0
      %2231 = vmatpush1.msra.mxu0 0.0
      %2232 = vmatprep.subr.mxu0 0.0
      %2233 = vmatpush1.msra.mxu0 0.0
      %2234 = vmatprep.subr.mxu0 0.0
      %2235 = vmatpush1.msra.mxu0 0.0
      %2236 = vmatprep.subr.mxu0 0.0
      %2237 = vmatpush1.msra.mxu0 0.0
      %2238 = vmatprep.subr.mxu0 0.0
      %2239 = vmatpush1.msra.mxu0 0.0
      %2240 = vmatprep.subr.mxu0 0.0
      %2241 = vmatpush1.msra.mxu0 %v1677
      %2242 = vmatprep.subr.mxu0 0.0
      %2243 = vmatpush1.msra.mxu0 %v1676
      %2244 = vmatprep.subr.mxu0 0.0
      %2245 = vmatpush1.msra.mxu0 %v1675
      %2246 = vmatprep.subr.mxu0 0.0
      %2247 = vmatpush1.msra.mxu0 %v1674
      %2248 = vmatprep.subr.mxu0 0.0
      %2249 = vmatpush1.msra.mxu0 %v1673
      %2250 = vmatprep.subr.mxu0 0.0
      %2251 = vmatpush1.msra.mxu0 %v1672
      %2252 = vmatprep.subr.mxu0 0.0
      %2253 = vmatpush1.msra.mxu0 %v1671
      %2254 = vmatprep.subr.mxu0 0.0
      %2255 = vmatpush1.msra.mxu0 %v1670
      %2256 = vmatprep.subr.mxu0 0.0
      %2257 = vmatpush2.msra.mxu0 0.0
      %2258 = vmatprep.subr.mxu0 0.0
      %2259 = vmatpush2.msra.mxu0 0.0
      %2260 = vmatprep.subr.mxu0 0.0
      %2261 = vmatpush2.msra.mxu0 0.0
      %2262 = vmatprep.subr.mxu0 0.0
      %2263 = vmatpush2.msra.mxu0 0.0
      %2264 = vmatprep.subr.mxu0 0.0
      %2265 = vmatpush2.msra.mxu0 0.0
      %2266 = vmatprep.subr.mxu0 0.0
      %2267 = vmatpush2.msra.mxu0 0.0
      %2268 = vmatprep.subr.mxu0 0.0
      %2269 = vmatpush2.msra.mxu0 0.0
      %2270 = vmatprep.subr.mxu0 0.0
      %2271 = vmatpush2.msra.mxu0 0.0
      %2272 = vmatprep.subr.mxu0 0.0
      %2273 = vmatpush2.msra.mxu0 0.0
      %2274 = vmatprep.subr.mxu0 0.0
      %2275 = vmatpush2.msra.mxu0 0.0
      %2276 = vmatprep.subr.mxu0 0.0
      %2277 = vmatpush2.msra.mxu0 0.0
      %2278 = vmatprep.subr.mxu0 0.0
      %2279 = vmatpush2.msra.mxu0 0.0
      %2280 = vmatprep.subr.mxu0 0.0
      %2281 = vmatpush2.msra.mxu0 0.0
      %2282 = vmatprep.subr.mxu0 0.0
      %2283 = vmatpush2.msra.mxu0 0.0
      %2284 = vmatprep.subr.mxu0 0.0
      %2285 = vmatpush2.msra.mxu0 0.0
      %2286 = vmatprep.subr.mxu0 0.0
      %2287 = vmatpush2.msra.mxu0 0.0
      %2288 = vmatprep.mubr.f32.mxu0 0.0
      %2289 = vmatmul.mubr.f32.gmra.mxu0 %v1679
      %v2290 = vpop.f32.mrf.mxu0
      %v2291 = vadd.f32 %v2066, %v2290
      %v2292 = vpop.f32.mrf.mxu0
      %2293 = vmatprep.mubr.f32.mxu0 0.0
      %2294 = vmatmul.mubr.f32.gmra.mxu0 %v1682
      %v2295 = vpop.f32.mrf.mxu0
      %v2296 = vadd.f32 %v2071, %v2295
      %v2297 = vpop.f32.mrf.mxu0
      %2298 = vmatprep.mubr.f32.mxu0 0.0
      %2299 = vmatmul.mubr.f32.gmra.mxu0 %v1685
      %v2300 = vpop.f32.mrf.mxu0
      %v2301 = vadd.f32 %v2076, %v2300
      %v2302 = vpop.f32.mrf.mxu0
      %2303 = vmatprep.mubr.f32.mxu0 0.0
      %2304 = vmatmul.mubr.f32.gmra.mxu0 %v1688
      %v2305 = vpop.f32.mrf.mxu0
      %v2306 = vadd.f32 %v2081, %v2305
      %v2307 = vpop.f32.mrf.mxu0
      %2308 = vmatprep.mubr.f32.mxu0 0.0
      %2309 = vmatmul.mubr.f32.gmra.mxu0 %v1691
      %v2310 = vpop.f32.mrf.mxu0
      %v2311 = vadd.f32 %v2086, %v2310
      %v2312 = vpop.f32.mrf.mxu0
      %2313 = vmatprep.mubr.f32.mxu0 0.0
      %2314 = vmatmul.mubr.f32.gmra.mxu0 %v1694
      %v2315 = vpop.f32.mrf.mxu0
      %v2316 = vadd.f32 %v2091, %v2315
      %v2317 = vpop.f32.mrf.mxu0
      %2318 = vmatprep.mubr.f32.mxu0 0.0
      %2319 = vmatmul.mubr.f32.gmra.mxu0 %v1697
      %v2320 = vpop.f32.mrf.mxu0
      %v2321 = vadd.f32 %v2096, %v2320
      %v2322 = vpop.f32.mrf.mxu0
      %2323 = vmatprep.mubr.f32.mxu0 0.0
      %2324 = vmatmul.mubr.f32.gmra.mxu0 %v1700
      %v2325 = vpop.f32.mrf.mxu0
      %v2326 = vadd.f32 %v2101, %v2325
      %v2327 = vpop.f32.mrf.mxu0
      %2328 = vmatprep.mubr.f32.mxu0 0.0
      %2329 = vmatmul.mubr.f32.gmra.mxu0 %v1703
      %v2330 = vpop.f32.mrf.mxu0
      %v2331 = vadd.f32 %v2106, %v2330
      %v2332 = vpop.f32.mrf.mxu0
      %2333 = vmatprep.mubr.f32.mxu0 0.0
      %2334 = vmatmul.mubr.f32.gmra.mxu0 %v1706
      %v2335 = vpop.f32.mrf.mxu0
      %v2336 = vadd.f32 %v2111, %v2335
      %v2337 = vpop.f32.mrf.mxu0
      %2338 = vmatprep.mubr.f32.mxu0 0.0
      %2339 = vmatmul.mubr.f32.gmra.mxu0 %v1709
      %v2340 = vpop.f32.mrf.mxu0
      %v2341 = vadd.f32 %v2116, %v2340
      %v2342 = vpop.f32.mrf.mxu0
      %2343 = vmatprep.mubr.f32.mxu0 0.0
      %2344 = vmatmul.mubr.f32.gmra.mxu0 %v1712
      %v2345 = vpop.f32.mrf.mxu0
      %v2346 = vadd.f32 %v2121, %v2345
      %v2347 = vpop.f32.mrf.mxu0
      %2348 = vmatprep.mubr.f32.mxu0 0.0
      %2349 = vmatmul.mubr.f32.gmra.mxu0 %v1715
      %v2350 = vpop.f32.mrf.mxu0
      %v2351 = vadd.f32 %v2126, %v2350
      %v2352 = vpop.f32.mrf.mxu0
      %2353 = vmatprep.mubr.f32.mxu0 0.0
      %2354 = vmatmul.mubr.f32.gmra.mxu0 %v1718
      %v2355 = vpop.f32.mrf.mxu0
      %v2356 = vadd.f32 %v2131, %v2355
      %v2357 = vpop.f32.mrf.mxu0
      %2358 = vmatprep.mubr.f32.mxu0 0.0
      %2359 = vmatmul.mubr.f32.gmra.mxu0 %v1721
      %v2360 = vpop.f32.mrf.mxu0
      %v2361 = vadd.f32 %v2136, %v2360
      %v2362 = vpop.f32.mrf.mxu0
      %2363 = vmatprep.mubr.f32.mxu0 0.0
      %2364 = vmatmul.mubr.f32.gmra.mxu0 %v1724
      %v2365 = vpop.f32.mrf.mxu0
      %v2366 = vadd.f32 %v2141, %v2365
      %v2367 = vpop.f32.mrf.mxu0
      %2368 = vmatprep.mubr.f32.mxu0 0.0
      %2369 = vmatmul.mubr.f32.gmra.mxu0 %v1727
      %v2370 = vpop.f32.mrf.mxu0
      %v2371 = vadd.f32 %v2146, %v2370
      %v2372 = vpop.f32.mrf.mxu0
      %2373 = vmatprep.mubr.f32.mxu0 0.0
      %2374 = vmatmul.mubr.f32.gmra.mxu0 %v1730
      %v2375 = vpop.f32.mrf.mxu0
      %v2376 = vadd.f32 %v2151, %v2375
      %v2377 = vpop.f32.mrf.mxu0
      %2378 = vmatprep.mubr.f32.mxu0 0.0
      %2379 = vmatmul.mubr.f32.gmra.mxu0 %v1733
      %v2380 = vpop.f32.mrf.mxu0
      %v2381 = vadd.f32 %v2156, %v2380
      %v2382 = vpop.f32.mrf.mxu0
      %2383 = vmatprep.mubr.f32.mxu0 0.0
      %2384 = vmatmul.mubr.f32.gmra.mxu0 %v1736
      %v2385 = vpop.f32.mrf.mxu0
      %v2386 = vadd.f32 %v2161, %v2385
      %v2387 = vpop.f32.mrf.mxu0
      %2388 = vmatprep.mubr.f32.mxu0 0.0
      %2389 = vmatmul.mubr.f32.gmra.mxu0 %v1739
      %v2390 = vpop.f32.mrf.mxu0
      %v2391 = vadd.f32 %v2166, %v2390
      %v2392 = vpop.f32.mrf.mxu0
      %2393 = vmatprep.mubr.f32.mxu0 0.0
      %2394 = vmatmul.mubr.f32.gmra.mxu0 %v1742
      %v2395 = vpop.f32.mrf.mxu0
      %v2396 = vadd.f32 %v2171, %v2395
      %v2397 = vpop.f32.mrf.mxu0
      %2398 = vmatprep.mubr.f32.mxu0 0.0
      %2399 = vmatmul.mubr.f32.gmra.mxu0 %v1745
      %v2400 = vpop.f32.mrf.mxu0
      %v2401 = vadd.f32 %v2176, %v2400
      %v2402 = vpop.f32.mrf.mxu0
      %2403 = vmatprep.mubr.f32.mxu0 0.0
      %2404 = vmatmul.mubr.f32.gmra.mxu0 %v1748
      %v2405 = vpop.f32.mrf.mxu0
      %v2406 = vadd.f32 %v2181, %v2405
      %v2407 = vpop.f32.mrf.mxu0
      %2408 = vmatprep.mubr.f32.mxu0 0.0
      %2409 = vmatmul.mubr.f32.gmra.mxu0 %v1751
      %v2410 = vpop.f32.mrf.mxu0
      %v2411 = vadd.f32 %v2186, %v2410
      %v2412 = vpop.f32.mrf.mxu0
      %2413 = vmatprep.mubr.f32.mxu0 0.0
      %2414 = vmatmul.mubr.f32.gmra.mxu0 %v1754
      %v2415 = vpop.f32.mrf.mxu0
      %v2416 = vadd.f32 %v2191, %v2415
      %v2417 = vpop.f32.mrf.mxu0
      %2418 = vmatprep.mubr.f32.mxu0 0.0
      %2419 = vmatmul.mubr.f32.gmra.mxu0 %v1757
      %v2420 = vpop.f32.mrf.mxu0
      %v2421 = vadd.f32 %v2196, %v2420
      %v2422 = vpop.f32.mrf.mxu0
      %2423 = vmatprep.mubr.f32.mxu0 0.0
      %2424 = vmatmul.mubr.f32.gmra.mxu0 %v1760
      %v2425 = vpop.f32.mrf.mxu0
      %v2426 = vadd.f32 %v2201, %v2425
      %v2427 = vpop.f32.mrf.mxu0
      %2428 = vmatprep.mubr.f32.mxu0 0.0
      %2429 = vmatmul.mubr.f32.gmra.mxu0 %v1763
      %v2430 = vpop.f32.mrf.mxu0
      %v2431 = vadd.f32 %v2206, %v2430
      %v2432 = vpop.f32.mrf.mxu0
      %2433 = vmatprep.mubr.f32.mxu0 0.0
      %2434 = vmatmul.mubr.f32.gmra.mxu0 %v1766
      %v2435 = vpop.f32.mrf.mxu0
      %v2436 = vadd.f32 %v2211, %v2435
      %v2437 = vpop.f32.mrf.mxu0
      %2438 = vmatprep.mubr.f32.mxu0 0.0
      %2439 = vmatmul.mubr.f32.gmra.mxu0 %v1769
      %v2440 = vpop.f32.mrf.mxu0
      %v2441 = vadd.f32 %v2216, %v2440
      %v2442 = vpop.f32.mrf.mxu0
      %2443 = vmatprep.mubr.f32.mxu0 0.0
      %2444 = vmatmul.mubr.f32.gmra.mxu0 %v1772
      %v2445 = vpop.f32.mrf.mxu0
      %v2446 = vadd.f32 %v2221, %v2445
      %v2447 = vpop.f32.mrf.mxu0
      %2448 = vdwg.mxu0
      %v2449 = vmax.f32 %v2291, 0.0
      %v2450 = vmax.f32 %v2296, 0.0
      %v2451 = vmax.f32 %v2301, 0.0
      %v2452 = vmax.f32 %v2306, 0.0
      %v2453 = vmax.f32 %v2311, 0.0
      %v2454 = vmax.f32 %v2316, 0.0
      %v2455 = vmax.f32 %v2321, 0.0
      %v2456 = vmax.f32 %v2326, 0.0
      %v2457 = vmax.f32 %v2331, 0.0
      %v2458 = vmax.f32 %v2336, 0.0
      %v2459 = vmax.f32 %v2341, 0.0
      %v2460 = vmax.f32 %v2346, 0.0
      %v2461 = vmax.f32 %v2351, 0.0
      %v2462 = vmax.f32 %v2356, 0.0
      %v2463 = vmax.f32 %v2361, 0.0
      %v2464 = vmax.f32 %v2366, 0.0
      %v2465 = vmax.f32 %v2371, 0.0
      %v2466 = vmax.f32 %v2376, 0.0
      %v2467 = vmax.f32 %v2381, 0.0
      %v2468 = vmax.f32 %v2386, 0.0
      %v2469 = vmax.f32 %v2391, 0.0
      %v2470 = vmax.f32 %v2396, 0.0
      %v2471 = vmax.f32 %v2401, 0.0
      %v2472 = vmax.f32 %v2406, 0.0
      %v2473 = vmax.f32 %v2411, 0.0
      %v2474 = vmax.f32 %v2416, 0.0
      %v2475 = vmax.f32 %v2421, 0.0
      %v2476 = vmax.f32 %v2426, 0.0
      %v2477 = vmax.f32 %v2431, 0.0
      %v2478 = vmax.f32 %v2436, 0.0
      %v2479 = vmax.f32 %v2441, 0.0
      %v2480 = vmax.f32 %v2446, 0.0
      %2481 = vst.msk [vmem:[%s323 + $0x1] sm:$0xff] %vm245, %v2449
      %2482 = vst.msk [vmem:[%s323 + $0x9] sm:$0xff] %vm245, %v2450
      %2483 = vst.msk [vmem:[%s323 + $0x19] sm:$0xff] %vm245, %v2451
      %2484 = vst.msk [vmem:[%s323 + $0x21] sm:$0xff] %vm245, %v2452
      %2485 = vst.msk [vmem:[%s323 + $0x31] sm:$0xff] %vm245, %v2453
      %2486 = vst.msk [vmem:[%s323 + $0x39] sm:$0xff] %vm245, %v2454
      %2487 = vst.msk [vmem:[%s323 + $0x49] sm:$0xff] %vm245, %v2455
      %2488 = vst.msk [vmem:[%s323 + $0x51] sm:$0xff] %vm245, %v2456
      %2489 = vst.msk [vmem:[%s323 + $0x61] sm:$0xff] %vm245, %v2457
      %2490 = vst.msk [vmem:[%s323 + $0x69] sm:$0xff] %vm245, %v2458
      %2491 = vst.msk [vmem:[%s323 + $0x79] sm:$0xff] %vm245, %v2459
      %2492 = vst.msk [vmem:[%s323 + $0x81] sm:$0xff] %vm245, %v2460
      %2493 = vst.msk [vmem:[%s323 + $0x91] sm:$0xff] %vm245, %v2461
      %2494 = vst.msk [vmem:[%s323 + $0x99] sm:$0xff] %vm245, %v2462
      %2495 = vst.msk [vmem:[%s323 + $0xa9] sm:$0xff] %vm245, %v2463
      %2496 = vst.msk [vmem:[%s323 + $0xb1] sm:$0xff] %vm245, %v2464
      %2497 = vst.msk [vmem:[%s323 + $0xc1] sm:$0xff] %vm245, %v2465
      %2498 = vst.msk [vmem:[%s323 + $0xc9] sm:$0xff] %vm245, %v2466
      %2499 = vst.msk [vmem:[%s323 + $0xd9] sm:$0xff] %vm245, %v2467
      %2500 = vst.msk [vmem:[%s323 + $0xe1] sm:$0xff] %vm245, %v2468
      %2501 = vst.msk [vmem:[%s323 + $0xf1] sm:$0xff] %vm245, %v2469
      %2502 = vst.msk [vmem:[%s323 + $0xf9] sm:$0xff] %vm245, %v2470
      %2503 = vst.msk [vmem:[%s323 + $0x109] sm:$0xff] %vm245, %v2471
      %2504 = vst.msk [vmem:[%s323 + $0x111] sm:$0xff] %vm245, %v2472
      %2505 = vst.msk [vmem:[%s323 + $0x121] sm:$0xff] %vm245, %v2473
      %2506 = vst.msk [vmem:[%s323 + $0x129] sm:$0xff] %vm245, %v2474
      %2507 = vst.msk [vmem:[%s323 + $0x139] sm:$0xff] %vm245, %v2475
      %2508 = vst.msk [vmem:[%s323 + $0x141] sm:$0xff] %vm245, %v2476
      %2509 = vst.msk [vmem:[%s323 + $0x151] sm:$0xff] %vm245, %v2477
      %2510 = vst.msk [vmem:[%s323 + $0x159] sm:$0xff] %vm245, %v2478
      %2511 = vst.msk [vmem:[%s323 + $0x169] sm:$0xff] %vm245, %v2479
      %2512 = vst.msk [vmem:[%s323 + $0x171] sm:$0xff] %vm245, %v2480
      %v2513 = vld [vmem:[#allocation2] sm:$0xff]
      %v2514 = vld [vmem:[#allocation2 + $0x8] sm:$0xff]
      %v2515 = vld [vmem:[#allocation2 + $0x18] sm:$0xff]
      %v2516 = vld [vmem:[#allocation2 + $0x20] sm:$0xff]
      %v2517 = vld [vmem:[#allocation2 + $0x30] sm:$0xff]
      %v2518 = vld [vmem:[#allocation2 + $0x38] sm:$0xff]
      %v2519 = vld [vmem:[#allocation2 + $0x48] sm:$0xff]
      %v2520 = vld [vmem:[#allocation2 + $0x50] sm:$0xff]
      %v2521 = vld [vmem:[#allocation2 + $0x60] sm:$0xff]
      %v2522 = vld [vmem:[#allocation2 + $0x68] sm:$0xff]
      %v2523 = vld [vmem:[#allocation2 + $0x78] sm:$0xff]
      %v2524 = vld [vmem:[#allocation2 + $0x80] sm:$0xff]
      %v2525 = vld [vmem:[#allocation2 + $0x90] sm:$0xff]
      %v2526 = vld [vmem:[#allocation2 + $0x98] sm:$0xff]
      %v2527 = vld [vmem:[#allocation2 + $0xa8] sm:$0xff]
      %v2528 = vld [vmem:[#allocation2 + $0xb0] sm:$0xff]
      %v2529 = vld [vmem:[#allocation2 + $0xc0] sm:$0xff]
      %v2530 = vld [vmem:[#allocation2 + $0xc8] sm:$0xff]
      %v2531 = vld [vmem:[#allocation2 + $0xd8] sm:$0xff]
      %v2532 = vld [vmem:[#allocation2 + $0xe0] sm:$0xff]
      %v2533 = vld [vmem:[#allocation2 + $0xf0] sm:$0xff]
      %v2534 = vld [vmem:[#allocation2 + $0xf8] sm:$0xff]
      %v2535 = vld [vmem:[#allocation2 + $0x108] sm:$0xff]
      %v2536 = vld [vmem:[#allocation2 + $0x110] sm:$0xff]
      %v2537 = vld [vmem:[#allocation2 + $0x120] sm:$0xff]
      %v2538 = vld [vmem:[#allocation2 + $0x128] sm:$0xff]
      %v2539 = vld [vmem:[#allocation2 + $0x138] sm:$0xff]
      %v2540 = vld [vmem:[#allocation2 + $0x140] sm:$0xff]
      %v2541 = vld [vmem:[#allocation2 + $0x150] sm:$0xff]
      %v2542 = vld [vmem:[#allocation2 + $0x158] sm:$0xff]
      %v2543 = vld [vmem:[#allocation2 + $0x168] sm:$0xff]
      %v2544 = vld [vmem:[#allocation2 + $0x170] sm:$0xff]
      %2545 = vst.msk [vmem:[#allocation3] sm:$0xff] %vm245, %v2513
      %2546 = vst.msk [vmem:[#allocation3 + $0x28] sm:$0xff] %vm245, %v2514
      %2547 = vst.msk [vmem:[#allocation3 + $0x50] sm:$0xff] %vm245, %v2515
      %2548 = vst.msk [vmem:[#allocation3 + $0x78] sm:$0xff] %vm245, %v2516
      %2549 = vst.msk [vmem:[#allocation3 + $0xa0] sm:$0xff] %vm245, %v2517
      %2550 = vst.msk [vmem:[#allocation3 + $0xc8] sm:$0xff] %vm245, %v2518
      %2551 = vst.msk [vmem:[#allocation3 + $0xf0] sm:$0xff] %vm245, %v2519
      %2552 = vst.msk [vmem:[#allocation3 + $0x118] sm:$0xff] %vm245, %v2520
      %2553 = vst.msk [vmem:[#allocation3 + $0x140] sm:$0xff] %vm245, %v2521
      %2554 = vst.msk [vmem:[#allocation3 + $0x168] sm:$0xff] %vm245, %v2522
      %2555 = vst.msk [vmem:[#allocation3 + $0x190] sm:$0xff] %vm245, %v2523
      %2556 = vst.msk [vmem:[#allocation3 + $0x1b8] sm:$0xff] %vm245, %v2524
      %2557 = vst.msk [vmem:[#allocation3 + $0x1e0] sm:$0xff] %vm245, %v2525
      %2558 = vst.msk [vmem:[#allocation3 + $0x208] sm:$0xff] %vm245, %v2526
      %2559 = vst.msk [vmem:[#allocation3 + $0x230] sm:$0xff] %vm245, %v2527
      %2560 = vst.msk [vmem:[#allocation3 + $0x258] sm:$0xff] %vm245, %v2528
      %2561 = vst.msk [vmem:[#allocation3 + $0x280] sm:$0xff] %vm245, %v2529
      %2562 = vst.msk [vmem:[#allocation3 + $0x2a8] sm:$0xff] %vm245, %v2530
      %2563 = vst.msk [vmem:[#allocation3 + $0x2d0] sm:$0xff] %vm245, %v2531
      %2564 = vst.msk [vmem:[#allocation3 + $0x2f8] sm:$0xff] %vm245, %v2532
      %2565 = vst.msk [vmem:[#allocation3 + $0x320] sm:$0xff] %vm245, %v2533
      %2566 = vst.msk [vmem:[#allocation3 + $0x348] sm:$0xff] %vm245, %v2534
      %2567 = vst.msk [vmem:[#allocation3 + $0x370] sm:$0xff] %vm245, %v2535
      %2568 = vst.msk [vmem:[#allocation3 + $0x398] sm:$0xff] %vm245, %v2536
      %2569 = vst.msk [vmem:[#allocation3 + $0x3c0] sm:$0xff] %vm245, %v2537
      %2570 = vst.msk [vmem:[#allocation3 + $0x3e8] sm:$0xff] %vm245, %v2538
      %2571 = vst.msk [vmem:[#allocation3 + $0x410] sm:$0xff] %vm245, %v2539
      %2572 = vst.msk [vmem:[#allocation3 + $0x438] sm:$0xff] %vm245, %v2540
      %2573 = vst.msk [vmem:[#allocation3 + $0x460] sm:$0xff] %vm245, %v2541
      %2574 = vst.msk [vmem:[#allocation3 + $0x488] sm:$0xff] %vm245, %v2542
      %2575 = vst.msk [vmem:[#allocation3 + $0x4b0] sm:$0xff] %vm245, %v2543
      %2576 = vst.msk [vmem:[#allocation3 + $0x4d8] sm:$0xff] %vm245, %v2544
      %v2577 = vld [vmem:[#allocation2 + $0x1] sm:$0xff]
      %v2578 = vld [vmem:[#allocation2 + $0x9] sm:$0xff]
      %v2579 = vld [vmem:[#allocation2 + $0x19] sm:$0xff]
      %v2580 = vld [vmem:[#allocation2 + $0x21] sm:$0xff]
      %v2581 = vld [vmem:[#allocation2 + $0x31] sm:$0xff]
      %v2582 = vld [vmem:[#allocation2 + $0x39] sm:$0xff]
      %v2583 = vld [vmem:[#allocation2 + $0x49] sm:$0xff]
      %v2584 = vld [vmem:[#allocation2 + $0x51] sm:$0xff]
      %v2585 = vld [vmem:[#allocation2 + $0x61] sm:$0xff]
      %v2586 = vld [vmem:[#allocation2 + $0x69] sm:$0xff]
      %v2587 = vld [vmem:[#allocation2 + $0x79] sm:$0xff]
      %v2588 = vld [vmem:[#allocation2 + $0x81] sm:$0xff]
      %v2589 = vld [vmem:[#allocation2 + $0x91] sm:$0xff]
      %v2590 = vld [vmem:[#allocation2 + $0x99] sm:$0xff]
      %v2591 = vld [vmem:[#allocation2 + $0xa9] sm:$0xff]
      %v2592 = vld [vmem:[#allocation2 + $0xb1] sm:$0xff]
      %v2593 = vld [vmem:[#allocation2 + $0xc1] sm:$0xff]
      %v2594 = vld [vmem:[#allocation2 + $0xc9] sm:$0xff]
      %v2595 = vld [vmem:[#allocation2 + $0xd9] sm:$0xff]
      %v2596 = vld [vmem:[#allocation2 + $0xe1] sm:$0xff]
      %v2597 = vld [vmem:[#allocation2 + $0xf1] sm:$0xff]
      %v2598 = vld [vmem:[#allocation2 + $0xf9] sm:$0xff]
      %v2599 = vld [vmem:[#allocation2 + $0x109] sm:$0xff]
      %v2600 = vld [vmem:[#allocation2 + $0x111] sm:$0xff]
      %v2601 = vld [vmem:[#allocation2 + $0x121] sm:$0xff]
      %v2602 = vld [vmem:[#allocation2 + $0x129] sm:$0xff]
      %v2603 = vld [vmem:[#allocation2 + $0x139] sm:$0xff]
      %v2604 = vld [vmem:[#allocation2 + $0x141] sm:$0xff]
      %v2605 = vld [vmem:[#allocation2 + $0x151] sm:$0xff]
      %v2606 = vld [vmem:[#allocation2 + $0x159] sm:$0xff]
      %v2607 = vld [vmem:[#allocation2 + $0x169] sm:$0xff]
      %v2608 = vld [vmem:[#allocation2 + $0x171] sm:$0xff]
      %2641 = vrot.lane.b32.xlu0 %v2577, 64
      %v2642 = vpop.permute.xlu0 %2641
      %2643 = vrot.lane.b32.xlu0 %v2578, 64
      %v2644 = vpop.permute.xlu0 %2643
      %2645 = vrot.lane.b32.xlu0 %v2579, 64
      %v2646 = vpop.permute.xlu0 %2645
      %2647 = vrot.lane.b32.xlu0 %v2580, 64
      %v2648 = vpop.permute.xlu0 %2647
      %2649 = vrot.lane.b32.xlu0 %v2581, 64
      %v2650 = vpop.permute.xlu0 %2649
      %2651 = vrot.lane.b32.xlu0 %v2582, 64
      %v2652 = vpop.permute.xlu0 %2651
      %2653 = vrot.lane.b32.xlu0 %v2583, 64
      %v2654 = vpop.permute.xlu0 %2653
      %2655 = vrot.lane.b32.xlu0 %v2584, 64
      %v2656 = vpop.permute.xlu0 %2655
      %2657 = vrot.lane.b32.xlu0 %v2585, 64
      %v2658 = vpop.permute.xlu0 %2657
      %2659 = vrot.lane.b32.xlu0 %v2586, 64
      %v2660 = vpop.permute.xlu0 %2659
      %2661 = vrot.lane.b32.xlu0 %v2587, 64
      %v2662 = vpop.permute.xlu0 %2661
      %2663 = vrot.lane.b32.xlu0 %v2588, 64
      %v2664 = vpop.permute.xlu0 %2663
      %2665 = vrot.lane.b32.xlu0 %v2589, 64
      %v2666 = vpop.permute.xlu0 %2665
      %2667 = vrot.lane.b32.xlu0 %v2590, 64
      %v2668 = vpop.permute.xlu0 %2667
      %2669 = vrot.lane.b32.xlu0 %v2591, 64
      %v2670 = vpop.permute.xlu0 %2669
      %2671 = vrot.lane.b32.xlu0 %v2592, 64
      %v2672 = vpop.permute.xlu0 %2671
      %2673 = vrot.lane.b32.xlu0 %v2593, 64
      %v2674 = vpop.permute.xlu0 %2673
      %2675 = vrot.lane.b32.xlu0 %v2594, 64
      %v2676 = vpop.permute.xlu0 %2675
      %2677 = vrot.lane.b32.xlu0 %v2595, 64
      %v2678 = vpop.permute.xlu0 %2677
      %2679 = vrot.lane.b32.xlu0 %v2596, 64
      %v2680 = vpop.permute.xlu0 %2679
      %2681 = vrot.lane.b32.xlu0 %v2597, 64
      %v2682 = vpop.permute.xlu0 %2681
      %2683 = vrot.lane.b32.xlu0 %v2598, 64
      %v2684 = vpop.permute.xlu0 %2683
      %2685 = vrot.lane.b32.xlu0 %v2599, 64
      %v2686 = vpop.permute.xlu0 %2685
      %2687 = vrot.lane.b32.xlu0 %v2600, 64
      %v2688 = vpop.permute.xlu0 %2687
      %2689 = vrot.lane.b32.xlu0 %v2601, 64
      %v2690 = vpop.permute.xlu0 %2689
      %2691 = vrot.lane.b32.xlu0 %v2602, 64
      %v2692 = vpop.permute.xlu0 %2691
      %2693 = vrot.lane.b32.xlu0 %v2603, 64
      %v2694 = vpop.permute.xlu0 %2693
      %2695 = vrot.lane.b32.xlu0 %v2604, 64
      %v2696 = vpop.permute.xlu0 %2695
      %2697 = vrot.lane.b32.xlu0 %v2605, 64
      %v2698 = vpop.permute.xlu0 %2697
      %2699 = vrot.lane.b32.xlu0 %v2606, 64
      %v2700 = vpop.permute.xlu0 %2699
      %2701 = vrot.lane.b32.xlu0 %v2607, 64
      %v2702 = vpop.permute.xlu0 %2701
      %2703 = vrot.lane.b32.xlu0 %v2608, 64
      %v2704 = vpop.permute.xlu0 %2703
      %2737 = vst.msk [vmem:[#allocation3] sm:$0xff] %vm580, %v2642
      %2738 = vst.msk [vmem:[#allocation3 + $0x28] sm:$0xff] %vm580, %v2644
      %2739 = vst.msk [vmem:[#allocation3 + $0x50] sm:$0xff] %vm580, %v2646
      %2740 = vst.msk [vmem:[#allocation3 + $0x78] sm:$0xff] %vm580, %v2648
      %2741 = vst.msk [vmem:[#allocation3 + $0xa0] sm:$0xff] %vm580, %v2650
      %2742 = vst.msk [vmem:[#allocation3 + $0xc8] sm:$0xff] %vm580, %v2652
      %2743 = vst.msk [vmem:[#allocation3 + $0xf0] sm:$0xff] %vm580, %v2654
      %2744 = vst.msk [vmem:[#allocation3 + $0x118] sm:$0xff] %vm580, %v2656
      %2745 = vst.msk [vmem:[#allocation3 + $0x140] sm:$0xff] %vm580, %v2658
      %2746 = vst.msk [vmem:[#allocation3 + $0x168] sm:$0xff] %vm580, %v2660
      %2747 = vst.msk [vmem:[#allocation3 + $0x190] sm:$0xff] %vm580, %v2662
      %2748 = vst.msk [vmem:[#allocation3 + $0x1b8] sm:$0xff] %vm580, %v2664
      %2749 = vst.msk [vmem:[#allocation3 + $0x1e0] sm:$0xff] %vm580, %v2666
      %2750 = vst.msk [vmem:[#allocation3 + $0x208] sm:$0xff] %vm580, %v2668
      %2751 = vst.msk [vmem:[#allocation3 + $0x230] sm:$0xff] %vm580, %v2670
      %2752 = vst.msk [vmem:[#allocation3 + $0x258] sm:$0xff] %vm580, %v2672
      %2753 = vst.msk [vmem:[#allocation3 + $0x280] sm:$0xff] %vm580, %v2674
      %2754 = vst.msk [vmem:[#allocation3 + $0x2a8] sm:$0xff] %vm580, %v2676
      %2755 = vst.msk [vmem:[#allocation3 + $0x2d0] sm:$0xff] %vm580, %v2678
      %2756 = vst.msk [vmem:[#allocation3 + $0x2f8] sm:$0xff] %vm580, %v2680
      %2757 = vst.msk [vmem:[#allocation3 + $0x320] sm:$0xff] %vm580, %v2682
      %2758 = vst.msk [vmem:[#allocation3 + $0x348] sm:$0xff] %vm580, %v2684
      %2759 = vst.msk [vmem:[#allocation3 + $0x370] sm:$0xff] %vm580, %v2686
      %2760 = vst.msk [vmem:[#allocation3 + $0x398] sm:$0xff] %vm580, %v2688
      %2761 = vst.msk [vmem:[#allocation3 + $0x3c0] sm:$0xff] %vm580, %v2690
      %2762 = vst.msk [vmem:[#allocation3 + $0x3e8] sm:$0xff] %vm580, %v2692
      %2763 = vst.msk [vmem:[#allocation3 + $0x410] sm:$0xff] %vm580, %v2694
      %2764 = vst.msk [vmem:[#allocation3 + $0x438] sm:$0xff] %vm580, %v2696
      %2765 = vst.msk [vmem:[#allocation3 + $0x460] sm:$0xff] %vm580, %v2698
      %2766 = vst.msk [vmem:[#allocation3 + $0x488] sm:$0xff] %vm580, %v2700
      %2767 = vst.msk [vmem:[#allocation3 + $0x4b0] sm:$0xff] %vm580, %v2702
      %2768 = vst.msk [vmem:[#allocation3 + $0x4d8] sm:$0xff] %vm580, %v2704
      %v2769 = vld [vmem:[#allocation2 + $0x2] sm:$0xff]
      %v2770 = vld [vmem:[#allocation2 + $0xa] sm:$0xff]
      %v2771 = vld [vmem:[#allocation2 + $0x1a] sm:$0xff]
      %v2772 = vld [vmem:[#allocation2 + $0x22] sm:$0xff]
      %v2773 = vld [vmem:[#allocation2 + $0x32] sm:$0xff]
      %v2774 = vld [vmem:[#allocation2 + $0x3a] sm:$0xff]
      %v2775 = vld [vmem:[#allocation2 + $0x4a] sm:$0xff]
      %v2776 = vld [vmem:[#allocation2 + $0x52] sm:$0xff]
      %v2777 = vld [vmem:[#allocation2 + $0x62] sm:$0xff]
      %v2778 = vld [vmem:[#allocation2 + $0x6a] sm:$0xff]
      %v2779 = vld [vmem:[#allocation2 + $0x7a] sm:$0xff]
      %v2780 = vld [vmem:[#allocation2 + $0x82] sm:$0xff]
      %v2781 = vld [vmem:[#allocation2 + $0x92] sm:$0xff]
      %v2782 = vld [vmem:[#allocation2 + $0x9a] sm:$0xff]
      %v2783 = vld [vmem:[#allocation2 + $0xaa] sm:$0xff]
      %v2784 = vld [vmem:[#allocation2 + $0xb2] sm:$0xff]
      %v2785 = vld [vmem:[#allocation2 + $0xc2] sm:$0xff]
      %v2786 = vld [vmem:[#allocation2 + $0xca] sm:$0xff]
      %v2787 = vld [vmem:[#allocation2 + $0xda] sm:$0xff]
      %v2788 = vld [vmem:[#allocation2 + $0xe2] sm:$0xff]
      %v2789 = vld [vmem:[#allocation2 + $0xf2] sm:$0xff]
      %v2790 = vld [vmem:[#allocation2 + $0xfa] sm:$0xff]
      %v2791 = vld [vmem:[#allocation2 + $0x10a] sm:$0xff]
      %v2792 = vld [vmem:[#allocation2 + $0x112] sm:$0xff]
      %v2793 = vld [vmem:[#allocation2 + $0x122] sm:$0xff]
      %v2794 = vld [vmem:[#allocation2 + $0x12a] sm:$0xff]
      %v2795 = vld [vmem:[#allocation2 + $0x13a] sm:$0xff]
      %v2796 = vld [vmem:[#allocation2 + $0x142] sm:$0xff]
      %v2797 = vld [vmem:[#allocation2 + $0x152] sm:$0xff]
      %v2798 = vld [vmem:[#allocation2 + $0x15a] sm:$0xff]
      %v2799 = vld [vmem:[#allocation2 + $0x16a] sm:$0xff]
      %v2800 = vld [vmem:[#allocation2 + $0x172] sm:$0xff]
      %2801 = vst.msk [vmem:[#allocation3 + $0x8] sm:$0xff] %vm245, %v2769
      %2802 = vst.msk [vmem:[#allocation3 + $0x30] sm:$0xff] %vm245, %v2770
      %2803 = vst.msk [vmem:[#allocation3 + $0x58] sm:$0xff] %vm245, %v2771
      %2804 = vst.msk [vmem:[#allocation3 + $0x80] sm:$0xff] %vm245, %v2772
      %2805 = vst.msk [vmem:[#allocation3 + $0xa8] sm:$0xff] %vm245, %v2773
      %2806 = vst.msk [vmem:[#allocation3 + $0xd0] sm:$0xff] %vm245, %v2774
      %2807 = vst.msk [vmem:[#allocation3 + $0xf8] sm:$0xff] %vm245, %v2775
      %2808 = vst.msk [vmem:[#allocation3 + $0x120] sm:$0xff] %vm245, %v2776
      %2809 = vst.msk [vmem:[#allocation3 + $0x148] sm:$0xff] %vm245, %v2777
      %2810 = vst.msk [vmem:[#allocation3 + $0x170] sm:$0xff] %vm245, %v2778
      %2811 = vst.msk [vmem:[#allocation3 + $0x198] sm:$0xff] %vm245, %v2779
      %2812 = vst.msk [vmem:[#allocation3 + $0x1c0] sm:$0xff] %vm245, %v2780
      %2813 = vst.msk [vmem:[#allocation3 + $0x1e8] sm:$0xff] %vm245, %v2781
      %2814 = vst.msk [vmem:[#allocation3 + $0x210] sm:$0xff] %vm245, %v2782
      %2815 = vst.msk [vmem:[#allocation3 + $0x238] sm:$0xff] %vm245, %v2783
      %2816 = vst.msk [vmem:[#allocation3 + $0x260] sm:$0xff] %vm245, %v2784
      %2817 = vst.msk [vmem:[#allocation3 + $0x288] sm:$0xff] %vm245, %v2785
      %2818 = vst.msk [vmem:[#allocation3 + $0x2b0] sm:$0xff] %vm245, %v2786
      %2819 = vst.msk [vmem:[#allocation3 + $0x2d8] sm:$0xff] %vm245, %v2787
      %2820 = vst.msk [vmem:[#allocation3 + $0x300] sm:$0xff] %vm245, %v2788
      %2821 = vst.msk [vmem:[#allocation3 + $0x328] sm:$0xff] %vm245, %v2789
      %2822 = vst.msk [vmem:[#allocation3 + $0x350] sm:$0xff] %vm245, %v2790
      %2823 = vst.msk [vmem:[#allocation3 + $0x378] sm:$0xff] %vm245, %v2791
      %2824 = vst.msk [vmem:[#allocation3 + $0x3a0] sm:$0xff] %vm245, %v2792
      %2825 = vst.msk [vmem:[#allocation3 + $0x3c8] sm:$0xff] %vm245, %v2793
      %2826 = vst.msk [vmem:[#allocation3 + $0x3f0] sm:$0xff] %vm245, %v2794
      %2827 = vst.msk [vmem:[#allocation3 + $0x418] sm:$0xff] %vm245, %v2795
      %2828 = vst.msk [vmem:[#allocation3 + $0x440] sm:$0xff] %vm245, %v2796
      %2829 = vst.msk [vmem:[#allocation3 + $0x468] sm:$0xff] %vm245, %v2797
      %2830 = vst.msk [vmem:[#allocation3 + $0x490] sm:$0xff] %vm245, %v2798
      %2831 = vst.msk [vmem:[#allocation3 + $0x4b8] sm:$0xff] %vm245, %v2799
      %2832 = vst.msk [vmem:[#allocation3 + $0x4e0] sm:$0xff] %vm245, %v2800
      %v2833 = vld [vmem:[%s323] sm:$0xff]
      %v2834 = vld [vmem:[%s323 + $0x8] sm:$0xff]
      %v2835 = vld [vmem:[%s323 + $0x18] sm:$0xff]
      %v2836 = vld [vmem:[%s323 + $0x20] sm:$0xff]
      %v2837 = vld [vmem:[%s323 + $0x30] sm:$0xff]
      %v2838 = vld [vmem:[%s323 + $0x38] sm:$0xff]
      %v2839 = vld [vmem:[%s323 + $0x48] sm:$0xff]
      %v2840 = vld [vmem:[%s323 + $0x50] sm:$0xff]
      %v2841 = vld [vmem:[%s323 + $0x60] sm:$0xff]
      %v2842 = vld [vmem:[%s323 + $0x68] sm:$0xff]
      %v2843 = vld [vmem:[%s323 + $0x78] sm:$0xff]
      %v2844 = vld [vmem:[%s323 + $0x80] sm:$0xff]
      %v2845 = vld [vmem:[%s323 + $0x90] sm:$0xff]
      %v2846 = vld [vmem:[%s323 + $0x98] sm:$0xff]
      %v2847 = vld [vmem:[%s323 + $0xa8] sm:$0xff]
      %v2848 = vld [vmem:[%s323 + $0xb0] sm:$0xff]
      %v2849 = vld [vmem:[%s323 + $0xc0] sm:$0xff]
      %v2850 = vld [vmem:[%s323 + $0xc8] sm:$0xff]
      %v2851 = vld [vmem:[%s323 + $0xd8] sm:$0xff]
      %v2852 = vld [vmem:[%s323 + $0xe0] sm:$0xff]
      %v2853 = vld [vmem:[%s323 + $0xf0] sm:$0xff]
      %v2854 = vld [vmem:[%s323 + $0xf8] sm:$0xff]
      %v2855 = vld [vmem:[%s323 + $0x108] sm:$0xff]
      %v2856 = vld [vmem:[%s323 + $0x110] sm:$0xff]
      %v2857 = vld [vmem:[%s323 + $0x120] sm:$0xff]
      %v2858 = vld [vmem:[%s323 + $0x128] sm:$0xff]
      %v2859 = vld [vmem:[%s323 + $0x138] sm:$0xff]
      %v2860 = vld [vmem:[%s323 + $0x140] sm:$0xff]
      %v2861 = vld [vmem:[%s323 + $0x150] sm:$0xff]
      %v2862 = vld [vmem:[%s323 + $0x158] sm:$0xff]
      %v2863 = vld [vmem:[%s323 + $0x168] sm:$0xff]
      %v2864 = vld [vmem:[%s323 + $0x170] sm:$0xff]
      %2897 = vrot.lane.b32.xlu0 %v2833, 64
      %v2898 = vpop.permute.xlu0 %2897
      %2899 = vrot.lane.b32.xlu0 %v2834, 64
      %v2900 = vpop.permute.xlu0 %2899
      %2901 = vrot.lane.b32.xlu0 %v2835, 64
      %v2902 = vpop.permute.xlu0 %2901
      %2903 = vrot.lane.b32.xlu0 %v2836, 64
      %v2904 = vpop.permute.xlu0 %2903
      %2905 = vrot.lane.b32.xlu0 %v2837, 64
      %v2906 = vpop.permute.xlu0 %2905
      %2907 = vrot.lane.b32.xlu0 %v2838, 64
      %v2908 = vpop.permute.xlu0 %2907
      %2909 = vrot.lane.b32.xlu0 %v2839, 64
      %v2910 = vpop.permute.xlu0 %2909
      %2911 = vrot.lane.b32.xlu0 %v2840, 64
      %v2912 = vpop.permute.xlu0 %2911
      %2913 = vrot.lane.b32.xlu0 %v2841, 64
      %v2914 = vpop.permute.xlu0 %2913
      %2915 = vrot.lane.b32.xlu0 %v2842, 64
      %v2916 = vpop.permute.xlu0 %2915
      %2917 = vrot.lane.b32.xlu0 %v2843, 64
      %v2918 = vpop.permute.xlu0 %2917
      %2919 = vrot.lane.b32.xlu0 %v2844, 64
      %v2920 = vpop.permute.xlu0 %2919
      %2921 = vrot.lane.b32.xlu0 %v2845, 64
      %v2922 = vpop.permute.xlu0 %2921
      %2923 = vrot.lane.b32.xlu0 %v2846, 64
      %v2924 = vpop.permute.xlu0 %2923
      %2925 = vrot.lane.b32.xlu0 %v2847, 64
      %v2926 = vpop.permute.xlu0 %2925
      %2927 = vrot.lane.b32.xlu0 %v2848, 64
      %v2928 = vpop.permute.xlu0 %2927
      %2929 = vrot.lane.b32.xlu0 %v2849, 64
      %v2930 = vpop.permute.xlu0 %2929
      %2931 = vrot.lane.b32.xlu0 %v2850, 64
      %v2932 = vpop.permute.xlu0 %2931
      %2933 = vrot.lane.b32.xlu0 %v2851, 64
      %v2934 = vpop.permute.xlu0 %2933
      %2935 = vrot.lane.b32.xlu0 %v2852, 64
      %v2936 = vpop.permute.xlu0 %2935
      %2937 = vrot.lane.b32.xlu0 %v2853, 64
      %v2938 = vpop.permute.xlu0 %2937
      %2939 = vrot.lane.b32.xlu0 %v2854, 64
      %v2940 = vpop.permute.xlu0 %2939
      %2941 = vrot.lane.b32.xlu0 %v2855, 64
      %v2942 = vpop.permute.xlu0 %2941
      %2943 = vrot.lane.b32.xlu0 %v2856, 64
      %v2944 = vpop.permute.xlu0 %2943
      %2945 = vrot.lane.b32.xlu0 %v2857, 64
      %v2946 = vpop.permute.xlu0 %2945
      %2947 = vrot.lane.b32.xlu0 %v2858, 64
      %v2948 = vpop.permute.xlu0 %2947
      %2949 = vrot.lane.b32.xlu0 %v2859, 64
      %v2950 = vpop.permute.xlu0 %2949
      %2951 = vrot.lane.b32.xlu0 %v2860, 64
      %v2952 = vpop.permute.xlu0 %2951
      %2953 = vrot.lane.b32.xlu0 %v2861, 64
      %v2954 = vpop.permute.xlu0 %2953
      %2955 = vrot.lane.b32.xlu0 %v2862, 64
      %v2956 = vpop.permute.xlu0 %2955
      %2957 = vrot.lane.b32.xlu0 %v2863, 64
      %v2958 = vpop.permute.xlu0 %2957
      %2959 = vrot.lane.b32.xlu0 %v2864, 64
      %v2960 = vpop.permute.xlu0 %2959
      %2993 = vst.msk [vmem:[#allocation3 + $0x8] sm:$0xff] %vm580, %v2898
      %2994 = vst.msk [vmem:[#allocation3 + $0x30] sm:$0xff] %vm580, %v2900
      %2995 = vst.msk [vmem:[#allocation3 + $0x58] sm:$0xff] %vm580, %v2902
      %2996 = vst.msk [vmem:[#allocation3 + $0x80] sm:$0xff] %vm580, %v2904
      %2997 = vst.msk [vmem:[#allocation3 + $0xa8] sm:$0xff] %vm580, %v2906
      %2998 = vst.msk [vmem:[#allocation3 + $0xd0] sm:$0xff] %vm580, %v2908
      %2999 = vst.msk [vmem:[#allocation3 + $0xf8] sm:$0xff] %vm580, %v2910
      %3000 = vst.msk [vmem:[#allocation3 + $0x120] sm:$0xff] %vm580, %v2912
      %3001 = vst.msk [vmem:[#allocation3 + $0x148] sm:$0xff] %vm580, %v2914
      %3002 = vst.msk [vmem:[#allocation3 + $0x170] sm:$0xff] %vm580, %v2916
      %3003 = vst.msk [vmem:[#allocation3 + $0x198] sm:$0xff] %vm580, %v2918
      %3004 = vst.msk [vmem:[#allocation3 + $0x1c0] sm:$0xff] %vm580, %v2920
      %3005 = vst.msk [vmem:[#allocation3 + $0x1e8] sm:$0xff] %vm580, %v2922
      %3006 = vst.msk [vmem:[#allocation3 + $0x210] sm:$0xff] %vm580, %v2924
      %3007 = vst.msk [vmem:[#allocation3 + $0x238] sm:$0xff] %vm580, %v2926
      %3008 = vst.msk [vmem:[#allocation3 + $0x260] sm:$0xff] %vm580, %v2928
      %3009 = vst.msk [vmem:[#allocation3 + $0x288] sm:$0xff] %vm580, %v2930
      %3010 = vst.msk [vmem:[#allocation3 + $0x2b0] sm:$0xff] %vm580, %v2932
      %3011 = vst.msk [vmem:[#allocation3 + $0x2d8] sm:$0xff] %vm580, %v2934
      %3012 = vst.msk [vmem:[#allocation3 + $0x300] sm:$0xff] %vm580, %v2936
      %3013 = vst.msk [vmem:[#allocation3 + $0x328] sm:$0xff] %vm580, %v2938
      %3014 = vst.msk [vmem:[#allocation3 + $0x350] sm:$0xff] %vm580, %v2940
      %3015 = vst.msk [vmem:[#allocation3 + $0x378] sm:$0xff] %vm580, %v2942
      %3016 = vst.msk [vmem:[#allocation3 + $0x3a0] sm:$0xff] %vm580, %v2944
      %3017 = vst.msk [vmem:[#allocation3 + $0x3c8] sm:$0xff] %vm580, %v2946
      %3018 = vst.msk [vmem:[#allocation3 + $0x3f0] sm:$0xff] %vm580, %v2948
      %3019 = vst.msk [vmem:[#allocation3 + $0x418] sm:$0xff] %vm580, %v2950
      %3020 = vst.msk [vmem:[#allocation3 + $0x440] sm:$0xff] %vm580, %v2952
      %3021 = vst.msk [vmem:[#allocation3 + $0x468] sm:$0xff] %vm580, %v2954
      %3022 = vst.msk [vmem:[#allocation3 + $0x490] sm:$0xff] %vm580, %v2956
      %3023 = vst.msk [vmem:[#allocation3 + $0x4b8] sm:$0xff] %vm580, %v2958
      %3024 = vst.msk [vmem:[#allocation3 + $0x4e0] sm:$0xff] %vm580, %v2960
      %v3025 = vld [vmem:[%s323 + $0x1] sm:$0xff]
      %v3026 = vld [vmem:[%s323 + $0x9] sm:$0xff]
      %v3027 = vld [vmem:[%s323 + $0x19] sm:$0xff]
      %v3028 = vld [vmem:[%s323 + $0x21] sm:$0xff]
      %v3029 = vld [vmem:[%s323 + $0x31] sm:$0xff]
      %v3030 = vld [vmem:[%s323 + $0x39] sm:$0xff]
      %v3031 = vld [vmem:[%s323 + $0x49] sm:$0xff]
      %v3032 = vld [vmem:[%s323 + $0x51] sm:$0xff]
      %v3033 = vld [vmem:[%s323 + $0x61] sm:$0xff]
      %v3034 = vld [vmem:[%s323 + $0x69] sm:$0xff]
      %v3035 = vld [vmem:[%s323 + $0x79] sm:$0xff]
      %v3036 = vld [vmem:[%s323 + $0x81] sm:$0xff]
      %v3037 = vld [vmem:[%s323 + $0x91] sm:$0xff]
      %v3038 = vld [vmem:[%s323 + $0x99] sm:$0xff]
      %v3039 = vld [vmem:[%s323 + $0xa9] sm:$0xff]
      %v3040 = vld [vmem:[%s323 + $0xb1] sm:$0xff]
      %v3041 = vld [vmem:[%s323 + $0xc1] sm:$0xff]
      %v3042 = vld [vmem:[%s323 + $0xc9] sm:$0xff]
      %v3043 = vld [vmem:[%s323 + $0xd9] sm:$0xff]
      %v3044 = vld [vmem:[%s323 + $0xe1] sm:$0xff]
      %v3045 = vld [vmem:[%s323 + $0xf1] sm:$0xff]
      %v3046 = vld [vmem:[%s323 + $0xf9] sm:$0xff]
      %v3047 = vld [vmem:[%s323 + $0x109] sm:$0xff]
      %v3048 = vld [vmem:[%s323 + $0x111] sm:$0xff]
      %v3049 = vld [vmem:[%s323 + $0x121] sm:$0xff]
      %v3050 = vld [vmem:[%s323 + $0x129] sm:$0xff]
      %v3051 = vld [vmem:[%s323 + $0x139] sm:$0xff]
      %v3052 = vld [vmem:[%s323 + $0x141] sm:$0xff]
      %v3053 = vld [vmem:[%s323 + $0x151] sm:$0xff]
      %v3054 = vld [vmem:[%s323 + $0x159] sm:$0xff]
      %v3055 = vld [vmem:[%s323 + $0x169] sm:$0xff]
      %v3056 = vld [vmem:[%s323 + $0x171] sm:$0xff]
      %3057 = vst.msk [vmem:[#allocation3 + $0x10] sm:$0xff] %vm245, %v3025
      %3058 = vst.msk [vmem:[#allocation3 + $0x38] sm:$0xff] %vm245, %v3026
      %3059 = vst.msk [vmem:[#allocation3 + $0x60] sm:$0xff] %vm245, %v3027
      %3060 = vst.msk [vmem:[#allocation3 + $0x88] sm:$0xff] %vm245, %v3028
      %3061 = vst.msk [vmem:[#allocation3 + $0xb0] sm:$0xff] %vm245, %v3029
      %3062 = vst.msk [vmem:[#allocation3 + $0xd8] sm:$0xff] %vm245, %v3030
      %3063 = vst.msk [vmem:[#allocation3 + $0x100] sm:$0xff] %vm245, %v3031
      %3064 = vst.msk [vmem:[#allocation3 + $0x128] sm:$0xff] %vm245, %v3032
      %3065 = vst.msk [vmem:[#allocation3 + $0x150] sm:$0xff] %vm245, %v3033
      %3066 = vst.msk [vmem:[#allocation3 + $0x178] sm:$0xff] %vm245, %v3034
      %3067 = vst.msk [vmem:[#allocation3 + $0x1a0] sm:$0xff] %vm245, %v3035
      %3068 = vst.msk [vmem:[#allocation3 + $0x1c8] sm:$0xff] %vm245, %v3036
      %3069 = vst.msk [vmem:[#allocation3 + $0x1f0] sm:$0xff] %vm245, %v3037
      %3070 = vst.msk [vmem:[#allocation3 + $0x218] sm:$0xff] %vm245, %v3038
      %3071 = vst.msk [vmem:[#allocation3 + $0x240] sm:$0xff] %vm245, %v3039
      %3072 = vst.msk [vmem:[#allocation3 + $0x268] sm:$0xff] %vm245, %v3040
      %3073 = vst.msk [vmem:[#allocation3 + $0x290] sm:$0xff] %vm245, %v3041
      %3074 = vst.msk [vmem:[#allocation3 + $0x2b8] sm:$0xff] %vm245, %v3042
      %3075 = vst.msk [vmem:[#allocation3 + $0x2e0] sm:$0xff] %vm245, %v3043
      %3076 = vst.msk [vmem:[#allocation3 + $0x308] sm:$0xff] %vm245, %v3044
      %3077 = vst.msk [vmem:[#allocation3 + $0x330] sm:$0xff] %vm245, %v3045
      %3078 = vst.msk [vmem:[#allocation3 + $0x358] sm:$0xff] %vm245, %v3046
      %3079 = vst.msk [vmem:[#allocation3 + $0x380] sm:$0xff] %vm245, %v3047
      %3080 = vst.msk [vmem:[#allocation3 + $0x3a8] sm:$0xff] %vm245, %v3048
      %3081 = vst.msk [vmem:[#allocation3 + $0x3d0] sm:$0xff] %vm245, %v3049
      %3082 = vst.msk [vmem:[#allocation3 + $0x3f8] sm:$0xff] %vm245, %v3050
      %3083 = vst.msk [vmem:[#allocation3 + $0x420] sm:$0xff] %vm245, %v3051
      %3084 = vst.msk [vmem:[#allocation3 + $0x448] sm:$0xff] %vm245, %v3052
      %3085 = vst.msk [vmem:[#allocation3 + $0x470] sm:$0xff] %vm245, %v3053
      %3086 = vst.msk [vmem:[#allocation3 + $0x498] sm:$0xff] %vm245, %v3054
      %3087 = vst.msk [vmem:[#allocation3 + $0x4c0] sm:$0xff] %vm245, %v3055
      %3088 = vst.msk [vmem:[#allocation3 + $0x4e8] sm:$0xff] %vm245, %v3056
      %v3089 = vld [vmem:[%s323 + $0x2] sm:$0xff]
      %v3090 = vld [vmem:[%s323 + $0xa] sm:$0xff]
      %v3091 = vld [vmem:[%s323 + $0x1a] sm:$0xff]
      %v3092 = vld [vmem:[%s323 + $0x22] sm:$0xff]
      %v3093 = vld [vmem:[%s323 + $0x32] sm:$0xff]
      %v3094 = vld [vmem:[%s323 + $0x3a] sm:$0xff]
      %v3095 = vld [vmem:[%s323 + $0x4a] sm:$0xff]
      %v3096 = vld [vmem:[%s323 + $0x52] sm:$0xff]
      %v3097 = vld [vmem:[%s323 + $0x62] sm:$0xff]
      %v3098 = vld [vmem:[%s323 + $0x6a] sm:$0xff]
      %v3099 = vld [vmem:[%s323 + $0x7a] sm:$0xff]
      %v3100 = vld [vmem:[%s323 + $0x82] sm:$0xff]
      %v3101 = vld [vmem:[%s323 + $0x92] sm:$0xff]
      %v3102 = vld [vmem:[%s323 + $0x9a] sm:$0xff]
      %v3103 = vld [vmem:[%s323 + $0xaa] sm:$0xff]
      %v3104 = vld [vmem:[%s323 + $0xb2] sm:$0xff]
      %v3105 = vld [vmem:[%s323 + $0xc2] sm:$0xff]
      %v3106 = vld [vmem:[%s323 + $0xca] sm:$0xff]
      %v3107 = vld [vmem:[%s323 + $0xda] sm:$0xff]
      %v3108 = vld [vmem:[%s323 + $0xe2] sm:$0xff]
      %v3109 = vld [vmem:[%s323 + $0xf2] sm:$0xff]
      %v3110 = vld [vmem:[%s323 + $0xfa] sm:$0xff]
      %v3111 = vld [vmem:[%s323 + $0x10a] sm:$0xff]
      %v3112 = vld [vmem:[%s323 + $0x112] sm:$0xff]
      %v3113 = vld [vmem:[%s323 + $0x122] sm:$0xff]
      %v3114 = vld [vmem:[%s323 + $0x12a] sm:$0xff]
      %v3115 = vld [vmem:[%s323 + $0x13a] sm:$0xff]
      %v3116 = vld [vmem:[%s323 + $0x142] sm:$0xff]
      %v3117 = vld [vmem:[%s323 + $0x152] sm:$0xff]
      %v3118 = vld [vmem:[%s323 + $0x15a] sm:$0xff]
      %v3119 = vld [vmem:[%s323 + $0x16a] sm:$0xff]
      %v3120 = vld [vmem:[%s323 + $0x172] sm:$0xff]
      %3153 = vrot.lane.b32.xlu0 %v3089, 64
      %v3154 = vpop.permute.xlu0 %3153
      %3155 = vrot.lane.b32.xlu0 %v3090, 64
      %v3156 = vpop.permute.xlu0 %3155
      %3157 = vrot.lane.b32.xlu0 %v3091, 64
      %v3158 = vpop.permute.xlu0 %3157
      %3159 = vrot.lane.b32.xlu0 %v3092, 64
      %v3160 = vpop.permute.xlu0 %3159
      %3161 = vrot.lane.b32.xlu0 %v3093, 64
      %v3162 = vpop.permute.xlu0 %3161
      %3163 = vrot.lane.b32.xlu0 %v3094, 64
      %v3164 = vpop.permute.xlu0 %3163
      %3165 = vrot.lane.b32.xlu0 %v3095, 64
      %v3166 = vpop.permute.xlu0 %3165
      %3167 = vrot.lane.b32.xlu0 %v3096, 64
      %v3168 = vpop.permute.xlu0 %3167
      %3169 = vrot.lane.b32.xlu0 %v3097, 64
      %v3170 = vpop.permute.xlu0 %3169
      %3171 = vrot.lane.b32.xlu0 %v3098, 64
      %v3172 = vpop.permute.xlu0 %3171
      %3173 = vrot.lane.b32.xlu0 %v3099, 64
      %v3174 = vpop.permute.xlu0 %3173
      %3175 = vrot.lane.b32.xlu0 %v3100, 64
      %v3176 = vpop.permute.xlu0 %3175
      %3177 = vrot.lane.b32.xlu0 %v3101, 64
      %v3178 = vpop.permute.xlu0 %3177
      %3179 = vrot.lane.b32.xlu0 %v3102, 64
      %v3180 = vpop.permute.xlu0 %3179
      %3181 = vrot.lane.b32.xlu0 %v3103, 64
      %v3182 = vpop.permute.xlu0 %3181
      %3183 = vrot.lane.b32.xlu0 %v3104, 64
      %v3184 = vpop.permute.xlu0 %3183
      %3185 = vrot.lane.b32.xlu0 %v3105, 64
      %v3186 = vpop.permute.xlu0 %3185
      %3187 = vrot.lane.b32.xlu0 %v3106, 64
      %v3188 = vpop.permute.xlu0 %3187
      %3189 = vrot.lane.b32.xlu0 %v3107, 64
      %v3190 = vpop.permute.xlu0 %3189
      %3191 = vrot.lane.b32.xlu0 %v3108, 64
      %v3192 = vpop.permute.xlu0 %3191
      %3193 = vrot.lane.b32.xlu0 %v3109, 64
      %v3194 = vpop.permute.xlu0 %3193
      %3195 = vrot.lane.b32.xlu0 %v3110, 64
      %v3196 = vpop.permute.xlu0 %3195
      %3197 = vrot.lane.b32.xlu0 %v3111, 64
      %v3198 = vpop.permute.xlu0 %3197
      %3199 = vrot.lane.b32.xlu0 %v3112, 64
      %v3200 = vpop.permute.xlu0 %3199
      %3201 = vrot.lane.b32.xlu0 %v3113, 64
      %v3202 = vpop.permute.xlu0 %3201
      %3203 = vrot.lane.b32.xlu0 %v3114, 64
      %v3204 = vpop.permute.xlu0 %3203
      %3205 = vrot.lane.b32.xlu0 %v3115, 64
      %v3206 = vpop.permute.xlu0 %3205
      %3207 = vrot.lane.b32.xlu0 %v3116, 64
      %v3208 = vpop.permute.xlu0 %3207
      %3209 = vrot.lane.b32.xlu0 %v3117, 64
      %v3210 = vpop.permute.xlu0 %3209
      %3211 = vrot.lane.b32.xlu0 %v3118, 64
      %v3212 = vpop.permute.xlu0 %3211
      %3213 = vrot.lane.b32.xlu0 %v3119, 64
      %v3214 = vpop.permute.xlu0 %3213
      %3215 = vrot.lane.b32.xlu0 %v3120, 64
      %v3216 = vpop.permute.xlu0 %3215
      %3249 = vst.msk [vmem:[#allocation3 + $0x10] sm:$0xff] %vm580, %v3154
      %3250 = vst.msk [vmem:[#allocation3 + $0x38] sm:$0xff] %vm580, %v3156
      %3251 = vst.msk [vmem:[#allocation3 + $0x60] sm:$0xff] %vm580, %v3158
      %3252 = vst.msk [vmem:[#allocation3 + $0x88] sm:$0xff] %vm580, %v3160
      %3253 = vst.msk [vmem:[#allocation3 + $0xb0] sm:$0xff] %vm580, %v3162
      %3254 = vst.msk [vmem:[#allocation3 + $0xd8] sm:$0xff] %vm580, %v3164
      %3255 = vst.msk [vmem:[#allocation3 + $0x100] sm:$0xff] %vm580, %v3166
      %3256 = vst.msk [vmem:[#allocation3 + $0x128] sm:$0xff] %vm580, %v3168
      %3257 = vst.msk [vmem:[#allocation3 + $0x150] sm:$0xff] %vm580, %v3170
      %3258 = vst.msk [vmem:[#allocation3 + $0x178] sm:$0xff] %vm580, %v3172
      %3259 = vst.msk [vmem:[#allocation3 + $0x1a0] sm:$0xff] %vm580, %v3174
      %3260 = vst.msk [vmem:[#allocation3 + $0x1c8] sm:$0xff] %vm580, %v3176
      %3261 = vst.msk [vmem:[#allocation3 + $0x1f0] sm:$0xff] %vm580, %v3178
      %3262 = vst.msk [vmem:[#allocation3 + $0x218] sm:$0xff] %vm580, %v3180
      %3263 = vst.msk [vmem:[#allocation3 + $0x240] sm:$0xff] %vm580, %v3182
      %3264 = vst.msk [vmem:[#allocation3 + $0x268] sm:$0xff] %vm580, %v3184
      %3265 = vst.msk [vmem:[#allocation3 + $0x290] sm:$0xff] %vm580, %v3186
      %3266 = vst.msk [vmem:[#allocation3 + $0x2b8] sm:$0xff] %vm580, %v3188
      %3267 = vst.msk [vmem:[#allocation3 + $0x2e0] sm:$0xff] %vm580, %v3190
      %3268 = vst.msk [vmem:[#allocation3 + $0x308] sm:$0xff] %vm580, %v3192
      %3269 = vst.msk [vmem:[#allocation3 + $0x330] sm:$0xff] %vm580, %v3194
      %3270 = vst.msk [vmem:[#allocation3 + $0x358] sm:$0xff] %vm580, %v3196
      %3271 = vst.msk [vmem:[#allocation3 + $0x380] sm:$0xff] %vm580, %v3198
      %3272 = vst.msk [vmem:[#allocation3 + $0x3a8] sm:$0xff] %vm580, %v3200
      %3273 = vst.msk [vmem:[#allocation3 + $0x3d0] sm:$0xff] %vm580, %v3202
      %3274 = vst.msk [vmem:[#allocation3 + $0x3f8] sm:$0xff] %vm580, %v3204
      %3275 = vst.msk [vmem:[#allocation3 + $0x420] sm:$0xff] %vm580, %v3206
      %3276 = vst.msk [vmem:[#allocation3 + $0x448] sm:$0xff] %vm580, %v3208
      %3277 = vst.msk [vmem:[#allocation3 + $0x470] sm:$0xff] %vm580, %v3210
      %3278 = vst.msk [vmem:[#allocation3 + $0x498] sm:$0xff] %vm580, %v3212
      %3279 = vst.msk [vmem:[#allocation3 + $0x4c0] sm:$0xff] %vm580, %v3214
      %3280 = vst.msk [vmem:[#allocation3 + $0x4e8] sm:$0xff] %vm580, %v3216
      %v3281 = vld [vmem:[%s1125] sm:$0xff]
      %v3282 = vld [vmem:[%s1125 + $0x8] sm:$0xff]
      %v3283 = vld [vmem:[%s1125 + $0x18] sm:$0xff]
      %v3284 = vld [vmem:[%s1125 + $0x20] sm:$0xff]
      %v3285 = vld [vmem:[%s1125 + $0x30] sm:$0xff]
      %v3286 = vld [vmem:[%s1125 + $0x38] sm:$0xff]
      %v3287 = vld [vmem:[%s1125 + $0x48] sm:$0xff]
      %v3288 = vld [vmem:[%s1125 + $0x50] sm:$0xff]
      %v3289 = vld [vmem:[%s1125 + $0x60] sm:$0xff]
      %v3290 = vld [vmem:[%s1125 + $0x68] sm:$0xff]
      %v3291 = vld [vmem:[%s1125 + $0x78] sm:$0xff]
      %v3292 = vld [vmem:[%s1125 + $0x80] sm:$0xff]
      %v3293 = vld [vmem:[%s1125 + $0x90] sm:$0xff]
      %v3294 = vld [vmem:[%s1125 + $0x98] sm:$0xff]
      %v3295 = vld [vmem:[%s1125 + $0xa8] sm:$0xff]
      %v3296 = vld [vmem:[%s1125 + $0xb0] sm:$0xff]
      %v3297 = vld [vmem:[%s1125 + $0xc0] sm:$0xff]
      %v3298 = vld [vmem:[%s1125 + $0xc8] sm:$0xff]
      %v3299 = vld [vmem:[%s1125 + $0xd8] sm:$0xff]
      %v3300 = vld [vmem:[%s1125 + $0xe0] sm:$0xff]
      %v3301 = vld [vmem:[%s1125 + $0xf0] sm:$0xff]
      %v3302 = vld [vmem:[%s1125 + $0xf8] sm:$0xff]
      %v3303 = vld [vmem:[%s1125 + $0x108] sm:$0xff]
      %v3304 = vld [vmem:[%s1125 + $0x110] sm:$0xff]
      %v3305 = vld [vmem:[%s1125 + $0x120] sm:$0xff]
      %v3306 = vld [vmem:[%s1125 + $0x128] sm:$0xff]
      %v3307 = vld [vmem:[%s1125 + $0x138] sm:$0xff]
      %v3308 = vld [vmem:[%s1125 + $0x140] sm:$0xff]
      %v3309 = vld [vmem:[%s1125 + $0x150] sm:$0xff]
      %v3310 = vld [vmem:[%s1125 + $0x158] sm:$0xff]
      %v3311 = vld [vmem:[%s1125 + $0x168] sm:$0xff]
      %v3312 = vld [vmem:[%s1125 + $0x170] sm:$0xff]
      %3313 = vst.msk [vmem:[#allocation3 + $0x18] sm:$0xff] %vm245, %v3281
      %3314 = vst.msk [vmem:[#allocation3 + $0x40] sm:$0xff] %vm245, %v3282
      %3315 = vst.msk [vmem:[#allocation3 + $0x68] sm:$0xff] %vm245, %v3283
      %3316 = vst.msk [vmem:[#allocation3 + $0x90] sm:$0xff] %vm245, %v3284
      %3317 = vst.msk [vmem:[#allocation3 + $0xb8] sm:$0xff] %vm245, %v3285
      %3318 = vst.msk [vmem:[#allocation3 + $0xe0] sm:$0xff] %vm245, %v3286
      %3319 = vst.msk [vmem:[#allocation3 + $0x108] sm:$0xff] %vm245, %v3287
      %3320 = vst.msk [vmem:[#allocation3 + $0x130] sm:$0xff] %vm245, %v3288
      %3321 = vst.msk [vmem:[#allocation3 + $0x158] sm:$0xff] %vm245, %v3289
      %3322 = vst.msk [vmem:[#allocation3 + $0x180] sm:$0xff] %vm245, %v3290
      %3323 = vst.msk [vmem:[#allocation3 + $0x1a8] sm:$0xff] %vm245, %v3291
      %3324 = vst.msk [vmem:[#allocation3 + $0x1d0] sm:$0xff] %vm245, %v3292
      %3325 = vst.msk [vmem:[#allocation3 + $0x1f8] sm:$0xff] %vm245, %v3293
      %3326 = vst.msk [vmem:[#allocation3 + $0x220] sm:$0xff] %vm245, %v3294
      %3327 = vst.msk [vmem:[#allocation3 + $0x248] sm:$0xff] %vm245, %v3295
      %3328 = vst.msk [vmem:[#allocation3 + $0x270] sm:$0xff] %vm245, %v3296
      %3329 = vst.msk [vmem:[#allocation3 + $0x298] sm:$0xff] %vm245, %v3297
      %3330 = vst.msk [vmem:[#allocation3 + $0x2c0] sm:$0xff] %vm245, %v3298
      %3331 = vst.msk [vmem:[#allocation3 + $0x2e8] sm:$0xff] %vm245, %v3299
      %3332 = vst.msk [vmem:[#allocation3 + $0x310] sm:$0xff] %vm245, %v3300
      %3333 = vst.msk [vmem:[#allocation3 + $0x338] sm:$0xff] %vm245, %v3301
      %3334 = vst.msk [vmem:[#allocation3 + $0x360] sm:$0xff] %vm245, %v3302
      %3335 = vst.msk [vmem:[#allocation3 + $0x388] sm:$0xff] %vm245, %v3303
      %3336 = vst.msk [vmem:[#allocation3 + $0x3b0] sm:$0xff] %vm245, %v3304
      %3337 = vst.msk [vmem:[#allocation3 + $0x3d8] sm:$0xff] %vm245, %v3305
      %3338 = vst.msk [vmem:[#allocation3 + $0x400] sm:$0xff] %vm245, %v3306
      %3339 = vst.msk [vmem:[#allocation3 + $0x428] sm:$0xff] %vm245, %v3307
      %3340 = vst.msk [vmem:[#allocation3 + $0x450] sm:$0xff] %vm245, %v3308
      %3341 = vst.msk [vmem:[#allocation3 + $0x478] sm:$0xff] %vm245, %v3309
      %3342 = vst.msk [vmem:[#allocation3 + $0x4a0] sm:$0xff] %vm245, %v3310
      %3343 = vst.msk [vmem:[#allocation3 + $0x4c8] sm:$0xff] %vm245, %v3311
      %3344 = vst.msk [vmem:[#allocation3 + $0x4f0] sm:$0xff] %vm245, %v3312
      %v3345 = vld [vmem:[%s1125 + $0x1] sm:$0xff]
      %v3346 = vld [vmem:[%s1125 + $0x9] sm:$0xff]
      %v3347 = vld [vmem:[%s1125 + $0x19] sm:$0xff]
      %v3348 = vld [vmem:[%s1125 + $0x21] sm:$0xff]
      %v3349 = vld [vmem:[%s1125 + $0x31] sm:$0xff]
      %v3350 = vld [vmem:[%s1125 + $0x39] sm:$0xff]
      %v3351 = vld [vmem:[%s1125 + $0x49] sm:$0xff]
      %v3352 = vld [vmem:[%s1125 + $0x51] sm:$0xff]
      %v3353 = vld [vmem:[%s1125 + $0x61] sm:$0xff]
      %v3354 = vld [vmem:[%s1125 + $0x69] sm:$0xff]
      %v3355 = vld [vmem:[%s1125 + $0x79] sm:$0xff]
      %v3356 = vld [vmem:[%s1125 + $0x81] sm:$0xff]
      %v3357 = vld [vmem:[%s1125 + $0x91] sm:$0xff]
      %v3358 = vld [vmem:[%s1125 + $0x99] sm:$0xff]
      %v3359 = vld [vmem:[%s1125 + $0xa9] sm:$0xff]
      %v3360 = vld [vmem:[%s1125 + $0xb1] sm:$0xff]
      %v3361 = vld [vmem:[%s1125 + $0xc1] sm:$0xff]
      %v3362 = vld [vmem:[%s1125 + $0xc9] sm:$0xff]
      %v3363 = vld [vmem:[%s1125 + $0xd9] sm:$0xff]
      %v3364 = vld [vmem:[%s1125 + $0xe1] sm:$0xff]
      %v3365 = vld [vmem:[%s1125 + $0xf1] sm:$0xff]
      %v3366 = vld [vmem:[%s1125 + $0xf9] sm:$0xff]
      %v3367 = vld [vmem:[%s1125 + $0x109] sm:$0xff]
      %v3368 = vld [vmem:[%s1125 + $0x111] sm:$0xff]
      %v3369 = vld [vmem:[%s1125 + $0x121] sm:$0xff]
      %v3370 = vld [vmem:[%s1125 + $0x129] sm:$0xff]
      %v3371 = vld [vmem:[%s1125 + $0x139] sm:$0xff]
      %v3372 = vld [vmem:[%s1125 + $0x141] sm:$0xff]
      %v3373 = vld [vmem:[%s1125 + $0x151] sm:$0xff]
      %v3374 = vld [vmem:[%s1125 + $0x159] sm:$0xff]
      %v3375 = vld [vmem:[%s1125 + $0x169] sm:$0xff]
      %v3376 = vld [vmem:[%s1125 + $0x171] sm:$0xff]
      %3409 = vrot.lane.b32.xlu0 %v3345, 64
      %v3410 = vpop.permute.xlu0 %3409
      %3411 = vrot.lane.b32.xlu0 %v3346, 64
      %v3412 = vpop.permute.xlu0 %3411
      %3413 = vrot.lane.b32.xlu0 %v3347, 64
      %v3414 = vpop.permute.xlu0 %3413
      %3415 = vrot.lane.b32.xlu0 %v3348, 64
      %v3416 = vpop.permute.xlu0 %3415
      %3417 = vrot.lane.b32.xlu0 %v3349, 64
      %v3418 = vpop.permute.xlu0 %3417
      %3419 = vrot.lane.b32.xlu0 %v3350, 64
      %v3420 = vpop.permute.xlu0 %3419
      %3421 = vrot.lane.b32.xlu0 %v3351, 64
      %v3422 = vpop.permute.xlu0 %3421
      %3423 = vrot.lane.b32.xlu0 %v3352, 64
      %v3424 = vpop.permute.xlu0 %3423
      %3425 = vrot.lane.b32.xlu0 %v3353, 64
      %v3426 = vpop.permute.xlu0 %3425
      %3427 = vrot.lane.b32.xlu0 %v3354, 64
      %v3428 = vpop.permute.xlu0 %3427
      %3429 = vrot.lane.b32.xlu0 %v3355, 64
      %v3430 = vpop.permute.xlu0 %3429
      %3431 = vrot.lane.b32.xlu0 %v3356, 64
      %v3432 = vpop.permute.xlu0 %3431
      %3433 = vrot.lane.b32.xlu0 %v3357, 64
      %v3434 = vpop.permute.xlu0 %3433
      %3435 = vrot.lane.b32.xlu0 %v3358, 64
      %v3436 = vpop.permute.xlu0 %3435
      %3437 = vrot.lane.b32.xlu0 %v3359, 64
      %v3438 = vpop.permute.xlu0 %3437
      %3439 = vrot.lane.b32.xlu0 %v3360, 64
      %v3440 = vpop.permute.xlu0 %3439
      %3441 = vrot.lane.b32.xlu0 %v3361, 64
      %v3442 = vpop.permute.xlu0 %3441
      %3443 = vrot.lane.b32.xlu0 %v3362, 64
      %v3444 = vpop.permute.xlu0 %3443
      %3445 = vrot.lane.b32.xlu0 %v3363, 64
      %v3446 = vpop.permute.xlu0 %3445
      %3447 = vrot.lane.b32.xlu0 %v3364, 64
      %v3448 = vpop.permute.xlu0 %3447
      %3449 = vrot.lane.b32.xlu0 %v3365, 64
      %v3450 = vpop.permute.xlu0 %3449
      %3451 = vrot.lane.b32.xlu0 %v3366, 64
      %v3452 = vpop.permute.xlu0 %3451
      %3453 = vrot.lane.b32.xlu0 %v3367, 64
      %v3454 = vpop.permute.xlu0 %3453
      %3455 = vrot.lane.b32.xlu0 %v3368, 64
      %v3456 = vpop.permute.xlu0 %3455
      %3457 = vrot.lane.b32.xlu0 %v3369, 64
      %v3458 = vpop.permute.xlu0 %3457
      %3459 = vrot.lane.b32.xlu0 %v3370, 64
      %v3460 = vpop.permute.xlu0 %3459
      %3461 = vrot.lane.b32.xlu0 %v3371, 64
      %v3462 = vpop.permute.xlu0 %3461
      %3463 = vrot.lane.b32.xlu0 %v3372, 64
      %v3464 = vpop.permute.xlu0 %3463
      %3465 = vrot.lane.b32.xlu0 %v3373, 64
      %v3466 = vpop.permute.xlu0 %3465
      %3467 = vrot.lane.b32.xlu0 %v3374, 64
      %v3468 = vpop.permute.xlu0 %3467
      %3469 = vrot.lane.b32.xlu0 %v3375, 64
      %v3470 = vpop.permute.xlu0 %3469
      %3471 = vrot.lane.b32.xlu0 %v3376, 64
      %v3472 = vpop.permute.xlu0 %3471
      %3505 = vst.msk [vmem:[#allocation3 + $0x18] sm:$0xff] %vm580, %v3410
      %3506 = vst.msk [vmem:[#allocation3 + $0x40] sm:$0xff] %vm580, %v3412
      %3507 = vst.msk [vmem:[#allocation3 + $0x68] sm:$0xff] %vm580, %v3414
      %3508 = vst.msk [vmem:[#allocation3 + $0x90] sm:$0xff] %vm580, %v3416
      %3509 = vst.msk [vmem:[#allocation3 + $0xb8] sm:$0xff] %vm580, %v3418
      %3510 = vst.msk [vmem:[#allocation3 + $0xe0] sm:$0xff] %vm580, %v3420
      %3511 = vst.msk [vmem:[#allocation3 + $0x108] sm:$0xff] %vm580, %v3422
      %3512 = vst.msk [vmem:[#allocation3 + $0x130] sm:$0xff] %vm580, %v3424
      %3513 = vst.msk [vmem:[#allocation3 + $0x158] sm:$0xff] %vm580, %v3426
      %3514 = vst.msk [vmem:[#allocation3 + $0x180] sm:$0xff] %vm580, %v3428
      %3515 = vst.msk [vmem:[#allocation3 + $0x1a8] sm:$0xff] %vm580, %v3430
      %3516 = vst.msk [vmem:[#allocation3 + $0x1d0] sm:$0xff] %vm580, %v3432
      %3517 = vst.msk [vmem:[#allocation3 + $0x1f8] sm:$0xff] %vm580, %v3434
      %3518 = vst.msk [vmem:[#allocation3 + $0x220] sm:$0xff] %vm580, %v3436
      %3519 = vst.msk [vmem:[#allocation3 + $0x248] sm:$0xff] %vm580, %v3438
      %3520 = vst.msk [vmem:[#allocation3 + $0x270] sm:$0xff] %vm580, %v3440
      %3521 = vst.msk [vmem:[#allocation3 + $0x298] sm:$0xff] %vm580, %v3442
      %3522 = vst.msk [vmem:[#allocation3 + $0x2c0] sm:$0xff] %vm580, %v3444
      %3523 = vst.msk [vmem:[#allocation3 + $0x2e8] sm:$0xff] %vm580, %v3446
      %3524 = vst.msk [vmem:[#allocation3 + $0x310] sm:$0xff] %vm580, %v3448
      %3525 = vst.msk [vmem:[#allocation3 + $0x338] sm:$0xff] %vm580, %v3450
      %3526 = vst.msk [vmem:[#allocation3 + $0x360] sm:$0xff] %vm580, %v3452
      %3527 = vst.msk [vmem:[#allocation3 + $0x388] sm:$0xff] %vm580, %v3454
      %3528 = vst.msk [vmem:[#allocation3 + $0x3b0] sm:$0xff] %vm580, %v3456
      %3529 = vst.msk [vmem:[#allocation3 + $0x3d8] sm:$0xff] %vm580, %v3458
      %3530 = vst.msk [vmem:[#allocation3 + $0x400] sm:$0xff] %vm580, %v3460
      %3531 = vst.msk [vmem:[#allocation3 + $0x428] sm:$0xff] %vm580, %v3462
      %3532 = vst.msk [vmem:[#allocation3 + $0x450] sm:$0xff] %vm580, %v3464
      %3533 = vst.msk [vmem:[#allocation3 + $0x478] sm:$0xff] %vm580, %v3466
      %3534 = vst.msk [vmem:[#allocation3 + $0x4a0] sm:$0xff] %vm580, %v3468
      %3535 = vst.msk [vmem:[#allocation3 + $0x4c8] sm:$0xff] %vm580, %v3470
      %3536 = vst.msk [vmem:[#allocation3 + $0x4f0] sm:$0xff] %vm580, %v3472
      %v3537 = vld [vmem:[%s1125 + $0x2] sm:$0xff]
      %v3538 = vld [vmem:[%s1125 + $0xa] sm:$0xff]
      %v3539 = vld [vmem:[%s1125 + $0x1a] sm:$0xff]
      %v3540 = vld [vmem:[%s1125 + $0x22] sm:$0xff]
      %v3541 = vld [vmem:[%s1125 + $0x32] sm:$0xff]
      %v3542 = vld [vmem:[%s1125 + $0x3a] sm:$0xff]
      %v3543 = vld [vmem:[%s1125 + $0x4a] sm:$0xff]
      %v3544 = vld [vmem:[%s1125 + $0x52] sm:$0xff]
      %v3545 = vld [vmem:[%s1125 + $0x62] sm:$0xff]
      %v3546 = vld [vmem:[%s1125 + $0x6a] sm:$0xff]
      %v3547 = vld [vmem:[%s1125 + $0x7a] sm:$0xff]
      %v3548 = vld [vmem:[%s1125 + $0x82] sm:$0xff]
      %v3549 = vld [vmem:[%s1125 + $0x92] sm:$0xff]
      %v3550 = vld [vmem:[%s1125 + $0x9a] sm:$0xff]
      %v3551 = vld [vmem:[%s1125 + $0xaa] sm:$0xff]
      %v3552 = vld [vmem:[%s1125 + $0xb2] sm:$0xff]
      %v3553 = vld [vmem:[%s1125 + $0xc2] sm:$0xff]
      %v3554 = vld [vmem:[%s1125 + $0xca] sm:$0xff]
      %v3555 = vld [vmem:[%s1125 + $0xda] sm:$0xff]
      %v3556 = vld [vmem:[%s1125 + $0xe2] sm:$0xff]
      %v3557 = vld [vmem:[%s1125 + $0xf2] sm:$0xff]
      %v3558 = vld [vmem:[%s1125 + $0xfa] sm:$0xff]
      %v3559 = vld [vmem:[%s1125 + $0x10a] sm:$0xff]
      %v3560 = vld [vmem:[%s1125 + $0x112] sm:$0xff]
      %v3561 = vld [vmem:[%s1125 + $0x122] sm:$0xff]
      %v3562 = vld [vmem:[%s1125 + $0x12a] sm:$0xff]
      %v3563 = vld [vmem:[%s1125 + $0x13a] sm:$0xff]
      %v3564 = vld [vmem:[%s1125 + $0x142] sm:$0xff]
      %v3565 = vld [vmem:[%s1125 + $0x152] sm:$0xff]
      %v3566 = vld [vmem:[%s1125 + $0x15a] sm:$0xff]
      %v3567 = vld [vmem:[%s1125 + $0x16a] sm:$0xff]
      %v3568 = vld [vmem:[%s1125 + $0x172] sm:$0xff]
      %3569 = vst.msk [vmem:[#allocation3 + $0x20] sm:$0xff] %vm245, %v3537
      %3570 = vst.msk [vmem:[#allocation3 + $0x48] sm:$0xff] %vm245, %v3538
      %3571 = vst.msk [vmem:[#allocation3 + $0x70] sm:$0xff] %vm245, %v3539
      %3572 = vst.msk [vmem:[#allocation3 + $0x98] sm:$0xff] %vm245, %v3540
      %3573 = vst.msk [vmem:[#allocation3 + $0xc0] sm:$0xff] %vm245, %v3541
      %3574 = vst.msk [vmem:[#allocation3 + $0xe8] sm:$0xff] %vm245, %v3542
      %3575 = vst.msk [vmem:[#allocation3 + $0x110] sm:$0xff] %vm245, %v3543
      %3576 = vst.msk [vmem:[#allocation3 + $0x138] sm:$0xff] %vm245, %v3544
      %3577 = vst.msk [vmem:[#allocation3 + $0x160] sm:$0xff] %vm245, %v3545
      %3578 = vst.msk [vmem:[#allocation3 + $0x188] sm:$0xff] %vm245, %v3546
      %3579 = vst.msk [vmem:[#allocation3 + $0x1b0] sm:$0xff] %vm245, %v3547
      %3580 = vst.msk [vmem:[#allocation3 + $0x1d8] sm:$0xff] %vm245, %v3548
      %3581 = vst.msk [vmem:[#allocation3 + $0x200] sm:$0xff] %vm245, %v3549
      %3582 = vst.msk [vmem:[#allocation3 + $0x228] sm:$0xff] %vm245, %v3550
      %3583 = vst.msk [vmem:[#allocation3 + $0x250] sm:$0xff] %vm245, %v3551
      %3584 = vst.msk [vmem:[#allocation3 + $0x278] sm:$0xff] %vm245, %v3552
      %3585 = vst.msk [vmem:[#allocation3 + $0x2a0] sm:$0xff] %vm245, %v3553
      %3586 = vst.msk [vmem:[#allocation3 + $0x2c8] sm:$0xff] %vm245, %v3554
      %3587 = vst.msk [vmem:[#allocation3 + $0x2f0] sm:$0xff] %vm245, %v3555
      %3588 = vst.msk [vmem:[#allocation3 + $0x318] sm:$0xff] %vm245, %v3556
      %3589 = vst.msk [vmem:[#allocation3 + $0x340] sm:$0xff] %vm245, %v3557
      %3590 = vst.msk [vmem:[#allocation3 + $0x368] sm:$0xff] %vm245, %v3558
      %3591 = vst.msk [vmem:[#allocation3 + $0x390] sm:$0xff] %vm245, %v3559
      %3592 = vst.msk [vmem:[#allocation3 + $0x3b8] sm:$0xff] %vm245, %v3560
      %3593 = vst.msk [vmem:[#allocation3 + $0x3e0] sm:$0xff] %vm245, %v3561
      %3594 = vst.msk [vmem:[#allocation3 + $0x408] sm:$0xff] %vm245, %v3562
      %3595 = vst.msk [vmem:[#allocation3 + $0x430] sm:$0xff] %vm245, %v3563
      %3596 = vst.msk [vmem:[#allocation3 + $0x458] sm:$0xff] %vm245, %v3564
      %3597 = vst.msk [vmem:[#allocation3 + $0x480] sm:$0xff] %vm245, %v3565
      %3598 = vst.msk [vmem:[#allocation3 + $0x4a8] sm:$0xff] %vm245, %v3566
      %3599 = vst.msk [vmem:[#allocation3 + $0x4d0] sm:$0xff] %vm245, %v3567
      %3600 = vst.msk [vmem:[#allocation3 + $0x4f8] sm:$0xff] %vm245, %v3568
      %v3601 = vld [vmem:[#allocation3] sm:$0xff]
      %v3602 = vld [vmem:[#allocation3 + $0x8] sm:$0xff]
      %v3603 = vld [vmem:[#allocation3 + $0x10] sm:$0xff]
      %v3604 = vld [vmem:[#allocation3 + $0x18] sm:$0xff]
      %v3605 = vld [vmem:[#allocation3 + $0x20] sm:$0xff]
      %v3606 = vld [vmem:[#allocation3 + $0x28] sm:$0xff]
      %v3607 = vld [vmem:[#allocation3 + $0x30] sm:$0xff]
      %v3608 = vld [vmem:[#allocation3 + $0x38] sm:$0xff]
      %v3609 = vld [vmem:[#allocation3 + $0x40] sm:$0xff]
      %v3610 = vld [vmem:[#allocation3 + $0x48] sm:$0xff]
      %v3611 = vld [vmem:[#allocation3 + $0x50] sm:$0xff]
      %v3612 = vld [vmem:[#allocation3 + $0x58] sm:$0xff]
      %v3613 = vld [vmem:[#allocation3 + $0x60] sm:$0xff]
      %v3614 = vld [vmem:[#allocation3 + $0x68] sm:$0xff]
      %v3615 = vld [vmem:[#allocation3 + $0x70] sm:$0xff]
      %v3616 = vld [vmem:[#allocation3 + $0x78] sm:$0xff]
      %v3617 = vld [vmem:[#allocation3 + $0x80] sm:$0xff]
      %v3618 = vld [vmem:[#allocation3 + $0x88] sm:$0xff]
      %v3619 = vld [vmem:[#allocation3 + $0x90] sm:$0xff]
      %v3620 = vld [vmem:[#allocation3 + $0x98] sm:$0xff]
      %v3621 = vld [vmem:[#allocation3 + $0xa0] sm:$0xff]
      %v3622 = vld [vmem:[#allocation3 + $0xa8] sm:$0xff]
      %v3623 = vld [vmem:[#allocation3 + $0xb0] sm:$0xff]
      %v3624 = vld [vmem:[#allocation3 + $0xb8] sm:$0xff]
      %v3625 = vld [vmem:[#allocation3 + $0xc0] sm:$0xff]
      %v3626 = vld [vmem:[#allocation3 + $0xc8] sm:$0xff]
      %v3627 = vld [vmem:[#allocation3 + $0xd0] sm:$0xff]
      %v3628 = vld [vmem:[#allocation3 + $0xd8] sm:$0xff]
      %v3629 = vld [vmem:[#allocation3 + $0xe0] sm:$0xff]
      %v3630 = vld [vmem:[#allocation3 + $0xe8] sm:$0xff]
      %v3631 = vld [vmem:[#allocation3 + $0xf0] sm:$0xff]
      %v3632 = vld [vmem:[#allocation3 + $0xf8] sm:$0xff]
      %v3633 = vld [vmem:[#allocation3 + $0x100] sm:$0xff]
      %v3634 = vld [vmem:[#allocation3 + $0x108] sm:$0xff]
      %v3635 = vld [vmem:[#allocation3 + $0x110] sm:$0xff]
      %v3636 = vld [vmem:[#allocation3 + $0x118] sm:$0xff]
      %v3637 = vld [vmem:[#allocation3 + $0x120] sm:$0xff]
      %v3638 = vld [vmem:[#allocation3 + $0x128] sm:$0xff]
      %v3639 = vld [vmem:[#allocation3 + $0x130] sm:$0xff]
      %v3640 = vld [vmem:[#allocation3 + $0x138] sm:$0xff]
      %v3641 = vld [vmem:[#allocation3 + $0x140] sm:$0xff]
      %v3642 = vld [vmem:[#allocation3 + $0x148] sm:$0xff]
      %v3643 = vld [vmem:[#allocation3 + $0x150] sm:$0xff]
      %v3644 = vld [vmem:[#allocation3 + $0x158] sm:$0xff]
      %v3645 = vld [vmem:[#allocation3 + $0x160] sm:$0xff]
      %v3646 = vld [vmem:[#allocation3 + $0x168] sm:$0xff]
      %v3647 = vld [vmem:[#allocation3 + $0x170] sm:$0xff]
      %v3648 = vld [vmem:[#allocation3 + $0x178] sm:$0xff]
      %v3649 = vld [vmem:[#allocation3 + $0x180] sm:$0xff]
      %v3650 = vld [vmem:[#allocation3 + $0x188] sm:$0xff]
      %v3651 = vld [vmem:[#allocation3 + $0x190] sm:$0xff]
      %v3652 = vld [vmem:[#allocation3 + $0x198] sm:$0xff]
      %v3653 = vld [vmem:[#allocation3 + $0x1a0] sm:$0xff]
      %v3654 = vld [vmem:[#allocation3 + $0x1a8] sm:$0xff]
      %v3655 = vld [vmem:[#allocation3 + $0x1b0] sm:$0xff]
      %v3656 = vld [vmem:[#allocation3 + $0x1b8] sm:$0xff]
      %v3657 = vld [vmem:[#allocation3 + $0x1c0] sm:$0xff]
      %v3658 = vld [vmem:[#allocation3 + $0x1c8] sm:$0xff]
      %v3659 = vld [vmem:[#allocation3 + $0x1d0] sm:$0xff]
      %v3660 = vld [vmem:[#allocation3 + $0x1d8] sm:$0xff]
      %v3661 = vld [vmem:[#allocation3 + $0x1e0] sm:$0xff]
      %v3662 = vld [vmem:[#allocation3 + $0x1e8] sm:$0xff]
      %v3663 = vld [vmem:[#allocation3 + $0x1f0] sm:$0xff]
      %v3664 = vld [vmem:[#allocation3 + $0x1f8] sm:$0xff]
      %v3665 = vld [vmem:[#allocation3 + $0x200] sm:$0xff]
      %v3666 = vld [vmem:[#allocation3 + $0x208] sm:$0xff]
      %v3667 = vld [vmem:[#allocation3 + $0x210] sm:$0xff]
      %v3668 = vld [vmem:[#allocation3 + $0x218] sm:$0xff]
      %v3669 = vld [vmem:[#allocation3 + $0x220] sm:$0xff]
      %v3670 = vld [vmem:[#allocation3 + $0x228] sm:$0xff]
      %v3671 = vld [vmem:[#allocation3 + $0x230] sm:$0xff]
      %v3672 = vld [vmem:[#allocation3 + $0x238] sm:$0xff]
      %v3673 = vld [vmem:[#allocation3 + $0x240] sm:$0xff]
      %v3674 = vld [vmem:[#allocation3 + $0x248] sm:$0xff]
      %v3675 = vld [vmem:[#allocation3 + $0x250] sm:$0xff]
      %v3676 = vld [vmem:[#allocation3 + $0x258] sm:$0xff]
      %v3677 = vld [vmem:[#allocation3 + $0x260] sm:$0xff]
      %v3678 = vld [vmem:[#allocation3 + $0x268] sm:$0xff]
      %v3679 = vld [vmem:[#allocation3 + $0x270] sm:$0xff]
      %v3680 = vld [vmem:[#allocation3 + $0x278] sm:$0xff]
      %v3681 = vld [vmem:[#allocation3 + $0x280] sm:$0xff]
      %v3682 = vld [vmem:[#allocation3 + $0x288] sm:$0xff]
      %v3683 = vld [vmem:[#allocation3 + $0x290] sm:$0xff]
      %v3684 = vld [vmem:[#allocation3 + $0x298] sm:$0xff]
      %v3685 = vld [vmem:[#allocation3 + $0x2a0] sm:$0xff]
      %v3686 = vld [vmem:[#allocation3 + $0x2a8] sm:$0xff]
      %v3687 = vld [vmem:[#allocation3 + $0x2b0] sm:$0xff]
      %v3688 = vld [vmem:[#allocation3 + $0x2b8] sm:$0xff]
      %v3689 = vld [vmem:[#allocation3 + $0x2c0] sm:$0xff]
      %v3690 = vld [vmem:[#allocation3 + $0x2c8] sm:$0xff]
      %v3691 = vld [vmem:[#allocation3 + $0x2d0] sm:$0xff]
      %v3692 = vld [vmem:[#allocation3 + $0x2d8] sm:$0xff]
      %v3693 = vld [vmem:[#allocation3 + $0x2e0] sm:$0xff]
      %v3694 = vld [vmem:[#allocation3 + $0x2e8] sm:$0xff]
      %v3695 = vld [vmem:[#allocation3 + $0x2f0] sm:$0xff]
      %v3696 = vld [vmem:[#allocation3 + $0x2f8] sm:$0xff]
      %v3697 = vld [vmem:[#allocation3 + $0x300] sm:$0xff]
      %v3698 = vld [vmem:[#allocation3 + $0x308] sm:$0xff]
      %v3699 = vld [vmem:[#allocation3 + $0x310] sm:$0xff]
      %v3700 = vld [vmem:[#allocation3 + $0x318] sm:$0xff]
      %v3701 = vld [vmem:[#allocation3 + $0x320] sm:$0xff]
      %v3702 = vld [vmem:[#allocation3 + $0x328] sm:$0xff]
      %v3703 = vld [vmem:[#allocation3 + $0x330] sm:$0xff]
      %v3704 = vld [vmem:[#allocation3 + $0x338] sm:$0xff]
      %v3705 = vld [vmem:[#allocation3 + $0x340] sm:$0xff]
      %v3706 = vld [vmem:[#allocation3 + $0x348] sm:$0xff]
      %v3707 = vld [vmem:[#allocation3 + $0x350] sm:$0xff]
      %v3708 = vld [vmem:[#allocation3 + $0x358] sm:$0xff]
      %v3709 = vld [vmem:[#allocation3 + $0x360] sm:$0xff]
      %v3710 = vld [vmem:[#allocation3 + $0x368] sm:$0xff]
      %v3711 = vld [vmem:[#allocation3 + $0x370] sm:$0xff]
      %v3712 = vld [vmem:[#allocation3 + $0x378] sm:$0xff]
      %v3713 = vld [vmem:[#allocation3 + $0x380] sm:$0xff]
      %v3714 = vld [vmem:[#allocation3 + $0x388] sm:$0xff]
      %v3715 = vld [vmem:[#allocation3 + $0x390] sm:$0xff]
      %v3716 = vld [vmem:[#allocation3 + $0x398] sm:$0xff]
      %v3717 = vld [vmem:[#allocation3 + $0x3a0] sm:$0xff]
      %v3718 = vld [vmem:[#allocation3 + $0x3a8] sm:$0xff]
      %v3719 = vld [vmem:[#allocation3 + $0x3b0] sm:$0xff]
      %v3720 = vld [vmem:[#allocation3 + $0x3b8] sm:$0xff]
      %v3721 = vld [vmem:[#allocation3 + $0x3c0] sm:$0xff]
      %v3722 = vld [vmem:[#allocation3 + $0x3c8] sm:$0xff]
      %v3723 = vld [vmem:[#allocation3 + $0x3d0] sm:$0xff]
      %v3724 = vld [vmem:[#allocation3 + $0x3d8] sm:$0xff]
      %v3725 = vld [vmem:[#allocation3 + $0x3e0] sm:$0xff]
      %v3726 = vld [vmem:[#allocation3 + $0x3e8] sm:$0xff]
      %v3727 = vld [vmem:[#allocation3 + $0x3f0] sm:$0xff]
      %v3728 = vld [vmem:[#allocation3 + $0x3f8] sm:$0xff]
      %v3729 = vld [vmem:[#allocation3 + $0x400] sm:$0xff]
      %v3730 = vld [vmem:[#allocation3 + $0x408] sm:$0xff]
      %v3731 = vld [vmem:[#allocation3 + $0x410] sm:$0xff]
      %v3732 = vld [vmem:[#allocation3 + $0x418] sm:$0xff]
      %v3733 = vld [vmem:[#allocation3 + $0x420] sm:$0xff]
      %v3734 = vld [vmem:[#allocation3 + $0x428] sm:$0xff]
      %v3735 = vld [vmem:[#allocation3 + $0x430] sm:$0xff]
      %v3736 = vld [vmem:[#allocation3 + $0x438] sm:$0xff]
      %v3737 = vld [vmem:[#allocation3 + $0x440] sm:$0xff]
      %v3738 = vld [vmem:[#allocation3 + $0x448] sm:$0xff]
      %v3739 = vld [vmem:[#allocation3 + $0x450] sm:$0xff]
      %v3740 = vld [vmem:[#allocation3 + $0x458] sm:$0xff]
      %v3741 = vld [vmem:[#allocation3 + $0x460] sm:$0xff]
      %v3742 = vld [vmem:[#allocation3 + $0x468] sm:$0xff]
      %v3743 = vld [vmem:[#allocation3 + $0x470] sm:$0xff]
      %v3744 = vld [vmem:[#allocation3 + $0x478] sm:$0xff]
      %v3745 = vld [vmem:[#allocation3 + $0x480] sm:$0xff]
      %v3746 = vld [vmem:[#allocation3 + $0x488] sm:$0xff]
      %v3747 = vld [vmem:[#allocation3 + $0x490] sm:$0xff]
      %v3748 = vld [vmem:[#allocation3 + $0x498] sm:$0xff]
      %v3749 = vld [vmem:[#allocation3 + $0x4a0] sm:$0xff]
      %v3750 = vld [vmem:[#allocation3 + $0x4a8] sm:$0xff]
      %v3751 = vld [vmem:[#allocation3 + $0x4b0] sm:$0xff]
      %v3752 = vld [vmem:[#allocation3 + $0x4b8] sm:$0xff]
      %v3753 = vld [vmem:[#allocation3 + $0x4c0] sm:$0xff]
      %v3754 = vld [vmem:[#allocation3 + $0x4c8] sm:$0xff]
      %v3755 = vld [vmem:[#allocation3 + $0x4d0] sm:$0xff]
      %v3756 = vld [vmem:[#allocation3 + $0x4d8] sm:$0xff]
      %v3757 = vld [vmem:[#allocation3 + $0x4e0] sm:$0xff]
      %v3758 = vld [vmem:[#allocation3 + $0x4e8] sm:$0xff]
      %v3759 = vld [vmem:[#allocation3 + $0x4f0] sm:$0xff]
      %v3760 = vld [vmem:[#allocation3 + $0x4f8] sm:$0xff]
      %v3761 = vld [vmem:[%s2] sm:$0xff]
      %v3762 = vld [vmem:[%s2 + $0x8] sm:$0xff]
      %v3763 = vld [vmem:[%s2 + $0x10] sm:$0xff]
      %v3764 = vld [vmem:[%s2 + $0x18] sm:$0xff]
      %v3765 = vld [vmem:[%s2 + $0x20] sm:$0xff]
      %v3766 = vld [vmem:[%s2 + $0x28] sm:$0xff]
      %v3767 = vld [vmem:[%s2 + $0x30] sm:$0xff]
      %v3768 = vld [vmem:[%s2 + $0x38] sm:$0xff]
      %v3769 = vld [vmem:[%s2 + $0x40] sm:$0xff]
      %v3770 = vld [vmem:[%s2 + $0x48] sm:$0xff]
      %v3771 = vld [vmem:[%s2 + $0x50] sm:$0xff]
      %v3772 = vld [vmem:[%s2 + $0x58] sm:$0xff]
      %v3773 = vld [vmem:[%s2 + $0x60] sm:$0xff]
      %v3774 = vld [vmem:[%s2 + $0x68] sm:$0xff]
      %v3775 = vld [vmem:[%s2 + $0x70] sm:$0xff]
      %v3776 = vld [vmem:[%s2 + $0x78] sm:$0xff]
      %v3777 = vld [vmem:[%s2 + $0x80] sm:$0xff]
      %v3778 = vld [vmem:[%s2 + $0x88] sm:$0xff]
      %v3779 = vld [vmem:[%s2 + $0x90] sm:$0xff]
      %v3780 = vld [vmem:[%s2 + $0x98] sm:$0xff]
      %v3781 = vld [vmem:[%s2 + $0xa0] sm:$0xff]
      %v3782 = vld [vmem:[%s2 + $0xa8] sm:$0xff]
      %v3783 = vld [vmem:[%s2 + $0xb0] sm:$0xff]
      %v3784 = vld [vmem:[%s2 + $0xb8] sm:$0xff]
      %v3785 = vld [vmem:[%s2 + $0xc0] sm:$0xff]
      %v3786 = vld [vmem:[%s2 + $0xc8] sm:$0xff]
      %v3787 = vld [vmem:[%s2 + $0xd0] sm:$0xff]
      %v3788 = vld [vmem:[%s2 + $0xd8] sm:$0xff]
      %v3789 = vld [vmem:[%s2 + $0xe0] sm:$0xff]
      %v3790 = vld [vmem:[%s2 + $0xe8] sm:$0xff]
      %v3791 = vld [vmem:[%s2 + $0xf0] sm:$0xff]
      %v3792 = vld [vmem:[%s2 + $0xf8] sm:$0xff]
      %v3793 = vld [vmem:[%s2 + $0x100] sm:$0xff]
      %v3794 = vld [vmem:[%s2 + $0x108] sm:$0xff]
      %v3795 = vld [vmem:[%s2 + $0x110] sm:$0xff]
      %v3796 = vld [vmem:[%s2 + $0x118] sm:$0xff]
      %v3797 = vld [vmem:[%s2 + $0x120] sm:$0xff]
      %v3798 = vld [vmem:[%s2 + $0x128] sm:$0xff]
      %v3799 = vld [vmem:[%s2 + $0x130] sm:$0xff]
      %v3800 = vld [vmem:[%s2 + $0x138] sm:$0xff]
      %v3801 = vld [vmem:[%s2 + $0x140] sm:$0xff]
      %v3802 = vld [vmem:[%s2 + $0x148] sm:$0xff]
      %v3803 = vld [vmem:[%s2 + $0x150] sm:$0xff]
      %v3804 = vld [vmem:[%s2 + $0x158] sm:$0xff]
      %v3805 = vld [vmem:[%s2 + $0x160] sm:$0xff]
      %v3806 = vld [vmem:[%s2 + $0x168] sm:$0xff]
      %v3807 = vld [vmem:[%s2 + $0x170] sm:$0xff]
      %v3808 = vld [vmem:[%s2 + $0x178] sm:$0xff]
      %v3809 = vld [vmem:[%s2 + $0x180] sm:$0xff]
      %v3810 = vld [vmem:[%s2 + $0x188] sm:$0xff]
      %v3811 = vld [vmem:[%s2 + $0x190] sm:$0xff]
      %v3812 = vld [vmem:[%s2 + $0x198] sm:$0xff]
      %v3813 = vld [vmem:[%s2 + $0x1a0] sm:$0xff]
      %v3814 = vld [vmem:[%s2 + $0x1a8] sm:$0xff]
      %v3815 = vld [vmem:[%s2 + $0x1b0] sm:$0xff]
      %v3816 = vld [vmem:[%s2 + $0x1b8] sm:$0xff]
      %v3817 = vld [vmem:[%s2 + $0x1c0] sm:$0xff]
      %v3818 = vld [vmem:[%s2 + $0x1c8] sm:$0xff]
      %v3819 = vld [vmem:[%s2 + $0x1d0] sm:$0xff]
      %v3820 = vld [vmem:[%s2 + $0x1d8] sm:$0xff]
      %v3821 = vld [vmem:[%s2 + $0x1e0] sm:$0xff]
      %v3822 = vld [vmem:[%s2 + $0x1e8] sm:$0xff]
      %v3823 = vld [vmem:[%s2 + $0x1f0] sm:$0xff]
      %v3824 = vld [vmem:[%s2 + $0x1f8] sm:$0xff]
      %v3825 = vld [vmem:[%s2 + $0x200] sm:$0xff]
      %v3826 = vld [vmem:[%s2 + $0x208] sm:$0xff]
      %v3827 = vld [vmem:[%s2 + $0x210] sm:$0xff]
      %v3828 = vld [vmem:[%s2 + $0x218] sm:$0xff]
      %v3829 = vld [vmem:[%s2 + $0x220] sm:$0xff]
      %v3830 = vld [vmem:[%s2 + $0x228] sm:$0xff]
      %v3831 = vld [vmem:[%s2 + $0x230] sm:$0xff]
      %v3832 = vld [vmem:[%s2 + $0x238] sm:$0xff]
      %v3834 = vsel %vm245, %v3605, 0
      %v3837 = vsel %vm245, %v3610, 0
      %v3840 = vsel %vm245, %v3615, 0
      %v3843 = vsel %vm245, %v3620, 0
      %v3846 = vsel %vm245, %v3625, 0
      %v3849 = vsel %vm245, %v3630, 0
      %v3852 = vsel %vm245, %v3635, 0
      %v3855 = vsel %vm245, %v3640, 0
      %v3858 = vsel %vm245, %v3645, 0
      %v3861 = vsel %vm245, %v3650, 0
      %v3864 = vsel %vm245, %v3655, 0
      %v3867 = vsel %vm245, %v3660, 0
      %v3870 = vsel %vm245, %v3665, 0
      %v3873 = vsel %vm245, %v3670, 0
      %v3876 = vsel %vm245, %v3675, 0
      %v3879 = vsel %vm245, %v3680, 0
      %v3882 = vsel %vm245, %v3685, 0
      %v3885 = vsel %vm245, %v3690, 0
      %v3888 = vsel %vm245, %v3695, 0
      %v3891 = vsel %vm245, %v3700, 0
      %v3894 = vsel %vm245, %v3705, 0
      %v3897 = vsel %vm245, %v3710, 0
      %v3900 = vsel %vm245, %v3715, 0
      %v3903 = vsel %vm245, %v3720, 0
      %v3906 = vsel %vm245, %v3725, 0
      %v3909 = vsel %vm245, %v3730, 0
      %v3912 = vsel %vm245, %v3735, 0
      %v3915 = vsel %vm245, %v3740, 0
      %v3918 = vsel %vm245, %v3745, 0
      %v3921 = vsel %vm245, %v3750, 0
      %v3924 = vsel %vm245, %v3755, 0
      %v3927 = vsel %vm245, %v3760, 0
      %3929 = vmatprep.subr.mxu0 0.0
      %3930 = vmatpush1.msra.mxu0 %v3776
      %3931 = vmatprep.subr.mxu0 0.0
      %3932 = vmatpush1.msra.mxu0 %v3775
      %3933 = vmatprep.subr.mxu0 0.0
      %3934 = vmatpush1.msra.mxu0 %v3774
      %3935 = vmatprep.subr.mxu0 0.0
      %3936 = vmatpush1.msra.mxu0 %v3773
      %3937 = vmatprep.subr.mxu0 0.0
      %3938 = vmatpush1.msra.mxu0 %v3772
      %3939 = vmatprep.subr.mxu0 0.0
      %3940 = vmatpush1.msra.mxu0 %v3771
      %3941 = vmatprep.subr.mxu0 0.0
      %3942 = vmatpush1.msra.mxu0 %v3770
      %3943 = vmatprep.subr.mxu0 0.0
      %3944 = vmatpush1.msra.mxu0 %v3769
      %3945 = vmatprep.subr.mxu0 0.0
      %3946 = vmatpush1.msra.mxu0 %v3768
      %3947 = vmatprep.subr.mxu0 0.0
      %3948 = vmatpush1.msra.mxu0 %v3767
      %3949 = vmatprep.subr.mxu0 0.0
      %3950 = vmatpush1.msra.mxu0 %v3766
      %3951 = vmatprep.subr.mxu0 0.0
      %3952 = vmatpush1.msra.mxu0 %v3765
      %3953 = vmatprep.subr.mxu0 0.0
      %3954 = vmatpush1.msra.mxu0 %v3764
      %3955 = vmatprep.subr.mxu0 0.0
      %3956 = vmatpush1.msra.mxu0 %v3763
      %3957 = vmatprep.subr.mxu0 0.0
      %3958 = vmatpush1.msra.mxu0 %v3762
      %3959 = vmatprep.subr.mxu0 0.0
      %3960 = vmatpush1.msra.mxu0 %v3761
      %3961 = vmatprep.subr.mxu0 0.0
      %3962 = vmatpush2.msra.mxu0 %v3792
      %3963 = vmatprep.subr.mxu0 0.0
      %3964 = vmatpush2.msra.mxu0 %v3791
      %3965 = vmatprep.subr.mxu0 0.0
      %3966 = vmatpush2.msra.mxu0 %v3790
      %3967 = vmatprep.subr.mxu0 0.0
      %3968 = vmatpush2.msra.mxu0 %v3789
      %3969 = vmatprep.subr.mxu0 0.0
      %3970 = vmatpush2.msra.mxu0 %v3788
      %3971 = vmatprep.subr.mxu0 0.0
      %3972 = vmatpush2.msra.mxu0 %v3787
      %3973 = vmatprep.subr.mxu0 0.0
      %3974 = vmatpush2.msra.mxu0 %v3786
      %3975 = vmatprep.subr.mxu0 0.0
      %3976 = vmatpush2.msra.mxu0 %v3785
      %3977 = vmatprep.subr.mxu0 0.0
      %3978 = vmatpush2.msra.mxu0 %v3784
      %3979 = vmatprep.subr.mxu0 0.0
      %3980 = vmatpush2.msra.mxu0 %v3783
      %3981 = vmatprep.subr.mxu0 0.0
      %3982 = vmatpush2.msra.mxu0 %v3782
      %3983 = vmatprep.subr.mxu0 0.0
      %3984 = vmatpush2.msra.mxu0 %v3781
      %3985 = vmatprep.subr.mxu0 0.0
      %3986 = vmatpush2.msra.mxu0 %v3780
      %3987 = vmatprep.subr.mxu0 0.0
      %3988 = vmatpush2.msra.mxu0 %v3779
      %3989 = vmatprep.subr.mxu0 0.0
      %3990 = vmatpush2.msra.mxu0 %v3778
      %3991 = vmatprep.subr.mxu0 0.0
      %3992 = vmatpush2.msra.mxu0 %v3777
      %3993 = vmatprep.mubr.f32.mxu0 %v3602
      %3994 = vmatmul.mubr.f32.gmra.mxu0 %v3601
      %v3995 = vpop.f32.mrf.mxu0
      %v3996 = vadd.f32 0.0, %v3995
      %v3997 = vpop.f32.mrf.mxu0
      %3998 = vmatprep.mubr.f32.mxu0 %v3607
      %3999 = vmatmul.mubr.f32.gmra.mxu0 %v3606
      %v4000 = vpop.f32.mrf.mxu0
      %v4001 = vadd.f32 0.0, %v4000
      %v4002 = vpop.f32.mrf.mxu0
      %4003 = vmatprep.mubr.f32.mxu0 %v3612
      %4004 = vmatmul.mubr.f32.gmra.mxu0 %v3611
      %v4005 = vpop.f32.mrf.mxu0
      %v4006 = vadd.f32 0.0, %v4005
      %v4007 = vpop.f32.mrf.mxu0
      %4008 = vmatprep.mubr.f32.mxu0 %v3617
      %4009 = vmatmul.mubr.f32.gmra.mxu0 %v3616
      %v4010 = vpop.f32.mrf.mxu0
      %v4011 = vadd.f32 0.0, %v4010
      %v4012 = vpop.f32.mrf.mxu0
      %4013 = vmatprep.mubr.f32.mxu0 %v3622
      %4014 = vmatmul.mubr.f32.gmra.mxu0 %v3621
      %v4015 = vpop.f32.mrf.mxu0
      %v4016 = vadd.f32 0.0, %v4015
      %v4017 = vpop.f32.mrf.mxu0
      %4018 = vmatprep.mubr.f32.mxu0 %v3627
      %4019 = vmatmul.mubr.f32.gmra.mxu0 %v3626
      %v4020 = vpop.f32.mrf.mxu0
      %v4021 = vadd.f32 0.0, %v4020
      %v4022 = vpop.f32.mrf.mxu0
      %4023 = vmatprep.mubr.f32.mxu0 %v3632
      %4024 = vmatmul.mubr.f32.gmra.mxu0 %v3631
      %v4025 = vpop.f32.mrf.mxu0
      %v4026 = vadd.f32 0.0, %v4025
      %v4027 = vpop.f32.mrf.mxu0
      %4028 = vmatprep.mubr.f32.mxu0 %v3637
      %4029 = vmatmul.mubr.f32.gmra.mxu0 %v3636
      %v4030 = vpop.f32.mrf.mxu0
      %v4031 = vadd.f32 0.0, %v4030
      %v4032 = vpop.f32.mrf.mxu0
      %4033 = vmatprep.mubr.f32.mxu0 %v3642
      %4034 = vmatmul.mubr.f32.gmra.mxu0 %v3641
      %v4035 = vpop.f32.mrf.mxu0
      %v4036 = vadd.f32 0.0, %v4035
      %v4037 = vpop.f32.mrf.mxu0
      %4038 = vmatprep.mubr.f32.mxu0 %v3647
      %4039 = vmatmul.mubr.f32.gmra.mxu0 %v3646
      %v4040 = vpop.f32.mrf.mxu0
      %v4041 = vadd.f32 0.0, %v4040
      %v4042 = vpop.f32.mrf.mxu0
      %4043 = vmatprep.mubr.f32.mxu0 %v3652
      %4044 = vmatmul.mubr.f32.gmra.mxu0 %v3651
      %v4045 = vpop.f32.mrf.mxu0
      %v4046 = vadd.f32 0.0, %v4045
      %v4047 = vpop.f32.mrf.mxu0
      %4048 = vmatprep.mubr.f32.mxu0 %v3657
      %4049 = vmatmul.mubr.f32.gmra.mxu0 %v3656
      %v4050 = vpop.f32.mrf.mxu0
      %v4051 = vadd.f32 0.0, %v4050
      %v4052 = vpop.f32.mrf.mxu0
      %4053 = vmatprep.mubr.f32.mxu0 %v3662
      %4054 = vmatmul.mubr.f32.gmra.mxu0 %v3661
      %v4055 = vpop.f32.mrf.mxu0
      %v4056 = vadd.f32 0.0, %v4055
      %v4057 = vpop.f32.mrf.mxu0
      %4058 = vmatprep.mubr.f32.mxu0 %v3667
      %4059 = vmatmul.mubr.f32.gmra.mxu0 %v3666
      %v4060 = vpop.f32.mrf.mxu0
      %v4061 = vadd.f32 0.0, %v4060
      %v4062 = vpop.f32.mrf.mxu0
      %4063 = vmatprep.mubr.f32.mxu0 %v3672
      %4064 = vmatmul.mubr.f32.gmra.mxu0 %v3671
      %v4065 = vpop.f32.mrf.mxu0
      %v4066 = vadd.f32 0.0, %v4065
      %v4067 = vpop.f32.mrf.mxu0
      %4068 = vmatprep.mubr.f32.mxu0 %v3677
      %4069 = vmatmul.mubr.f32.gmra.mxu0 %v3676
      %v4070 = vpop.f32.mrf.mxu0
      %v4071 = vadd.f32 0.0, %v4070
      %v4072 = vpop.f32.mrf.mxu0
      %4073 = vmatprep.mubr.f32.mxu0 %v3682
      %4074 = vmatmul.mubr.f32.gmra.mxu0 %v3681
      %v4075 = vpop.f32.mrf.mxu0
      %v4076 = vadd.f32 0.0, %v4075
      %v4077 = vpop.f32.mrf.mxu0
      %4078 = vmatprep.mubr.f32.mxu0 %v3687
      %4079 = vmatmul.mubr.f32.gmra.mxu0 %v3686
      %v4080 = vpop.f32.mrf.mxu0
      %v4081 = vadd.f32 0.0, %v4080
      %v4082 = vpop.f32.mrf.mxu0
      %4083 = vmatprep.mubr.f32.mxu0 %v3692
      %4084 = vmatmul.mubr.f32.gmra.mxu0 %v3691
      %v4085 = vpop.f32.mrf.mxu0
      %v4086 = vadd.f32 0.0, %v4085
      %v4087 = vpop.f32.mrf.mxu0
      %4088 = vmatprep.mubr.f32.mxu0 %v3697
      %4089 = vmatmul.mubr.f32.gmra.mxu0 %v3696
      %v4090 = vpop.f32.mrf.mxu0
      %v4091 = vadd.f32 0.0, %v4090
      %v4092 = vpop.f32.mrf.mxu0
      %4093 = vmatprep.mubr.f32.mxu0 %v3702
      %4094 = vmatmul.mubr.f32.gmra.mxu0 %v3701
      %v4095 = vpop.f32.mrf.mxu0
      %v4096 = vadd.f32 0.0, %v4095
      %v4097 = vpop.f32.mrf.mxu0
      %4098 = vmatprep.mubr.f32.mxu0 %v3707
      %4099 = vmatmul.mubr.f32.gmra.mxu0 %v3706
      %v4100 = vpop.f32.mrf.mxu0
      %v4101 = vadd.f32 0.0, %v4100
      %v4102 = vpop.f32.mrf.mxu0
      %4103 = vmatprep.mubr.f32.mxu0 %v3712
      %4104 = vmatmul.mubr.f32.gmra.mxu0 %v3711
      %v4105 = vpop.f32.mrf.mxu0
      %v4106 = vadd.f32 0.0, %v4105
      %v4107 = vpop.f32.mrf.mxu0
      %4108 = vmatprep.mubr.f32.mxu0 %v3717
      %4109 = vmatmul.mubr.f32.gmra.mxu0 %v3716
      %v4110 = vpop.f32.mrf.mxu0
      %v4111 = vadd.f32 0.0, %v4110
      %v4112 = vpop.f32.mrf.mxu0
      %4113 = vmatprep.mubr.f32.mxu0 %v3722
      %4114 = vmatmul.mubr.f32.gmra.mxu0 %v3721
      %v4115 = vpop.f32.mrf.mxu0
      %v4116 = vadd.f32 0.0, %v4115
      %v4117 = vpop.f32.mrf.mxu0
      %4118 = vmatprep.mubr.f32.mxu0 %v3727
      %4119 = vmatmul.mubr.f32.gmra.mxu0 %v3726
      %v4120 = vpop.f32.mrf.mxu0
      %v4121 = vadd.f32 0.0, %v4120
      %v4122 = vpop.f32.mrf.mxu0
      %4123 = vmatprep.mubr.f32.mxu0 %v3732
      %4124 = vmatmul.mubr.f32.gmra.mxu0 %v3731
      %v4125 = vpop.f32.mrf.mxu0
      %v4126 = vadd.f32 0.0, %v4125
      %v4127 = vpop.f32.mrf.mxu0
      %4128 = vmatprep.mubr.f32.mxu0 %v3737
      %4129 = vmatmul.mubr.f32.gmra.mxu0 %v3736
      %v4130 = vpop.f32.mrf.mxu0
      %v4131 = vadd.f32 0.0, %v4130
      %v4132 = vpop.f32.mrf.mxu0
      %4133 = vmatprep.mubr.f32.mxu0 %v3742
      %4134 = vmatmul.mubr.f32.gmra.mxu0 %v3741
      %v4135 = vpop.f32.mrf.mxu0
      %v4136 = vadd.f32 0.0, %v4135
      %v4137 = vpop.f32.mrf.mxu0
      %4138 = vmatprep.mubr.f32.mxu0 %v3747
      %4139 = vmatmul.mubr.f32.gmra.mxu0 %v3746
      %v4140 = vpop.f32.mrf.mxu0
      %v4141 = vadd.f32 0.0, %v4140
      %v4142 = vpop.f32.mrf.mxu0
      %4143 = vmatprep.mubr.f32.mxu0 %v3752
      %4144 = vmatmul.mubr.f32.gmra.mxu0 %v3751
      %v4145 = vpop.f32.mrf.mxu0
      %v4146 = vadd.f32 0.0, %v4145
      %v4147 = vpop.f32.mrf.mxu0
      %4148 = vmatprep.mubr.f32.mxu0 %v3757
      %4149 = vmatmul.mubr.f32.gmra.mxu0 %v3756
      %v4150 = vpop.f32.mrf.mxu0
      %v4151 = vadd.f32 0.0, %v4150
      %v4152 = vpop.f32.mrf.mxu0
      %4153 = vdwg.mxu0
      %4154 = vmatprep.subr.mxu0 0.0
      %4155 = vmatpush1.msra.mxu0 %v3808
      %4156 = vmatprep.subr.mxu0 0.0
      %4157 = vmatpush1.msra.mxu0 %v3807
      %4158 = vmatprep.subr.mxu0 0.0
      %4159 = vmatpush1.msra.mxu0 %v3806
      %4160 = vmatprep.subr.mxu0 0.0
      %4161 = vmatpush1.msra.mxu0 %v3805
      %4162 = vmatprep.subr.mxu0 0.0
      %4163 = vmatpush1.msra.mxu0 %v3804
      %4164 = vmatprep.subr.mxu0 0.0
      %4165 = vmatpush1.msra.mxu0 %v3803
      %4166 = vmatprep.subr.mxu0 0.0
      %4167 = vmatpush1.msra.mxu0 %v3802
      %4168 = vmatprep.subr.mxu0 0.0
      %4169 = vmatpush1.msra.mxu0 %v3801
      %4170 = vmatprep.subr.mxu0 0.0
      %4171 = vmatpush1.msra.mxu0 %v3800
      %4172 = vmatprep.subr.mxu0 0.0
      %4173 = vmatpush1.msra.mxu0 %v3799
      %4174 = vmatprep.subr.mxu0 0.0
      %4175 = vmatpush1.msra.mxu0 %v3798
      %4176 = vmatprep.subr.mxu0 0.0
      %4177 = vmatpush1.msra.mxu0 %v3797
      %4178 = vmatprep.subr.mxu0 0.0
      %4179 = vmatpush1.msra.mxu0 %v3796
      %4180 = vmatprep.subr.mxu0 0.0
      %4181 = vmatpush1.msra.mxu0 %v3795
      %4182 = vmatprep.subr.mxu0 0.0
      %4183 = vmatpush1.msra.mxu0 %v3794
      %4184 = vmatprep.subr.mxu0 0.0
      %4185 = vmatpush1.msra.mxu0 %v3793
      %4186 = vmatprep.subr.mxu0 0.0
      %4187 = vmatpush2.msra.mxu0 %v3824
      %4188 = vmatprep.subr.mxu0 0.0
      %4189 = vmatpush2.msra.mxu0 %v3823
      %4190 = vmatprep.subr.mxu0 0.0
      %4191 = vmatpush2.msra.mxu0 %v3822
      %4192 = vmatprep.subr.mxu0 0.0
      %4193 = vmatpush2.msra.mxu0 %v3821
      %4194 = vmatprep.subr.mxu0 0.0
      %4195 = vmatpush2.msra.mxu0 %v3820
      %4196 = vmatprep.subr.mxu0 0.0
      %4197 = vmatpush2.msra.mxu0 %v3819
      %4198 = vmatprep.subr.mxu0 0.0
      %4199 = vmatpush2.msra.mxu0 %v3818
      %4200 = vmatprep.subr.mxu0 0.0
      %4201 = vmatpush2.msra.mxu0 %v3817
      %4202 = vmatprep.subr.mxu0 0.0
      %4203 = vmatpush2.msra.mxu0 %v3816
      %4204 = vmatprep.subr.mxu0 0.0
      %4205 = vmatpush2.msra.mxu0 %v3815
      %4206 = vmatprep.subr.mxu0 0.0
      %4207 = vmatpush2.msra.mxu0 %v3814
      %4208 = vmatprep.subr.mxu0 0.0
      %4209 = vmatpush2.msra.mxu0 %v3813
      %4210 = vmatprep.subr.mxu0 0.0
      %4211 = vmatpush2.msra.mxu0 %v3812
      %4212 = vmatprep.subr.mxu0 0.0
      %4213 = vmatpush2.msra.mxu0 %v3811
      %4214 = vmatprep.subr.mxu0 0.0
      %4215 = vmatpush2.msra.mxu0 %v3810
      %4216 = vmatprep.subr.mxu0 0.0
      %4217 = vmatpush2.msra.mxu0 %v3809
      %4218 = vmatprep.mubr.f32.mxu0 %v3604
      %4219 = vmatmul.mubr.f32.gmra.mxu0 %v3603
      %v4220 = vpop.f32.mrf.mxu0
      %v4221 = vadd.f32 %v3996, %v4220
      %v4222 = vpop.f32.mrf.mxu0
      %4223 = vmatprep.mubr.f32.mxu0 %v3609
      %4224 = vmatmul.mubr.f32.gmra.mxu0 %v3608
      %v4225 = vpop.f32.mrf.mxu0
      %v4226 = vadd.f32 %v4001, %v4225
      %v4227 = vpop.f32.mrf.mxu0
      %4228 = vmatprep.mubr.f32.mxu0 %v3614
      %4229 = vmatmul.mubr.f32.gmra.mxu0 %v3613
      %v4230 = vpop.f32.mrf.mxu0
      %v4231 = vadd.f32 %v4006, %v4230
      %v4232 = vpop.f32.mrf.mxu0
      %4233 = vmatprep.mubr.f32.mxu0 %v3619
      %4234 = vmatmul.mubr.f32.gmra.mxu0 %v3618
      %v4235 = vpop.f32.mrf.mxu0
      %v4236 = vadd.f32 %v4011, %v4235
      %v4237 = vpop.f32.mrf.mxu0
      %4238 = vmatprep.mubr.f32.mxu0 %v3624
      %4239 = vmatmul.mubr.f32.gmra.mxu0 %v3623
      %v4240 = vpop.f32.mrf.mxu0
      %v4241 = vadd.f32 %v4016, %v4240
      %v4242 = vpop.f32.mrf.mxu0
      %4243 = vmatprep.mubr.f32.mxu0 %v3629
      %4244 = vmatmul.mubr.f32.gmra.mxu0 %v3628
      %v4245 = vpop.f32.mrf.mxu0
      %v4246 = vadd.f32 %v4021, %v4245
      %v4247 = vpop.f32.mrf.mxu0
      %4248 = vmatprep.mubr.f32.mxu0 %v3634
      %4249 = vmatmul.mubr.f32.gmra.mxu0 %v3633
      %v4250 = vpop.f32.mrf.mxu0
      %v4251 = vadd.f32 %v4026, %v4250
      %v4252 = vpop.f32.mrf.mxu0
      %4253 = vmatprep.mubr.f32.mxu0 %v3639
      %4254 = vmatmul.mubr.f32.gmra.mxu0 %v3638
      %v4255 = vpop.f32.mrf.mxu0
      %v4256 = vadd.f32 %v4031, %v4255
      %v4257 = vpop.f32.mrf.mxu0
      %4258 = vmatprep.mubr.f32.mxu0 %v3644
      %4259 = vmatmul.mubr.f32.gmra.mxu0 %v3643
      %v4260 = vpop.f32.mrf.mxu0
      %v4261 = vadd.f32 %v4036, %v4260
      %v4262 = vpop.f32.mrf.mxu0
      %4263 = vmatprep.mubr.f32.mxu0 %v3649
      %4264 = vmatmul.mubr.f32.gmra.mxu0 %v3648
      %v4265 = vpop.f32.mrf.mxu0
      %v4266 = vadd.f32 %v4041, %v4265
      %v4267 = vpop.f32.mrf.mxu0
      %4268 = vmatprep.mubr.f32.mxu0 %v3654
      %4269 = vmatmul.mubr.f32.gmra.mxu0 %v3653
      %v4270 = vpop.f32.mrf.mxu0
      %v4271 = vadd.f32 %v4046, %v4270
      %v4272 = vpop.f32.mrf.mxu0
      %4273 = vmatprep.mubr.f32.mxu0 %v3659
      %4274 = vmatmul.mubr.f32.gmra.mxu0 %v3658
      %v4275 = vpop.f32.mrf.mxu0
      %v4276 = vadd.f32 %v4051, %v4275
      %v4277 = vpop.f32.mrf.mxu0
      %4278 = vmatprep.mubr.f32.mxu0 %v3664
      %4279 = vmatmul.mubr.f32.gmra.mxu0 %v3663
      %v4280 = vpop.f32.mrf.mxu0
      %v4281 = vadd.f32 %v4056, %v4280
      %v4282 = vpop.f32.mrf.mxu0
      %4283 = vmatprep.mubr.f32.mxu0 %v3669
      %4284 = vmatmul.mubr.f32.gmra.mxu0 %v3668
      %v4285 = vpop.f32.mrf.mxu0
      %v4286 = vadd.f32 %v4061, %v4285
      %v4287 = vpop.f32.mrf.mxu0
      %4288 = vmatprep.mubr.f32.mxu0 %v3674
      %4289 = vmatmul.mubr.f32.gmra.mxu0 %v3673
      %v4290 = vpop.f32.mrf.mxu0
      %v4291 = vadd.f32 %v4066, %v4290
      %v4292 = vpop.f32.mrf.mxu0
      %4293 = vmatprep.mubr.f32.mxu0 %v3679
      %4294 = vmatmul.mubr.f32.gmra.mxu0 %v3678
      %v4295 = vpop.f32.mrf.mxu0
      %v4296 = vadd.f32 %v4071, %v4295
      %v4297 = vpop.f32.mrf.mxu0
      %4298 = vmatprep.mubr.f32.mxu0 %v3684
      %4299 = vmatmul.mubr.f32.gmra.mxu0 %v3683
      %v4300 = vpop.f32.mrf.mxu0
      %v4301 = vadd.f32 %v4076, %v4300
      %v4302 = vpop.f32.mrf.mxu0
      %4303 = vmatprep.mubr.f32.mxu0 %v3689
      %4304 = vmatmul.mubr.f32.gmra.mxu0 %v3688
      %v4305 = vpop.f32.mrf.mxu0
      %v4306 = vadd.f32 %v4081, %v4305
      %v4307 = vpop.f32.mrf.mxu0
      %4308 = vmatprep.mubr.f32.mxu0 %v3694
      %4309 = vmatmul.mubr.f32.gmra.mxu0 %v3693
      %v4310 = vpop.f32.mrf.mxu0
      %v4311 = vadd.f32 %v4086, %v4310
      %v4312 = vpop.f32.mrf.mxu0
      %4313 = vmatprep.mubr.f32.mxu0 %v3699
      %4314 = vmatmul.mubr.f32.gmra.mxu0 %v3698
      %v4315 = vpop.f32.mrf.mxu0
      %v4316 = vadd.f32 %v4091, %v4315
      %v4317 = vpop.f32.mrf.mxu0
      %4318 = vmatprep.mubr.f32.mxu0 %v3704
      %4319 = vmatmul.mubr.f32.gmra.mxu0 %v3703
      %v4320 = vpop.f32.mrf.mxu0
      %v4321 = vadd.f32 %v4096, %v4320
      %v4322 = vpop.f32.mrf.mxu0
      %4323 = vmatprep.mubr.f32.mxu0 %v3709
      %4324 = vmatmul.mubr.f32.gmra.mxu0 %v3708
      %v4325 = vpop.f32.mrf.mxu0
      %v4326 = vadd.f32 %v4101, %v4325
      %v4327 = vpop.f32.mrf.mxu0
      %4328 = vmatprep.mubr.f32.mxu0 %v3714
      %4329 = vmatmul.mubr.f32.gmra.mxu0 %v3713
      %v4330 = vpop.f32.mrf.mxu0
      %v4331 = vadd.f32 %v4106, %v4330
      %v4332 = vpop.f32.mrf.mxu0
      %4333 = vmatprep.mubr.f32.mxu0 %v3719
      %4334 = vmatmul.mubr.f32.gmra.mxu0 %v3718
      %v4335 = vpop.f32.mrf.mxu0
      %v4336 = vadd.f32 %v4111, %v4335
      %v4337 = vpop.f32.mrf.mxu0
      %4338 = vmatprep.mubr.f32.mxu0 %v3724
      %4339 = vmatmul.mubr.f32.gmra.mxu0 %v3723
      %v4340 = vpop.f32.mrf.mxu0
      %v4341 = vadd.f32 %v4116, %v4340
      %v4342 = vpop.f32.mrf.mxu0
      %4343 = vmatprep.mubr.f32.mxu0 %v3729
      %4344 = vmatmul.mubr.f32.gmra.mxu0 %v3728
      %v4345 = vpop.f32.mrf.mxu0
      %v4346 = vadd.f32 %v4121, %v4345
      %v4347 = vpop.f32.mrf.mxu0
      %4348 = vmatprep.mubr.f32.mxu0 %v3734
      %4349 = vmatmul.mubr.f32.gmra.mxu0 %v3733
      %v4350 = vpop.f32.mrf.mxu0
      %v4351 = vadd.f32 %v4126, %v4350
      %v4352 = vpop.f32.mrf.mxu0
      %4353 = vmatprep.mubr.f32.mxu0 %v3739
      %4354 = vmatmul.mubr.f32.gmra.mxu0 %v3738
      %v4355 = vpop.f32.mrf.mxu0
      %v4356 = vadd.f32 %v4131, %v4355
      %v4357 = vpop.f32.mrf.mxu0
      %4358 = vmatprep.mubr.f32.mxu0 %v3744
      %4359 = vmatmul.mubr.f32.gmra.mxu0 %v3743
      %v4360 = vpop.f32.mrf.mxu0
      %v4361 = vadd.f32 %v4136, %v4360
      %v4362 = vpop.f32.mrf.mxu0
      %4363 = vmatprep.mubr.f32.mxu0 %v3749
      %4364 = vmatmul.mubr.f32.gmra.mxu0 %v3748
      %v4365 = vpop.f32.mrf.mxu0
      %v4366 = vadd.f32 %v4141, %v4365
      %v4367 = vpop.f32.mrf.mxu0
      %4368 = vmatprep.mubr.f32.mxu0 %v3754
      %4369 = vmatmul.mubr.f32.gmra.mxu0 %v3753
      %v4370 = vpop.f32.mrf.mxu0
      %v4371 = vadd.f32 %v4146, %v4370
      %v4372 = vpop.f32.mrf.mxu0
      %4373 = vmatprep.mubr.f32.mxu0 %v3759
      %4374 = vmatmul.mubr.f32.gmra.mxu0 %v3758
      %v4375 = vpop.f32.mrf.mxu0
      %v4376 = vadd.f32 %v4151, %v4375
      %v4377 = vpop.f32.mrf.mxu0
      %4378 = vdwg.mxu0
      %4379 = vmatprep.subr.mxu0 0.0
      %4380 = vmatpush1.msra.mxu0 0.0
      %4381 = vmatprep.subr.mxu0 0.0
      %4382 = vmatpush1.msra.mxu0 0.0
      %4383 = vmatprep.subr.mxu0 0.0
      %4384 = vmatpush1.msra.mxu0 0.0
      %4385 = vmatprep.subr.mxu0 0.0
      %4386 = vmatpush1.msra.mxu0 0.0
      %4387 = vmatprep.subr.mxu0 0.0
      %4388 = vmatpush1.msra.mxu0 0.0
      %4389 = vmatprep.subr.mxu0 0.0
      %4390 = vmatpush1.msra.mxu0 0.0
      %4391 = vmatprep.subr.mxu0 0.0
      %4392 = vmatpush1.msra.mxu0 0.0
      %4393 = vmatprep.subr.mxu0 0.0
      %4394 = vmatpush1.msra.mxu0 0.0
      %4395 = vmatprep.subr.mxu0 0.0
      %4396 = vmatpush1.msra.mxu0 %v3832
      %4397 = vmatprep.subr.mxu0 0.0
      %4398 = vmatpush1.msra.mxu0 %v3831
      %4399 = vmatprep.subr.mxu0 0.0
      %4400 = vmatpush1.msra.mxu0 %v3830
      %4401 = vmatprep.subr.mxu0 0.0
      %4402 = vmatpush1.msra.mxu0 %v3829
      %4403 = vmatprep.subr.mxu0 0.0
      %4404 = vmatpush1.msra.mxu0 %v3828
      %4405 = vmatprep.subr.mxu0 0.0
      %4406 = vmatpush1.msra.mxu0 %v3827
      %4407 = vmatprep.subr.mxu0 0.0
      %4408 = vmatpush1.msra.mxu0 %v3826
      %4409 = vmatprep.subr.mxu0 0.0
      %4410 = vmatpush1.msra.mxu0 %v3825
      %4411 = vmatprep.subr.mxu0 0.0
      %4412 = vmatpush2.msra.mxu0 0.0
      %4413 = vmatprep.subr.mxu0 0.0
      %4414 = vmatpush2.msra.mxu0 0.0
      %4415 = vmatprep.subr.mxu0 0.0
      %4416 = vmatpush2.msra.mxu0 0.0
      %4417 = vmatprep.subr.mxu0 0.0
      %4418 = vmatpush2.msra.mxu0 0.0
      %4419 = vmatprep.subr.mxu0 0.0
      %4420 = vmatpush2.msra.mxu0 0.0
      %4421 = vmatprep.subr.mxu0 0.0
      %4422 = vmatpush2.msra.mxu0 0.0
      %4423 = vmatprep.subr.mxu0 0.0
      %4424 = vmatpush2.msra.mxu0 0.0
      %4425 = vmatprep.subr.mxu0 0.0
      %4426 = vmatpush2.msra.mxu0 0.0
      %4427 = vmatprep.subr.mxu0 0.0
      %4428 = vmatpush2.msra.mxu0 0.0
      %4429 = vmatprep.subr.mxu0 0.0
      %4430 = vmatpush2.msra.mxu0 0.0
      %4431 = vmatprep.subr.mxu0 0.0
      %4432 = vmatpush2.msra.mxu0 0.0
      %4433 = vmatprep.subr.mxu0 0.0
      %4434 = vmatpush2.msra.mxu0 0.0
      %4435 = vmatprep.subr.mxu0 0.0
      %4436 = vmatpush2.msra.mxu0 0.0
      %4437 = vmatprep.subr.mxu0 0.0
      %4438 = vmatpush2.msra.mxu0 0.0
      %4439 = vmatprep.subr.mxu0 0.0
      %4440 = vmatpush2.msra.mxu0 0.0
      %4441 = vmatprep.subr.mxu0 0.0
      %4442 = vmatpush2.msra.mxu0 0.0
      %4443 = vmatprep.mubr.f32.mxu0 0.0
      %4444 = vmatmul.mubr.f32.gmra.mxu0 %v3834
      %v4445 = vpop.f32.mrf.mxu0
      %v4446 = vadd.f32 %v4221, %v4445
      %v4447 = vpop.f32.mrf.mxu0
      %4448 = vmatprep.mubr.f32.mxu0 0.0
      %4449 = vmatmul.mubr.f32.gmra.mxu0 %v3837
      %v4450 = vpop.f32.mrf.mxu0
      %v4451 = vadd.f32 %v4226, %v4450
      %v4452 = vpop.f32.mrf.mxu0
      %4453 = vmatprep.mubr.f32.mxu0 0.0
      %4454 = vmatmul.mubr.f32.gmra.mxu0 %v3840
      %v4455 = vpop.f32.mrf.mxu0
      %v4456 = vadd.f32 %v4231, %v4455
      %v4457 = vpop.f32.mrf.mxu0
      %4458 = vmatprep.mubr.f32.mxu0 0.0
      %4459 = vmatmul.mubr.f32.gmra.mxu0 %v3843
      %v4460 = vpop.f32.mrf.mxu0
      %v4461 = vadd.f32 %v4236, %v4460
      %v4462 = vpop.f32.mrf.mxu0
      %4463 = vmatprep.mubr.f32.mxu0 0.0
      %4464 = vmatmul.mubr.f32.gmra.mxu0 %v3846
      %v4465 = vpop.f32.mrf.mxu0
      %v4466 = vadd.f32 %v4241, %v4465
      %v4467 = vpop.f32.mrf.mxu0
      %4468 = vmatprep.mubr.f32.mxu0 0.0
      %4469 = vmatmul.mubr.f32.gmra.mxu0 %v3849
      %v4470 = vpop.f32.mrf.mxu0
      %v4471 = vadd.f32 %v4246, %v4470
      %v4472 = vpop.f32.mrf.mxu0
      %4473 = vmatprep.mubr.f32.mxu0 0.0
      %4474 = vmatmul.mubr.f32.gmra.mxu0 %v3852
      %v4475 = vpop.f32.mrf.mxu0
      %v4476 = vadd.f32 %v4251, %v4475
      %v4477 = vpop.f32.mrf.mxu0
      %4478 = vmatprep.mubr.f32.mxu0 0.0
      %4479 = vmatmul.mubr.f32.gmra.mxu0 %v3855
      %v4480 = vpop.f32.mrf.mxu0
      %v4481 = vadd.f32 %v4256, %v4480
      %v4482 = vpop.f32.mrf.mxu0
      %4483 = vmatprep.mubr.f32.mxu0 0.0
      %4484 = vmatmul.mubr.f32.gmra.mxu0 %v3858
      %v4485 = vpop.f32.mrf.mxu0
      %v4486 = vadd.f32 %v4261, %v4485
      %v4487 = vpop.f32.mrf.mxu0
      %4488 = vmatprep.mubr.f32.mxu0 0.0
      %4489 = vmatmul.mubr.f32.gmra.mxu0 %v3861
      %v4490 = vpop.f32.mrf.mxu0
      %v4491 = vadd.f32 %v4266, %v4490
      %v4492 = vpop.f32.mrf.mxu0
      %4493 = vmatprep.mubr.f32.mxu0 0.0
      %4494 = vmatmul.mubr.f32.gmra.mxu0 %v3864
      %v4495 = vpop.f32.mrf.mxu0
      %v4496 = vadd.f32 %v4271, %v4495
      %v4497 = vpop.f32.mrf.mxu0
      %4498 = vmatprep.mubr.f32.mxu0 0.0
      %4499 = vmatmul.mubr.f32.gmra.mxu0 %v3867
      %v4500 = vpop.f32.mrf.mxu0
      %v4501 = vadd.f32 %v4276, %v4500
      %v4502 = vpop.f32.mrf.mxu0
      %4503 = vmatprep.mubr.f32.mxu0 0.0
      %4504 = vmatmul.mubr.f32.gmra.mxu0 %v3870
      %v4505 = vpop.f32.mrf.mxu0
      %v4506 = vadd.f32 %v4281, %v4505
      %v4507 = vpop.f32.mrf.mxu0
      %4508 = vmatprep.mubr.f32.mxu0 0.0
      %4509 = vmatmul.mubr.f32.gmra.mxu0 %v3873
      %v4510 = vpop.f32.mrf.mxu0
      %v4511 = vadd.f32 %v4286, %v4510
      %v4512 = vpop.f32.mrf.mxu0
      %4513 = vmatprep.mubr.f32.mxu0 0.0
      %4514 = vmatmul.mubr.f32.gmra.mxu0 %v3876
      %v4515 = vpop.f32.mrf.mxu0
      %v4516 = vadd.f32 %v4291, %v4515
      %v4517 = vpop.f32.mrf.mxu0
      %4518 = vmatprep.mubr.f32.mxu0 0.0
      %4519 = vmatmul.mubr.f32.gmra.mxu0 %v3879
      %v4520 = vpop.f32.mrf.mxu0
      %v4521 = vadd.f32 %v4296, %v4520
      %v4522 = vpop.f32.mrf.mxu0
      %4523 = vmatprep.mubr.f32.mxu0 0.0
      %4524 = vmatmul.mubr.f32.gmra.mxu0 %v3882
      %v4525 = vpop.f32.mrf.mxu0
      %v4526 = vadd.f32 %v4301, %v4525
      %v4527 = vpop.f32.mrf.mxu0
      %4528 = vmatprep.mubr.f32.mxu0 0.0
      %4529 = vmatmul.mubr.f32.gmra.mxu0 %v3885
      %v4530 = vpop.f32.mrf.mxu0
      %v4531 = vadd.f32 %v4306, %v4530
      %v4532 = vpop.f32.mrf.mxu0
      %4533 = vmatprep.mubr.f32.mxu0 0.0
      %4534 = vmatmul.mubr.f32.gmra.mxu0 %v3888
      %v4535 = vpop.f32.mrf.mxu0
      %v4536 = vadd.f32 %v4311, %v4535
      %v4537 = vpop.f32.mrf.mxu0
      %4538 = vmatprep.mubr.f32.mxu0 0.0
      %4539 = vmatmul.mubr.f32.gmra.mxu0 %v3891
      %v4540 = vpop.f32.mrf.mxu0
      %v4541 = vadd.f32 %v4316, %v4540
      %v4542 = vpop.f32.mrf.mxu0
      %4543 = vmatprep.mubr.f32.mxu0 0.0
      %4544 = vmatmul.mubr.f32.gmra.mxu0 %v3894
      %v4545 = vpop.f32.mrf.mxu0
      %v4546 = vadd.f32 %v4321, %v4545
      %v4547 = vpop.f32.mrf.mxu0
      %4548 = vmatprep.mubr.f32.mxu0 0.0
      %4549 = vmatmul.mubr.f32.gmra.mxu0 %v3897
      %v4550 = vpop.f32.mrf.mxu0
      %v4551 = vadd.f32 %v4326, %v4550
      %v4552 = vpop.f32.mrf.mxu0
      %4553 = vmatprep.mubr.f32.mxu0 0.0
      %4554 = vmatmul.mubr.f32.gmra.mxu0 %v3900
      %v4555 = vpop.f32.mrf.mxu0
      %v4556 = vadd.f32 %v4331, %v4555
      %v4557 = vpop.f32.mrf.mxu0
      %4558 = vmatprep.mubr.f32.mxu0 0.0
      %4559 = vmatmul.mubr.f32.gmra.mxu0 %v3903
      %v4560 = vpop.f32.mrf.mxu0
      %v4561 = vadd.f32 %v4336, %v4560
      %v4562 = vpop.f32.mrf.mxu0
      %4563 = vmatprep.mubr.f32.mxu0 0.0
      %4564 = vmatmul.mubr.f32.gmra.mxu0 %v3906
      %v4565 = vpop.f32.mrf.mxu0
      %v4566 = vadd.f32 %v4341, %v4565
      %v4567 = vpop.f32.mrf.mxu0
      %4568 = vmatprep.mubr.f32.mxu0 0.0
      %4569 = vmatmul.mubr.f32.gmra.mxu0 %v3909
      %v4570 = vpop.f32.mrf.mxu0
      %v4571 = vadd.f32 %v4346, %v4570
      %v4572 = vpop.f32.mrf.mxu0
      %4573 = vmatprep.mubr.f32.mxu0 0.0
      %4574 = vmatmul.mubr.f32.gmra.mxu0 %v3912
      %v4575 = vpop.f32.mrf.mxu0
      %v4576 = vadd.f32 %v4351, %v4575
      %v4577 = vpop.f32.mrf.mxu0
      %4578 = vmatprep.mubr.f32.mxu0 0.0
      %4579 = vmatmul.mubr.f32.gmra.mxu0 %v3915
      %v4580 = vpop.f32.mrf.mxu0
      %v4581 = vadd.f32 %v4356, %v4580
      %v4582 = vpop.f32.mrf.mxu0
      %4583 = vmatprep.mubr.f32.mxu0 0.0
      %4584 = vmatmul.mubr.f32.gmra.mxu0 %v3918
      %v4585 = vpop.f32.mrf.mxu0
      %v4586 = vadd.f32 %v4361, %v4585
      %v4587 = vpop.f32.mrf.mxu0
      %4588 = vmatprep.mubr.f32.mxu0 0.0
      %4589 = vmatmul.mubr.f32.gmra.mxu0 %v3921
      %v4590 = vpop.f32.mrf.mxu0
      %v4591 = vadd.f32 %v4366, %v4590
      %v4592 = vpop.f32.mrf.mxu0
      %4593 = vmatprep.mubr.f32.mxu0 0.0
      %4594 = vmatmul.mubr.f32.gmra.mxu0 %v3924
      %v4595 = vpop.f32.mrf.mxu0
      %v4596 = vadd.f32 %v4371, %v4595
      %v4597 = vpop.f32.mrf.mxu0
      %4598 = vmatprep.mubr.f32.mxu0 0.0
      %4599 = vmatmul.mubr.f32.gmra.mxu0 %v3927
      %v4600 = vpop.f32.mrf.mxu0
      %v4601 = vadd.f32 %v4376, %v4600
      %v4602 = vpop.f32.mrf.mxu0
      %4603 = vdwg.mxu0
      %4604 = vst.msk [vmem:[#allocation4] sm:$0xff] %vm245, %v4446
      %4605 = vst.msk [vmem:[#allocation4 + $0x8] sm:$0xff] %vm245, %v4451
      %4606 = vst.msk [vmem:[#allocation4 + $0x10] sm:$0xff] %vm245, %v4456
      %4607 = vst.msk [vmem:[#allocation4 + $0x18] sm:$0xff] %vm245, %v4461
      %4608 = vst.msk [vmem:[#allocation4 + $0x20] sm:$0xff] %vm245, %v4466
      %4609 = vst.msk [vmem:[#allocation4 + $0x28] sm:$0xff] %vm245, %v4471
      %4610 = vst.msk [vmem:[#allocation4 + $0x30] sm:$0xff] %vm245, %v4476
      %4611 = vst.msk [vmem:[#allocation4 + $0x38] sm:$0xff] %vm245, %v4481
      %4612 = vst.msk [vmem:[#allocation4 + $0x40] sm:$0xff] %vm245, %v4486
      %4613 = vst.msk [vmem:[#allocation4 + $0x48] sm:$0xff] %vm245, %v4491
      %4614 = vst.msk [vmem:[#allocation4 + $0x50] sm:$0xff] %vm245, %v4496
      %4615 = vst.msk [vmem:[#allocation4 + $0x58] sm:$0xff] %vm245, %v4501
      %4616 = vst.msk [vmem:[#allocation4 + $0x60] sm:$0xff] %vm245, %v4506
      %4617 = vst.msk [vmem:[#allocation4 + $0x68] sm:$0xff] %vm245, %v4511
      %4618 = vst.msk [vmem:[#allocation4 + $0x70] sm:$0xff] %vm245, %v4516
      %4619 = vst.msk [vmem:[#allocation4 + $0x78] sm:$0xff] %vm245, %v4521
      %4636 = vrot.lane.b32.xlu0 %v4526, 64
      %v4637 = vpop.permute.xlu0 %4636
      %4638 = vrot.lane.b32.xlu0 %v4531, 64
      %v4639 = vpop.permute.xlu0 %4638
      %4640 = vrot.lane.b32.xlu0 %v4536, 64
      %v4641 = vpop.permute.xlu0 %4640
      %4642 = vrot.lane.b32.xlu0 %v4541, 64
      %v4643 = vpop.permute.xlu0 %4642
      %4644 = vrot.lane.b32.xlu0 %v4546, 64
      %v4645 = vpop.permute.xlu0 %4644
      %4646 = vrot.lane.b32.xlu0 %v4551, 64
      %v4647 = vpop.permute.xlu0 %4646
      %4648 = vrot.lane.b32.xlu0 %v4556, 64
      %v4649 = vpop.permute.xlu0 %4648
      %4650 = vrot.lane.b32.xlu0 %v4561, 64
      %v4651 = vpop.permute.xlu0 %4650
      %4652 = vrot.lane.b32.xlu0 %v4566, 64
      %v4653 = vpop.permute.xlu0 %4652
      %4654 = vrot.lane.b32.xlu0 %v4571, 64
      %v4655 = vpop.permute.xlu0 %4654
      %4656 = vrot.lane.b32.xlu0 %v4576, 64
      %v4657 = vpop.permute.xlu0 %4656
      %4658 = vrot.lane.b32.xlu0 %v4581, 64
      %v4659 = vpop.permute.xlu0 %4658
      %4660 = vrot.lane.b32.xlu0 %v4586, 64
      %v4661 = vpop.permute.xlu0 %4660
      %4662 = vrot.lane.b32.xlu0 %v4591, 64
      %v4663 = vpop.permute.xlu0 %4662
      %4664 = vrot.lane.b32.xlu0 %v4596, 64
      %v4665 = vpop.permute.xlu0 %4664
      %4666 = vrot.lane.b32.xlu0 %v4601, 64
      %v4667 = vpop.permute.xlu0 %4666
      %4684 = vst.msk [vmem:[#allocation4] sm:$0xff] %vm580, %v4637
      %4685 = vst.msk [vmem:[#allocation4 + $0x8] sm:$0xff] %vm580, %v4639
      %4686 = vst.msk [vmem:[#allocation4 + $0x10] sm:$0xff] %vm580, %v4641
      %4687 = vst.msk [vmem:[#allocation4 + $0x18] sm:$0xff] %vm580, %v4643
      %4688 = vst.msk [vmem:[#allocation4 + $0x20] sm:$0xff] %vm580, %v4645
      %4689 = vst.msk [vmem:[#allocation4 + $0x28] sm:$0xff] %vm580, %v4647
      %4690 = vst.msk [vmem:[#allocation4 + $0x30] sm:$0xff] %vm580, %v4649
      %4691 = vst.msk [vmem:[#allocation4 + $0x38] sm:$0xff] %vm580, %v4651
      %4692 = vst.msk [vmem:[#allocation4 + $0x40] sm:$0xff] %vm580, %v4653
      %4693 = vst.msk [vmem:[#allocation4 + $0x48] sm:$0xff] %vm580, %v4655
      %4694 = vst.msk [vmem:[#allocation4 + $0x50] sm:$0xff] %vm580, %v4657
      %4695 = vst.msk [vmem:[#allocation4 + $0x58] sm:$0xff] %vm580, %v4659
      %4696 = vst.msk [vmem:[#allocation4 + $0x60] sm:$0xff] %vm580, %v4661
      %4697 = vst.msk [vmem:[#allocation4 + $0x68] sm:$0xff] %vm580, %v4663
      %4698 = vst.msk [vmem:[#allocation4 + $0x70] sm:$0xff] %vm580, %v4665
      %4699 = vst.msk [vmem:[#allocation4 + $0x78] sm:$0xff] %vm580, %v4667
      %v4700 = vld [vmem:[#allocation4] sm:$0xff]
      %v4701 = vld [vmem:[#allocation4 + $0x8] sm:$0xff]
      %v4702 = vld [vmem:[#allocation4 + $0x10] sm:$0xff]
      %v4703 = vld [vmem:[#allocation4 + $0x18] sm:$0xff]
      %v4704 = vld [vmem:[#allocation4 + $0x20] sm:$0xff]
      %v4705 = vld [vmem:[#allocation4 + $0x28] sm:$0xff]
      %v4706 = vld [vmem:[#allocation4 + $0x30] sm:$0xff]
      %v4707 = vld [vmem:[#allocation4 + $0x38] sm:$0xff]
      %v4708 = vld [vmem:[#allocation4 + $0x40] sm:$0xff]
      %v4709 = vld [vmem:[#allocation4 + $0x48] sm:$0xff]
      %v4710 = vld [vmem:[#allocation4 + $0x50] sm:$0xff]
      %v4711 = vld [vmem:[#allocation4 + $0x58] sm:$0xff]
      %v4712 = vld [vmem:[#allocation4 + $0x60] sm:$0xff]
      %v4713 = vld [vmem:[#allocation4 + $0x68] sm:$0xff]
      %v4714 = vld [vmem:[#allocation4 + $0x70] sm:$0xff]
      %v4715 = vld [vmem:[#allocation4 + $0x78] sm:$0xff]
      %v4716 = vmul.f32 %v4700, 0.1
      %v4717 = vmul.f32 %v4701, 0.1
      %v4718 = vmul.f32 %v4702, 0.1
      %v4719 = vmul.f32 %v4703, 0.1
      %v4720 = vmul.f32 %v4704, 0.1
      %v4721 = vmul.f32 %v4705, 0.1
      %v4722 = vmul.f32 %v4706, 0.1
      %v4723 = vmul.f32 %v4707, 0.1
      %v4724 = vmul.f32 %v4708, 0.1
      %v4725 = vmul.f32 %v4709, 0.1
      %v4726 = vmul.f32 %v4710, 0.1
      %v4727 = vmul.f32 %v4711, 0.1
      %v4728 = vmul.f32 %v4712, 0.1
      %v4729 = vmul.f32 %v4713, 0.1
      %v4730 = vmul.f32 %v4714, 0.1
      %v4731 = vmul.f32 %v4715, 0.1
      %v4732 = vld [vmem:[%s239] sm:$0xff]
      %v4733 = vld [vmem:[%s239 + $0x8] sm:$0xff]
      %v4734 = vld [vmem:[%s239 + $0x10] sm:$0xff]
      %v4735 = vld [vmem:[%s239 + $0x18] sm:$0xff]
      %v4736 = vld [vmem:[%s239 + $0x20] sm:$0xff]
      %v4737 = vld [vmem:[%s239 + $0x28] sm:$0xff]
      %v4738 = vld [vmem:[%s239 + $0x30] sm:$0xff]
      %v4739 = vld [vmem:[%s239 + $0x38] sm:$0xff]
      %v4740 = vld [vmem:[%s239 + $0x40] sm:$0xff]
      %v4741 = vld [vmem:[%s239 + $0x48] sm:$0xff]
      %v4742 = vld [vmem:[%s239 + $0x50] sm:$0xff]
      %v4743 = vld [vmem:[%s239 + $0x58] sm:$0xff]
      %v4744 = vld [vmem:[%s239 + $0x60] sm:$0xff]
      %v4745 = vld [vmem:[%s239 + $0x68] sm:$0xff]
      %v4746 = vld [vmem:[%s239 + $0x70] sm:$0xff]
      %v4747 = vld [vmem:[%s239 + $0x78] sm:$0xff]
      %v4748 = vadd.f32 %v4716, %v4732
      %v4749 = vadd.f32 %v4717, %v4733
      %v4750 = vadd.f32 %v4718, %v4734
      %v4751 = vadd.f32 %v4719, %v4735
      %v4752 = vadd.f32 %v4720, %v4736
      %v4753 = vadd.f32 %v4721, %v4737
      %v4754 = vadd.f32 %v4722, %v4738
      %v4755 = vadd.f32 %v4723, %v4739
      %v4756 = vadd.f32 %v4724, %v4740
      %v4757 = vadd.f32 %v4725, %v4741
      %v4758 = vadd.f32 %v4726, %v4742
      %v4759 = vadd.f32 %v4727, %v4743
      %v4760 = vadd.f32 %v4728, %v4744
      %v4761 = vadd.f32 %v4729, %v4745
      %v4762 = vadd.f32 %v4730, %v4746
      %v4763 = vadd.f32 %v4731, %v4747
      %v4764 = vadd.f32 %v4748, %v4749
      %v4765 = vadd.f32 %v4764, %v4750
      %v4766 = vadd.f32 %v4765, %v4751
      %v4767 = vadd.f32 %v4766, %v4752
      %v4768 = vadd.f32 %v4767, %v4753
      %v4769 = vadd.f32 %v4768, %v4754
      %v4770 = vadd.f32 %v4769, %v4755
      %v4771 = vadd.f32 %v4770, %v4756
      %v4772 = vadd.f32 %v4771, %v4757
      %v4773 = vadd.f32 %v4772, %v4758
      %v4774 = vadd.f32 %v4773, %v4759
      %v4775 = vadd.f32 %v4774, %v4760
      %v4776 = vadd.f32 %v4775, %v4761
      %v4777 = vadd.f32 %v4776, %v4762
      %v4778 = vadd.f32 %v4777, %v4763
      %v4779 = vrot.slane %v4778, 4
      %v4780 = vadd.f32 %v4778, %v4779
      %v4781 = vrot.slane %v4780, 2
      %v4782 = vadd.f32 %v4780, %v4781
      %v4783 = vrot.slane %v4782, 1
      %v4784 = vadd.f32 %v4782, %v4783
      %4786 = vrot.lane.b32.xlu0 %v4784, 64
      %v4787 = vpop.permute.xlu0 %4786
      %v4789 = vadd.f32 %v4784, %v4787
      %v4790 = vmul.f32 %v4789, 0.00390625
      %v4791 = vld [vmem:[%s3] sm:$0xff]
      %v4792 = vld [vmem:[%s3 + $0x8] sm:$0xff]
      %v4793 = vld [vmem:[%s3 + $0x10] sm:$0xff]
      %v4794 = vld [vmem:[%s3 + $0x18] sm:$0xff]
      %v4795 = vld [vmem:[%s3 + $0x20] sm:$0xff]
      %v4796 = vld [vmem:[%s3 + $0x28] sm:$0xff]
      %v4797 = vld [vmem:[%s3 + $0x30] sm:$0xff]
      %v4798 = vld [vmem:[%s3 + $0x38] sm:$0xff]
      %v4800 = vsel %vm245, %v4790, 0
      %4802 = vmatprep.subr.mxu0 0.0
      %4803 = vmatpush1.msra.mxu0 0.0
      %4804 = vmatprep.subr.mxu0 0.0
      %4805 = vmatpush1.msra.mxu0 0.0
      %4806 = vmatprep.subr.mxu0 0.0
      %4807 = vmatpush1.msra.mxu0 0.0
      %4808 = vmatprep.subr.mxu0 0.0
      %4809 = vmatpush1.msra.mxu0 0.0
      %4810 = vmatprep.subr.mxu0 0.0
      %4811 = vmatpush1.msra.mxu0 0.0
      %4812 = vmatprep.subr.mxu0 0.0
      %4813 = vmatpush1.msra.mxu0 0.0
      %4814 = vmatprep.subr.mxu0 0.0
      %4815 = vmatpush1.msra.mxu0 0.0
      %4816 = vmatprep.subr.mxu0 0.0
      %4817 = vmatpush1.msra.mxu0 0.0
      %4818 = vmatprep.subr.mxu0 0.0
      %4819 = vmatpush1.msra.mxu0 %v4798
      %4820 = vmatprep.subr.mxu0 0.0
      %4821 = vmatpush1.msra.mxu0 %v4797
      %4822 = vmatprep.subr.mxu0 0.0
      %4823 = vmatpush1.msra.mxu0 %v4796
      %4824 = vmatprep.subr.mxu0 0.0
      %4825 = vmatpush1.msra.mxu0 %v4795
      %4826 = vmatprep.subr.mxu0 0.0
      %4827 = vmatpush1.msra.mxu0 %v4794
      %4828 = vmatprep.subr.mxu0 0.0
      %4829 = vmatpush1.msra.mxu0 %v4793
      %4830 = vmatprep.subr.mxu0 0.0
      %4831 = vmatpush1.msra.mxu0 %v4792
      %4832 = vmatprep.subr.mxu0 0.0
      %4833 = vmatpush1.msra.mxu0 %v4791
      %4834 = vmatprep.subr.mxu0 0.0
      %4835 = vmatpush2.msra.mxu0 0.0
      %4836 = vmatprep.subr.mxu0 0.0
      %4837 = vmatpush2.msra.mxu0 0.0
      %4838 = vmatprep.subr.mxu0 0.0
      %4839 = vmatpush2.msra.mxu0 0.0
      %4840 = vmatprep.subr.mxu0 0.0
      %4841 = vmatpush2.msra.mxu0 0.0
      %4842 = vmatprep.subr.mxu0 0.0
      %4843 = vmatpush2.msra.mxu0 0.0
      %4844 = vmatprep.subr.mxu0 0.0
      %4845 = vmatpush2.msra.mxu0 0.0
      %4846 = vmatprep.subr.mxu0 0.0
      %4847 = vmatpush2.msra.mxu0 0.0
      %4848 = vmatprep.subr.mxu0 0.0
      %4849 = vmatpush2.msra.mxu0 0.0
      %4850 = vmatprep.subr.mxu0 0.0
      %4851 = vmatpush2.msra.mxu0 0.0
      %4852 = vmatprep.subr.mxu0 0.0
      %4853 = vmatpush2.msra.mxu0 0.0
      %4854 = vmatprep.subr.mxu0 0.0
      %4855 = vmatpush2.msra.mxu0 0.0
      %4856 = vmatprep.subr.mxu0 0.0
      %4857 = vmatpush2.msra.mxu0 0.0
      %4858 = vmatprep.subr.mxu0 0.0
      %4859 = vmatpush2.msra.mxu0 0.0
      %4860 = vmatprep.subr.mxu0 0.0
      %4861 = vmatpush2.msra.mxu0 0.0
      %4862 = vmatprep.subr.mxu0 0.0
      %4863 = vmatpush2.msra.mxu0 0.0
      %4864 = vmatprep.subr.mxu0 0.0
      %4865 = vmatpush2.msra.mxu0 0.0
      %4866 = vmatprep.mubr.f32.mxu0 0.0
      %4867 = vmatmul.mubr.f32.gmra.mxu0 %v4800
      %v4868 = vpop.f32.mrf.mxu0
      %v4869 = vadd.f32 0.0, %v4868
      %v4870 = vpop.f32.mrf.mxu0
      %4871 = vdwg.mxu0
      %v4872 = vmax.f32 %v4869, 0.0
      %v4873 = vld [vmem:[%s4] sm:$0xf]
      %vm4874 = vcmask 31744
      %v4876 = vsel %vm4874, %v4872, 0
      %vm4878 = vcmask 1043456
      %v4880 = vsel %vm4878, %v4873, 0
      %4882 = vmatprep.subr.mxu0 0.0
      %4883 = vmatpush1.msra.mxu0 0.0
      %4884 = vmatprep.subr.mxu0 0.0
      %4885 = vmatpush1.msra.mxu0 0.0
      %4886 = vmatprep.subr.mxu0 0.0
      %4887 = vmatpush1.msra.mxu0 0.0
      %4888 = vmatprep.subr.mxu0 0.0
      %4889 = vmatpush1.msra.mxu0 0.0
      %4890 = vmatprep.subr.mxu0 0.0
      %4891 = vmatpush1.msra.mxu0 0.0
      %4892 = vmatprep.subr.mxu0 0.0
      %4893 = vmatpush1.msra.mxu0 0.0
      %4894 = vmatprep.subr.mxu0 0.0
      %4895 = vmatpush1.msra.mxu0 0.0
      %4896 = vmatprep.subr.mxu0 0.0
      %4897 = vmatpush1.msra.mxu0 0.0
      %4898 = vmatprep.subr.mxu0 0.0
      %4899 = vmatpush1.msra.mxu0 0.0
      %4900 = vmatprep.subr.mxu0 0.0
      %4901 = vmatpush1.msra.mxu0 0.0
      %4902 = vmatprep.subr.mxu0 0.0
      %4903 = vmatpush1.msra.mxu0 0.0
      %4904 = vmatprep.subr.mxu0 0.0
      %4905 = vmatpush1.msra.mxu0 0.0
      %4906 = vmatprep.subr.mxu0 0.0
      %4907 = vmatpush1.msra.mxu0 0.0
      %4908 = vmatprep.subr.mxu0 0.0
      %4909 = vmatpush1.msra.mxu0 0.0
      %4910 = vmatprep.subr.mxu0 0.0
      %4911 = vmatpush1.msra.mxu0 0.0
      %4912 = vmatprep.subr.mxu0 0.0
      %4913 = vmatpush1.msra.mxu0 %v4880
      %4914 = vmatprep.subr.mxu0 0.0
      %4915 = vmatpush2.msra.mxu0 0.0
      %4916 = vmatprep.subr.mxu0 0.0
      %4917 = vmatpush2.msra.mxu0 0.0
      %4918 = vmatprep.subr.mxu0 0.0
      %4919 = vmatpush2.msra.mxu0 0.0
      %4920 = vmatprep.subr.mxu0 0.0
      %4921 = vmatpush2.msra.mxu0 0.0
      %4922 = vmatprep.subr.mxu0 0.0
      %4923 = vmatpush2.msra.mxu0 0.0
      %4924 = vmatprep.subr.mxu0 0.0
      %4925 = vmatpush2.msra.mxu0 0.0
      %4926 = vmatprep.subr.mxu0 0.0
      %4927 = vmatpush2.msra.mxu0 0.0
      %4928 = vmatprep.subr.mxu0 0.0
      %4929 = vmatpush2.msra.mxu0 0.0
      %4930 = vmatprep.subr.mxu0 0.0
      %4931 = vmatpush2.msra.mxu0 0.0
      %4932 = vmatprep.subr.mxu0 0.0
      %4933 = vmatpush2.msra.mxu0 0.0
      %4934 = vmatprep.subr.mxu0 0.0
      %4935 = vmatpush2.msra.mxu0 0.0
      %4936 = vmatprep.subr.mxu0 0.0
      %4937 = vmatpush2.msra.mxu0 0.0
      %4938 = vmatprep.subr.mxu0 0.0
      %4939 = vmatpush2.msra.mxu0 0.0
      %4940 = vmatprep.subr.mxu0 0.0
      %4941 = vmatpush2.msra.mxu0 0.0
      %4942 = vmatprep.subr.mxu0 0.0
      %4943 = vmatpush2.msra.mxu0 0.0
      %4944 = vmatprep.subr.mxu0 0.0
      %4945 = vmatpush2.msra.mxu0 0.0
      %4946 = vmatprep.mubr.f32.mxu0 0.0
      %4947 = vmatmul.mubr.f32.gmra.mxu0 %v4876
      %v4948 = vpop.f32.mrf.mxu0
      %v4949 = vadd.f32 0.0, %v4948
      %v4950 = vpop.f32.mrf.mxu0
      %4951 = vdwg.mxu0
      %v4952 = vsub.f32 0.0, %v4949
      %v4953 = vmul.f32 %v4952, 1.442695
      %v4954 = vpow.pop %v4953
      %v4955 = vadd.f32 %v4954, 1.0
      %v4956 = vrcp.pop %v4955
      %v4957 = vmul.f32 1.0, %v4956
      %v4958 = vlaneseq
      %v4959 = vshrl.u32 %v4958, 7
      %v4960 = vsub.s32 0, %v4959
      %v4961 = vrot.slane %v4957, %v4960
      %v4962 = vmul.f32 %v4748, %v4961
      %v4963 = vmul.f32 %v4749, %v4961
      %v4964 = vmul.f32 %v4750, %v4961
      %v4965 = vmul.f32 %v4751, %v4961
      %v4966 = vmul.f32 %v4752, %v4961
      %v4967 = vmul.f32 %v4753, %v4961
      %v4968 = vmul.f32 %v4754, %v4961
      %v4969 = vmul.f32 %v4755, %v4961
      %v4970 = vmul.f32 %v4756, %v4961
      %v4971 = vmul.f32 %v4757, %v4961
      %v4972 = vmul.f32 %v4758, %v4961
      %v4973 = vmul.f32 %v4759, %v4961
      %v4974 = vmul.f32 %v4760, %v4961
      %v4975 = vmul.f32 %v4761, %v4961
      %v4976 = vmul.f32 %v4762, %v4961
      %v4977 = vmul.f32 %v4763, %v4961
      %4978 = vst [vmem:[%s244] sm:$0xff] %v4962
      %4979 = vst [vmem:[%s244 + $0x8] sm:$0xff] %v4963
      %4980 = vst [vmem:[%s244 + $0x10] sm:$0xff] %v4964
      %4981 = vst [vmem:[%s244 + $0x18] sm:$0xff] %v4965
      %4982 = vst [vmem:[%s244 + $0x20] sm:$0xff] %v4966
      %4983 = vst [vmem:[%s244 + $0x28] sm:$0xff] %v4967
      %4984 = vst [vmem:[%s244 + $0x30] sm:$0xff] %v4968
      %4985 = vst [vmem:[%s244 + $0x38] sm:$0xff] %v4969
      %4986 = vst [vmem:[%s244 + $0x40] sm:$0xff] %v4970
      %4987 = vst [vmem:[%s244 + $0x48] sm:$0xff] %v4971
      %4988 = vst [vmem:[%s244 + $0x50] sm:$0xff] %v4972
      %4989 = vst [vmem:[%s244 + $0x58] sm:$0xff] %v4973
      %4990 = vst [vmem:[%s244 + $0x60] sm:$0xff] %v4974
      %4991 = vst [vmem:[%s244 + $0x68] sm:$0xff] %v4975
      %4992 = vst [vmem:[%s244 + $0x70] sm:$0xff] %v4976
      %4993 = vst [vmem:[%s244 + $0x78] sm:$0xff] %v4977
      %p4994 = scmp.lt.s32.totalorder %s16, 1
      %s4995 = scalar_select %p4994, %s16, 1
      %s4996 = smul.addr %s4995, 16
      %s4997 = smul.addr %s4996, 8
      %s4998 = scalar_lea.vmem %s5, %s4997
      // Predicated region
      $region41: #{rb_forward.1} parent=39 // pred_check
        %p4999 = pneg %p149
      $region42: #{rb_forward.1} parent=39 // pred_check_branch
        %5001 = sbr.rel (%p4999) target = $region44
      $region43: #{rb_forward.1} parent=39 // pred_region
        _
      $region44: #{rb_forward.1} parent=39 // pred_fallthru
        _
    $region40: #{rb_forward.1} parent=5 // pred_fallthru
      _
    %p5002 = scmp.le.s32.totalorder 2, %s11
    // Predicated region
    $region45: #{rb_forward.1} parent=5 // pred_check
      %p5003 = pneg %p5002
    $region46: #{rb_forward.1} parent=5 // pred_check_branch
      %5005 = sbr.rel (%p5003) target = $region48
    $region47: #{rb_forward.1} parent=5 // pred_region
      %s5006 = ssub.s32 %s11, 2
      // Predicated region
      $region49: #{rb_forward.1} parent=47 // pred_check
        %p5007 = pneg %p155
      $region50: #{rb_forward.1} parent=47 // pred_check_branch
        %5009 = sbr.rel (%p5007) target = $region52
      $region51: #{rb_forward.1} parent=47 // pred_region
        %p5010 = scmp.lt.s32.totalorder %s17, 1
        %s5011 = scalar_select %p5010, %s17, 1
        %s5012 = smul.addr %s5011, 16
        %s5013 = smul.addr %s5012, 8
        %s5014 = scalar_lea.vmem %s5, %s5013
      $region52: #{rb_forward.1} parent=47 // pred_fallthru
        _
    $region48: #{rb_forward.1} parent=5 // pred_fallthru
      _
  $region6: #{rb_forward.1} parent=0 // loop_footer
    %s15 = sadd.s32 1, %s11
  $region7: #{rb_forward.1} parent=0 // loop_footer_branch
    %10 = sbr.rel target = $region3
  $region8: #{rb_forward.1} parent=0 // loop_exit
    _

</llo_original>
